<compile_context>
chip_gen: v7x
topology: tpu7x:2x2x1
jax: 0.10.0
libtpu: 0.0.40
codegen_flags: <defaults>
</compile_context>

<pallas_src>
import jax
import jax.numpy as jnp
from jax import lax
from jax.experimental import pallas as pl
from jax.experimental.pallas import tpu as pltpu

T_LEN, BATCH, N_IN, N_HIDDEN, N_OUT = 8, 2, 32, 32, 16


# ----------------------------- Pallas kernel ------------------------------

def _lstm_cell(gates, c_prev, H):
    """PyTorch gate order (i, f, g, o). gates: (B, 4H)."""
    i = jax.nn.sigmoid(gates[:, 0 * H:1 * H])
    f = jax.nn.sigmoid(gates[:, 1 * H:2 * H])
    g = jnp.tanh(gates[:, 2 * H:3 * H])
    o = jax.nn.sigmoid(gates[:, 3 * H:4 * H])
    c = f * c_prev + i * g
    h = o * jnp.tanh(c)
    return h, c


def _make_fused_kernel(T, B, H):
    """Fused kernel: 2-layer bidirectional LSTM + output Linear, all in VMEM."""

    def bidir_layer(x_flat, w_ih, w_hh_f, w_hh_b, b):
        # x_flat: (T*B, in); w_ih: (in, 8H); w_hh_*: (H, 4H); b: (1, 8H)
        # Time-independent input projection for BOTH directions in one GEMM.
        gates_in = (jnp.dot(x_flat, w_ih, preferred_element_type=jnp.float32)
                    + b)                                        # (T*B, 8H)

        h_f = jnp.zeros((B, H), jnp.float32)
        c_f = jnp.zeros((B, H), jnp.float32)
        h_b = jnp.zeros((B, H), jnp.float32)
        c_b = jnp.zeros((B, H), jnp.float32)
        fwd_outs = [None] * T
        bwd_outs = [None] * T

        # Static unroll; the two recurrent chains are independent and interleave.
        for s in range(T):
            tf = s              # forward direction walks 0..T-1
            tb = T - 1 - s      # backward direction walks T-1..0 (no flips needed)
            gf = (gates_in[tf * B:(tf + 1) * B, 0 * H:4 * H]
                  + jnp.dot(h_f, w_hh_f, preferred_element_type=jnp.float32))
            gb = (gates_in[tb * B:(tb + 1) * B, 4 * H:8 * H]
                  + jnp.dot(h_b, w_hh_b, preferred_element_type=jnp.float32))
            h_f, c_f = _lstm_cell(gf, c_f, H)
            h_b, c_b = _lstm_cell(gb, c_b, H)
            fwd_outs[tf] = h_f
            bwd_outs[tb] = h_b          # stored in forward time order

        fwd = jnp.concatenate(fwd_outs, axis=0)                 # (T*B, H)
        bwd = jnp.concatenate(bwd_outs, axis=0)                 # (T*B, H)
        return jnp.concatenate([fwd, bwd], axis=-1)             # (T*B, 2H)

    def kernel(x_ref,
               w_ih0_ref, w_hh0f_ref, w_hh0b_ref, b0_ref,
               w_ih1_ref, w_hh1f_ref, w_hh1b_ref, b1_ref,
               emb_w_ref, emb_b_ref,
               out_ref):
        x = x_ref[...]                                          # (T*B, nIn)
        h0 = bidir_layer(x, w_ih0_ref[...], w_hh0f_ref[...],
                         w_hh0b_ref[...], b0_ref[...])          # (T*B, 2H)
        h1 = bidir_layer(h0, w_ih1_ref[...], w_hh1f_ref[...],
                         w_hh1b_ref[...], b1_ref[...])          # (T*B, 2H)
        out_ref[...] = (jnp.dot(h1, emb_w_ref[...],
                                preferred_element_type=jnp.float32)
                        + emb_b_ref[...])                       # (T*B, nOut)

    return kernel


# ------------------------------- wrappers ---------------------------------

_VMEM_SPEC = pl.BlockSpec(memory_space=pltpu.MemorySpace.VMEM)


def pack_params(params, n_hidden):
    """One-time packing: transpose weights, concat fwd/bwd input weights per
    layer, and fold the two bias vectors into a single (1, 8H) row."""
    H = n_hidden
    packed = {}
    for layer in range(2):
        w_ih_f = params[f"w_ih_l{layer}"]            # (4H, in)
        w_ih_b = params[f"w_ih_l{layer}_reverse"]    # (4H, in)
        packed[f"w_ih{layer}"] = jnp.concatenate([w_ih_f.T, w_ih_b.T], axis=1)  # (in, 8H)
        packed[f"w_hh{layer}_f"] = params[f"w_hh_l{layer}"].T                   # (H, 4H)
        packed[f"w_hh{layer}_b"] = params[f"w_hh_l{layer}_reverse"].T           # (H, 4H)
        b_f = params[f"b_ih_l{layer}"] + params[f"b_hh_l{layer}"]
        b_b = params[f"b_ih_l{layer}_reverse"] + params[f"b_hh_l{layer}_reverse"]
        packed[f"b{layer}"] = jnp.concatenate([b_f, b_b]).reshape(1, 8 * H)
    packed["emb_w"] = params["emb_w"].T              # (2H, nOut)
    packed["emb_b"] = params["emb_b"].reshape(1, -1)
    return packed


def bidirectional_lstm_forward(packed, x):
    # TODO(synk): nn.LSTM dropout=0.5 only applies in training mode; this is the
    # inference (eval) forward pass, so no dropout is applied.
    T, B, n_in = x.shape
    H = packed["w_hh0_f"].shape[0]
    n_out = packed["emb_w"].shape[1]
    kernel = _make_fused_kernel(T, B, H)
    out = pl.pallas_call(
        kernel,
        out_shape=jax.ShapeDtypeStruct((T * B, n_out), jnp.float32),
        in_specs=[_VMEM_SPEC] * 11,
        out_specs=_VMEM_SPEC,
    )(x.reshape(T * B, n_in),
      packed["w_ih0"], packed["w_hh0_f"], packed["w_hh0_b"], packed["b0"],
      packed["w_ih1"], packed["w_hh1_f"], packed["w_hh1_b"], packed["b1"],
      packed["emb_w"], packed["emb_b"])
    return out.reshape(T, B, n_out)


# ------------------------- deterministic parameters ------------------------

def init_params(key, n_in, n_hidden, n_out):
    params = {}
    k = 1.0 / jnp.sqrt(jnp.float32(n_hidden))
    keys = iter(jax.random.split(key, 32))

    def u(shape, bound):
        return jax.random.uniform(next(keys), shape, jnp.float32, -bound, bound)

    for layer in range(2):
        in_size = n_in if layer == 0 else 2 * n_hidden
        for suffix in ("", "_reverse"):
            name = f"l{layer}{suffix}"
            params[f"w_ih_{name}"] = u((4 * n_hidden, in_size), k)
            params[f"w_hh_{name}"] = u((4 * n_hidden, n_hidden), k)
            params[f"b_ih_{name}"] = u((4 * n_hidden,), k)
            params[f"b_hh_{name}"] = u((4 * n_hidden,), k)
    ke = 1.0 / jnp.sqrt(jnp.float32(2 * n_hidden))
    params["emb_w"] = u((n_out, 2 * n_hidden), ke)
    params["emb_b"] = u((n_out,), ke)
    return params


# ---------------------------- pure-JAX reference ---------------------------

def _ref_lstm_dir(x, w_ih, w_hh, b_ih, b_hh, reverse):
    B = x.shape[1]
    H = w_hh.shape[1]
    if reverse:
        x = jnp.flip(x, axis=0)

    def cell(carry, x_t):
        h, c = carry
        gates = x_t @ w_ih.T + h @ w_hh.T + b_ih + b_hh
        i, f, g, o = jnp.split(gates, 4, axis=-1)
        c = jax.nn.sigmoid(f) * c + jax.nn.sigmoid(i) * jnp.tanh(g)
        h = jax.nn.sigmoid(o) * jnp.tanh(c)
        return (h, c), h

    init = (jnp.zeros((B, H), jnp.float32), jnp.zeros((B, H), jnp.float32))
    _, ys = lax.scan(cell, init, x)
    if reverse:
        ys = jnp.flip(ys, axis=0)
    return ys


def _ref_forward(params, x):
    h = x
    for layer in range(2):
        fwd = _ref_lstm_dir(h, params[f"w_ih_l{layer}"], params[f"w_hh_l{layer}"],
                            params[f"b_ih_l{layer}"], params[f"b_hh_l{layer}"], False)
        bwd = _ref_lstm_dir(h, params[f"w_ih_l{layer}_reverse"],
                            params[f"w_hh_l{layer}_reverse"],
                            params[f"b_ih_l{layer}_reverse"],
                            params[f"b_hh_l{layer}_reverse"], True)
        h = jnp.concatenate([fwd, bwd], axis=-1)
    T, B, HH = h.shape
    out = h.reshape(T * B, HH) @ params["emb_w"].T + params["emb_b"]
    return out.reshape(T, B, -1)


# ---------------------------------- main -----------------------------------

if __name__ == "__main__":
    key = jax.random.PRNGKey(0)
    k_x, k_p = jax.random.split(key)
    x = jax.random.normal(k_x, (T_LEN, BATCH, N_IN), jnp.float32)
    params = init_params(k_p, N_IN, N_HIDDEN, N_OUT)

    # One-time parameter packing (outside the per-call forward graph).
    packed = jax.tree.map(jax.block_until_ready, pack_params(params, N_HIDDEN))

    fwd_fn = jax.jit(bidirectional_lstm_forward)
    out = jax.block_until_ready(fwd_fn(packed, x))
    assert out.shape == (T_LEN, BATCH, N_OUT), out.shape

    ref = jax.block_until_ready(_ref_forward(params, x))
    if not jnp.allclose(out, ref, atol=2e-3, rtol=2e-3):
        raise AssertionError("Pallas output does not match JAX reference")

    print("KERNEL_OK")
</pallas_src>

<mosaic_0001>
module attributes {stable_mosaic.version = 11 : i64} {
  func.func @kernel(%arg0: memref<16x32xf32, #tpu.memory_space<vmem>>, %arg1: memref<32x256xf32, #tpu.memory_space<vmem>>, %arg2: memref<32x128xf32, #tpu.memory_space<vmem>>, %arg3: memref<32x128xf32, #tpu.memory_space<vmem>>, %arg4: memref<1x256xf32, #tpu.memory_space<vmem>>, %arg5: memref<64x256xf32, #tpu.memory_space<vmem>>, %arg6: memref<32x128xf32, #tpu.memory_space<vmem>>, %arg7: memref<32x128xf32, #tpu.memory_space<vmem>>, %arg8: memref<1x256xf32, #tpu.memory_space<vmem>>, %arg9: memref<64x16xf32, #tpu.memory_space<vmem>>, %arg10: memref<1x16xf32, #tpu.memory_space<vmem>>, %arg11: memref<16x16xf32, #tpu.memory_space<vmem>>) attributes {dimension_semantics = [], scalar_prefetch = 0 : i64, scratch_operands = 0 : i64, tpu.core_type = #tpu.core_type<tc>} {
    %c0 = arith.constant 0 : index
    %c0_0 = arith.constant 0 : index
    %0 = vector.load %arg0[%c0, %c0_0] : memref<16x32xf32, #tpu.memory_space<vmem>>, vector<16x32xf32>
    %c0_1 = arith.constant 0 : index
    %c0_2 = arith.constant 0 : index
    %1 = vector.load %arg1[%c0_1, %c0_2] : memref<32x256xf32, #tpu.memory_space<vmem>>, vector<32x256xf32>
    %c0_3 = arith.constant 0 : index
    %c0_4 = arith.constant 0 : index
    %2 = vector.load %arg2[%c0_3, %c0_4] : memref<32x128xf32, #tpu.memory_space<vmem>>, vector<32x128xf32>
    %c0_5 = arith.constant 0 : index
    %c0_6 = arith.constant 0 : index
    %3 = vector.load %arg3[%c0_5, %c0_6] : memref<32x128xf32, #tpu.memory_space<vmem>>, vector<32x128xf32>
    %c0_7 = arith.constant 0 : index
    %c0_8 = arith.constant 0 : index
    %4 = vector.load %arg4[%c0_7, %c0_8] : memref<1x256xf32, #tpu.memory_space<vmem>>, vector<1x256xf32>
    %cst = arith.constant dense<0.000000e+00> : vector<16x256xf32>
    %5 = tpu.matmul %0, %1, %cst {dimension_numbers = #tpu.dot_dimension_numbers<[1], [0], [0], [1], [0, 0, 1, 1], [], []>} : vector<16x32xf32>, vector<32x256xf32>, vector<16x256xf32> -> vector<16x256xf32>
    %6 = vector.broadcast %4 : vector<1x256xf32> to vector<16x256xf32>
    %7 = arith.addf %5, %6 : vector<16x256xf32>
    %cst_9 = arith.constant 0.000000e+00 : f32
    %8 = vector.broadcast %cst_9 : f32 to vector<2x32xf32>
    %cst_10 = arith.constant 0.000000e+00 : f32
    %9 = vector.broadcast %cst_10 : f32 to vector<2x32xf32>
    %cst_11 = arith.constant 0.000000e+00 : f32
    %10 = vector.broadcast %cst_11 : f32 to vector<2x32xf32>
    %cst_12 = arith.constant 0.000000e+00 : f32
    %11 = vector.broadcast %cst_12 : f32 to vector<2x32xf32>
    %12 = vector.extract_strided_slice %7 {offsets = [0, 0], sizes = [2, 128], strides = [1, 1]} : vector<16x256xf32> to vector<2x128xf32>
    %cst_13 = arith.constant dense<0.000000e+00> : vector<2x128xf32>
    %13 = tpu.matmul %8, %2, %cst_13 {dimension_numbers = #tpu.dot_dimension_numbers<[1], [0], [0], [1], [0, 0, 1, 1], [], []>} : vector<2x32xf32>, vector<32x128xf32>, vector<2x128xf32> -> vector<2x128xf32>
    %14 = arith.addf %12, %13 : vector<2x128xf32>
    %15 = vector.extract_strided_slice %7 {offsets = [14, 128], sizes = [2, 128], strides = [1, 1]} : vector<16x256xf32> to vector<2x128xf32>
    %cst_14 = arith.constant dense<0.000000e+00> : vector<2x128xf32>
    %16 = tpu.matmul %10, %3, %cst_14 {dimension_numbers = #tpu.dot_dimension_numbers<[1], [0], [0], [1], [0, 0, 1, 1], [], []>} : vector<2x32xf32>, vector<32x128xf32>, vector<2x128xf32> -> vector<2x128xf32>
    %17 = arith.addf %15, %16 : vector<2x128xf32>
    %18 = vector.extract_strided_slice %14 {offsets = [0, 0], sizes = [2, 32], strides = [1, 1]} : vector<2x128xf32> to vector<2x32xf32>
    %19 = arith.negf %18 : vector<2x32xf32>
    %20 = math.exp %19 : vector<2x32xf32>
    %cst_15 = arith.constant 1.000000e+00 : f32
    %21 = vector.broadcast %cst_15 : f32 to vector<2x32xf32>
    %22 = arith.addf %21, %20 : vector<2x32xf32>
    %23 = arith.divf %21, %22 : vector<2x32xf32>
    %24 = vector.extract_strided_slice %14 {offsets = [0, 32], sizes = [2, 32], strides = [1, 1]} : vector<2x128xf32> to vector<2x32xf32>
    %25 = arith.negf %24 : vector<2x32xf32>
    %26 = math.exp %25 : vector<2x32xf32>
    %cst_16 = arith.constant 1.000000e+00 : f32
    %27 = vector.broadcast %cst_16 : f32 to vector<2x32xf32>
    %28 = arith.addf %27, %26 : vector<2x32xf32>
    %29 = arith.divf %27, %28 : vector<2x32xf32>
    %30 = vector.extract_strided_slice %14 {offsets = [0, 64], sizes = [2, 32], strides = [1, 1]} : vector<2x128xf32> to vector<2x32xf32>
    %31 = math.tanh %30 : vector<2x32xf32>
    %32 = vector.extract_strided_slice %14 {offsets = [0, 96], sizes = [2, 32], strides = [1, 1]} : vector<2x128xf32> to vector<2x32xf32>
    %33 = arith.negf %32 : vector<2x32xf32>
    %34 = math.exp %33 : vector<2x32xf32>
    %cst_17 = arith.constant 1.000000e+00 : f32
    %35 = vector.broadcast %cst_17 : f32 to vector<2x32xf32>
    %36 = arith.addf %35, %34 : vector<2x32xf32>
    %37 = arith.divf %35, %36 : vector<2x32xf32>
    %38 = arith.mulf %29, %9 : vector<2x32xf32>
    %39 = arith.mulf %23, %31 : vector<2x32xf32>
    %40 = arith.addf %38, %39 : vector<2x32xf32>
    %41 = math.tanh %40 : vector<2x32xf32>
    %42 = arith.mulf %37, %41 : vector<2x32xf32>
    %43 = vector.extract_strided_slice %17 {offsets = [0, 0], sizes = [2, 32], strides = [1, 1]} : vector<2x128xf32> to vector<2x32xf32>
    %44 = arith.negf %43 : vector<2x32xf32>
    %45 = math.exp %44 : vector<2x32xf32>
    %cst_18 = arith.constant 1.000000e+00 : f32
    %46 = vector.broadcast %cst_18 : f32 to vector<2x32xf32>
    %47 = arith.addf %46, %45 : vector<2x32xf32>
    %48 = arith.divf %46, %47 : vector<2x32xf32>
    %49 = vector.extract_strided_slice %17 {offsets = [0, 32], sizes = [2, 32], strides = [1, 1]} : vector<2x128xf32> to vector<2x32xf32>
    %50 = arith.negf %49 : vector<2x32xf32>
    %51 = math.exp %50 : vector<2x32xf32>
    %cst_19 = arith.constant 1.000000e+00 : f32
    %52 = vector.broadcast %cst_19 : f32 to vector<2x32xf32>
    %53 = arith.addf %52, %51 : vector<2x32xf32>
    %54 = arith.divf %52, %53 : vector<2x32xf32>
    %55 = vector.extract_strided_slice %17 {offsets = [0, 64], sizes = [2, 32], strides = [1, 1]} : vector<2x128xf32> to vector<2x32xf32>
    %56 = math.tanh %55 : vector<2x32xf32>
    %57 = vector.extract_strided_slice %17 {offsets = [0, 96], sizes = [2, 32], strides = [1, 1]} : vector<2x128xf32> to vector<2x32xf32>
    %58 = arith.negf %57 : vector<2x32xf32>
    %59 = math.exp %58 : vector<2x32xf32>
    %cst_20 = arith.constant 1.000000e+00 : f32
    %60 = vector.broadcast %cst_20 : f32 to vector<2x32xf32>
    %61 = arith.addf %60, %59 : vector<2x32xf32>
    %62 = arith.divf %60, %61 : vector<2x32xf32>
    %63 = arith.mulf %54, %11 : vector<2x32xf32>
    %64 = arith.mulf %48, %56 : vector<2x32xf32>
    %65 = arith.addf %63, %64 : vector<2x32xf32>
    %66 = math.tanh %65 : vector<2x32xf32>
    %67 = arith.mulf %62, %66 : vector<2x32xf32>
    %68 = vector.extract_strided_slice %7 {offsets = [2, 0], sizes = [2, 128], strides = [1, 1]} : vector<16x256xf32> to vector<2x128xf32>
    %cst_21 = arith.constant dense<0.000000e+00> : vector<2x128xf32>
    %69 = tpu.matmul %42, %2, %cst_21 {dimension_numbers = #tpu.dot_dimension_numbers<[1], [0], [0], [1], [0, 0, 1, 1], [], []>} : vector<2x32xf32>, vector<32x128xf32>, vector<2x128xf32> -> vector<2x128xf32>
    %70 = arith.addf %68, %69 : vector<2x128xf32>
    %71 = vector.extract_strided_slice %7 {offsets = [12, 128], sizes = [2, 128], strides = [1, 1]} : vector<16x256xf32> to vector<2x128xf32>
    %cst_22 = arith.constant dense<0.000000e+00> : vector<2x128xf32>
    %72 = tpu.matmul %67, %3, %cst_22 {dimension_numbers = #tpu.dot_dimension_numbers<[1], [0], [0], [1], [0, 0, 1, 1], [], []>} : vector<2x32xf32>, vector<32x128xf32>, vector<2x128xf32> -> vector<2x128xf32>
    %73 = arith.addf %71, %72 : vector<2x128xf32>
    %74 = vector.extract_strided_slice %70 {offsets = [0, 0], sizes = [2, 32], strides = [1, 1]} : vector<2x128xf32> to vector<2x32xf32>
    %75 = arith.negf %74 : vector<2x32xf32>
    %76 = math.exp %75 : vector<2x32xf32>
    %cst_23 = arith.constant 1.000000e+00 : f32
    %77 = vector.broadcast %cst_23 : f32 to vector<2x32xf32>
    %78 = arith.addf %77, %76 : vector<2x32xf32>
    %79 = arith.divf %77, %78 : vector<2x32xf32>
    %80 = vector.extract_strided_slice %70 {offsets = [0, 32], sizes = [2, 32], strides = [1, 1]} : vector<2x128xf32> to vector<2x32xf32>
    %81 = arith.negf %80 : vector<2x32xf32>
    %82 = math.exp %81 : vector<2x32xf32>
    %cst_24 = arith.constant 1.000000e+00 : f32
    %83 = vector.broadcast %cst_24 : f32 to vector<2x32xf32>
    %84 = arith.addf %83, %82 : vector<2x32xf32>
    %85 = arith.divf %83, %84 : vector<2x32xf32>
    %86 = vector.extract_strided_slice %70 {offsets = [0, 64], sizes = [2, 32], strides = [1, 1]} : vector<2x128xf32> to vector<2x32xf32>
    %87 = math.tanh %86 : vector<2x32xf32>
    %88 = vector.extract_strided_slice %70 {offsets = [0, 96], sizes = [2, 32], strides = [1, 1]} : vector<2x128xf32> to vector<2x32xf32>
    %89 = arith.negf %88 : vector<2x32xf32>
    %90 = math.exp %89 : vector<2x32xf32>
    %cst_25 = arith.constant 1.000000e+00 : f32
    %91 = vector.broadcast %cst_25 : f32 to vector<2x32xf32>
    %92 = arith.addf %91, %90 : vector<2x32xf32>
    %93 = arith.divf %91, %92 : vector<2x32xf32>
    %94 = arith.mulf %85, %40 : vector<2x32xf32>
    %95 = arith.mulf %79, %87 : vector<2x32xf32>
    %96 = arith.addf %94, %95 : vector<2x32xf32>
    %97 = math.tanh %96 : vector<2x32xf32>
    %98 = arith.mulf %93, %97 : vector<2x32xf32>
    %99 = vector.extract_strided_slice %73 {offsets = [0, 0], sizes = [2, 32], strides = [1, 1]} : vector<2x128xf32> to vector<2x32xf32>
    %100 = arith.negf %99 : vector<2x32xf32>
    %101 = math.exp %100 : vector<2x32xf32>
    %cst_26 = arith.constant 1.000000e+00 : f32
    %102 = vector.broadcast %cst_26 : f32 to vector<2x32xf32>
    %103 = arith.addf %102, %101 : vector<2x32xf32>
    %104 = arith.divf %102, %103 : vector<2x32xf32>
    %105 = vector.extract_strided_slice %73 {offsets = [0, 32], sizes = [2, 32], strides = [1, 1]} : vector<2x128xf32> to vector<2x32xf32>
    %106 = arith.negf %105 : vector<2x32xf32>
    %107 = math.exp %106 : vector<2x32xf32>
    %cst_27 = arith.constant 1.000000e+00 : f32
    %108 = vector.broadcast %cst_27 : f32 to vector<2x32xf32>
    %109 = arith.addf %108, %107 : vector<2x32xf32>
    %110 = arith.divf %108, %109 : vector<2x32xf32>
    %111 = vector.extract_strided_slice %73 {offsets = [0, 64], sizes = [2, 32], strides = [1, 1]} : vector<2x128xf32> to vector<2x32xf32>
    %112 = math.tanh %111 : vector<2x32xf32>
    %113 = vector.extract_strided_slice %73 {offsets = [0, 96], sizes = [2, 32], strides = [1, 1]} : vector<2x128xf32> to vector<2x32xf32>
    %114 = arith.negf %113 : vector<2x32xf32>
    %115 = math.exp %114 : vector<2x32xf32>
    %cst_28 = arith.constant 1.000000e+00 : f32
    %116 = vector.broadcast %cst_28 : f32 to vector<2x32xf32>
    %117 = arith.addf %116, %115 : vector<2x32xf32>
    %118 = arith.divf %116, %117 : vector<2x32xf32>
    %119 = arith.mulf %110, %65 : vector<2x32xf32>
    %120 = arith.mulf %104, %112 : vector<2x32xf32>
    %121 = arith.addf %119, %120 : vector<2x32xf32>
    %122 = math.tanh %121 : vector<2x32xf32>
    %123 = arith.mulf %118, %122 : vector<2x32xf32>
    %124 = vector.extract_strided_slice %7 {offsets = [4, 0], sizes = [2, 128], strides = [1, 1]} : vector<16x256xf32> to vector<2x128xf32>
    %cst_29 = arith.constant dense<0.000000e+00> : vector<2x128xf32>
    %125 = tpu.matmul %98, %2, %cst_29 {dimension_numbers = #tpu.dot_dimension_numbers<[1], [0], [0], [1], [0, 0, 1, 1], [], []>} : vector<2x32xf32>, vector<32x128xf32>, vector<2x128xf32> -> vector<2x128xf32>
    %126 = arith.addf %124, %125 : vector<2x128xf32>
    %127 = vector.extract_strided_slice %7 {offsets = [10, 128], sizes = [2, 128], strides = [1, 1]} : vector<16x256xf32> to vector<2x128xf32>
    %cst_30 = arith.constant dense<0.000000e+00> : vector<2x128xf32>
    %128 = tpu.matmul %123, %3, %cst_30 {dimension_numbers = #tpu.dot_dimension_numbers<[1], [0], [0], [1], [0, 0, 1, 1], [], []>} : vector<2x32xf32>, vector<32x128xf32>, vector<2x128xf32> -> vector<2x128xf32>
    %129 = arith.addf %127, %128 : vector<2x128xf32>
    %130 = vector.extract_strided_slice %126 {offsets = [0, 0], sizes = [2, 32], strides = [1, 1]} : vector<2x128xf32> to vector<2x32xf32>
    %131 = arith.negf %130 : vector<2x32xf32>
    %132 = math.exp %131 : vector<2x32xf32>
    %cst_31 = arith.constant 1.000000e+00 : f32
    %133 = vector.broadcast %cst_31 : f32 to vector<2x32xf32>
    %134 = arith.addf %133, %132 : vector<2x32xf32>
    %135 = arith.divf %133, %134 : vector<2x32xf32>
    %136 = vector.extract_strided_slice %126 {offsets = [0, 32], sizes = [2, 32], strides = [1, 1]} : vector<2x128xf32> to vector<2x32xf32>
    %137 = arith.negf %136 : vector<2x32xf32>
    %138 = math.exp %137 : vector<2x32xf32>
    %cst_32 = arith.constant 1.000000e+00 : f32
    %139 = vector.broadcast %cst_32 : f32 to vector<2x32xf32>
    %140 = arith.addf %139, %138 : vector<2x32xf32>
    %141 = arith.divf %139, %140 : vector<2x32xf32>
    %142 = vector.extract_strided_slice %126 {offsets = [0, 64], sizes = [2, 32], strides = [1, 1]} : vector<2x128xf32> to vector<2x32xf32>
    %143 = math.tanh %142 : vector<2x32xf32>
    %144 = vector.extract_strided_slice %126 {offsets = [0, 96], sizes = [2, 32], strides = [1, 1]} : vector<2x128xf32> to vector<2x32xf32>
    %145 = arith.negf %144 : vector<2x32xf32>
    %146 = math.exp %145 : vector<2x32xf32>
    %cst_33 = arith.constant 1.000000e+00 : f32
    %147 = vector.broadcast %cst_33 : f32 to vector<2x32xf32>
    %148 = arith.addf %147, %146 : vector<2x32xf32>
    %149 = arith.divf %147, %148 : vector<2x32xf32>
    %150 = arith.mulf %141, %96 : vector<2x32xf32>
    %151 = arith.mulf %135, %143 : vector<2x32xf32>
    %152 = arith.addf %150, %151 : vector<2x32xf32>
    %153 = math.tanh %152 : vector<2x32xf32>
    %154 = arith.mulf %149, %153 : vector<2x32xf32>
    %155 = vector.extract_strided_slice %129 {offsets = [0, 0], sizes = [2, 32], strides = [1, 1]} : vector<2x128xf32> to vector<2x32xf32>
    %156 = arith.negf %155 : vector<2x32xf32>
    %157 = math.exp %156 : vector<2x32xf32>
    %cst_34 = arith.constant 1.000000e+00 : f32
    %158 = vector.broadcast %cst_34 : f32 to vector<2x32xf32>
    %159 = arith.addf %158, %157 : vector<2x32xf32>
    %160 = arith.divf %158, %159 : vector<2x32xf32>
    %161 = vector.extract_strided_slice %129 {offsets = [0, 32], sizes = [2, 32], strides = [1, 1]} : vector<2x128xf32> to vector<2x32xf32>
    %162 = arith.negf %161 : vector<2x32xf32>
    %163 = math.exp %162 : vector<2x32xf32>
    %cst_35 = arith.constant 1.000000e+00 : f32
    %164 = vector.broadcast %cst_35 : f32 to vector<2x32xf32>
    %165 = arith.addf %164, %163 : vector<2x32xf32>
    %166 = arith.divf %164, %165 : vector<2x32xf32>
    %167 = vector.extract_strided_slice %129 {offsets = [0, 64], sizes = [2, 32], strides = [1, 1]} : vector<2x128xf32> to vector<2x32xf32>
    %168 = math.tanh %167 : vector<2x32xf32>
    %169 = vector.extract_strided_slice %129 {offsets = [0, 96], sizes = [2, 32], strides = [1, 1]} : vector<2x128xf32> to vector<2x32xf32>
    %170 = arith.negf %169 : vector<2x32xf32>
    %171 = math.exp %170 : vector<2x32xf32>
    %cst_36 = arith.constant 1.000000e+00 : f32
    %172 = vector.broadcast %cst_36 : f32 to vector<2x32xf32>
    %173 = arith.addf %172, %171 : vector<2x32xf32>
    %174 = arith.divf %172, %173 : vector<2x32xf32>
    %175 = arith.mulf %166, %121 : vector<2x32xf32>
    %176 = arith.mulf %160, %168 : vector<2x32xf32>
    %177 = arith.addf %175, %176 : vector<2x32xf32>
    %178 = math.tanh %177 : vector<2x32xf32>
    %179 = arith.mulf %174, %178 : vector<2x32xf32>
    %180 = vector.extract_strided_slice %7 {offsets = [6, 0], sizes = [2, 128], strides = [1, 1]} : vector<16x256xf32> to vector<2x128xf32>
    %cst_37 = arith.constant dense<0.000000e+00> : vector<2x128xf32>
    %181 = tpu.matmul %154, %2, %cst_37 {dimension_numbers = #tpu.dot_dimension_numbers<[1], [0], [0], [1], [0, 0, 1, 1], [], []>} : vector<2x32xf32>, vector<32x128xf32>, vector<2x128xf32> -> vector<2x128xf32>
    %182 = arith.addf %180, %181 : vector<2x128xf32>
    %183 = vector.extract_strided_slice %7 {offsets = [8, 128], sizes = [2, 128], strides = [1, 1]} : vector<16x256xf32> to vector<2x128xf32>
    %cst_38 = arith.constant dense<0.000000e+00> : vector<2x128xf32>
    %184 = tpu.matmul %179, %3, %cst_38 {dimension_numbers = #tpu.dot_dimension_numbers<[1], [0], [0], [1], [0, 0, 1, 1], [], []>} : vector<2x32xf32>, vector<32x128xf32>, vector<2x128xf32> -> vector<2x128xf32>
    %185 = arith.addf %183, %184 : vector<2x128xf32>
    %186 = vector.extract_strided_slice %182 {offsets = [0, 0], sizes = [2, 32], strides = [1, 1]} : vector<2x128xf32> to vector<2x32xf32>
    %187 = arith.negf %186 : vector<2x32xf32>
    %188 = math.exp %187 : vector<2x32xf32>
    %cst_39 = arith.constant 1.000000e+00 : f32
    %189 = vector.broadcast %cst_39 : f32 to vector<2x32xf32>
    %190 = arith.addf %189, %188 : vector<2x32xf32>
    %191 = arith.divf %189, %190 : vector<2x32xf32>
    %192 = vector.extract_strided_slice %182 {offsets = [0, 32], sizes = [2, 32], strides = [1, 1]} : vector<2x128xf32> to vector<2x32xf32>
    %193 = arith.negf %192 : vector<2x32xf32>
    %194 = math.exp %193 : vector<2x32xf32>
    %cst_40 = arith.constant 1.000000e+00 : f32
    %195 = vector.broadcast %cst_40 : f32 to vector<2x32xf32>
    %196 = arith.addf %195, %194 : vector<2x32xf32>
    %197 = arith.divf %195, %196 : vector<2x32xf32>
    %198 = vector.extract_strided_slice %182 {offsets = [0, 64], sizes = [2, 32], strides = [1, 1]} : vector<2x128xf32> to vector<2x32xf32>
    %199 = math.tanh %198 : vector<2x32xf32>
    %200 = vector.extract_strided_slice %182 {offsets = [0, 96], sizes = [2, 32], strides = [1, 1]} : vector<2x128xf32> to vector<2x32xf32>
    %201 = arith.negf %200 : vector<2x32xf32>
    %202 = math.exp %201 : vector<2x32xf32>
    %cst_41 = arith.constant 1.000000e+00 : f32
    %203 = vector.broadcast %cst_41 : f32 to vector<2x32xf32>
    %204 = arith.addf %203, %202 : vector<2x32xf32>
    %205 = arith.divf %203, %204 : vector<2x32xf32>
    %206 = arith.mulf %197, %152 : vector<2x32xf32>
    %207 = arith.mulf %191, %199 : vector<2x32xf32>
    %208 = arith.addf %206, %207 : vector<2x32xf32>
    %209 = math.tanh %208 : vector<2x32xf32>
    %210 = arith.mulf %205, %209 : vector<2x32xf32>
    %211 = vector.extract_strided_slice %185 {offsets = [0, 0], sizes = [2, 32], strides = [1, 1]} : vector<2x128xf32> to vector<2x32xf32>
    %212 = arith.negf %211 : vector<2x32xf32>
    %213 = math.exp %212 : vector<2x32xf32>
    %cst_42 = arith.constant 1.000000e+00 : f32
    %214 = vector.broadcast %cst_42 : f32 to vector<2x32xf32>
    %215 = arith.addf %214, %213 : vector<2x32xf32>
    %216 = arith.divf %214, %215 : vector<2x32xf32>
    %217 = vector.extract_strided_slice %185 {offsets = [0, 32], sizes = [2, 32], strides = [1, 1]} : vector<2x128xf32> to vector<2x32xf32>
    %218 = arith.negf %217 : vector<2x32xf32>
    %219 = math.exp %218 : vector<2x32xf32>
    %cst_43 = arith.constant 1.000000e+00 : f32
    %220 = vector.broadcast %cst_43 : f32 to vector<2x32xf32>
    %221 = arith.addf %220, %219 : vector<2x32xf32>
    %222 = arith.divf %220, %221 : vector<2x32xf32>
    %223 = vector.extract_strided_slice %185 {offsets = [0, 64], sizes = [2, 32], strides = [1, 1]} : vector<2x128xf32> to vector<2x32xf32>
    %224 = math.tanh %223 : vector<2x32xf32>
    %225 = vector.extract_strided_slice %185 {offsets = [0, 96], sizes = [2, 32], strides = [1, 1]} : vector<2x128xf32> to vector<2x32xf32>
    %226 = arith.negf %225 : vector<2x32xf32>
    %227 = math.exp %226 : vector<2x32xf32>
    %cst_44 = arith.constant 1.000000e+00 : f32
    %228 = vector.broadcast %cst_44 : f32 to vector<2x32xf32>
    %229 = arith.addf %228, %227 : vector<2x32xf32>
    %230 = arith.divf %228, %229 : vector<2x32xf32>
    %231 = arith.mulf %222, %177 : vector<2x32xf32>
    %232 = arith.mulf %216, %224 : vector<2x32xf32>
    %233 = arith.addf %231, %232 : vector<2x32xf32>
    %234 = math.tanh %233 : vector<2x32xf32>
    %235 = arith.mulf %230, %234 : vector<2x32xf32>
    %236 = vector.extract_strided_slice %7 {offsets = [8, 0], sizes = [2, 128], strides = [1, 1]} : vector<16x256xf32> to vector<2x128xf32>
    %cst_45 = arith.constant dense<0.000000e+00> : vector<2x128xf32>
    %237 = tpu.matmul %210, %2, %cst_45 {dimension_numbers = #tpu.dot_dimension_numbers<[1], [0], [0], [1], [0, 0, 1, 1], [], []>} : vector<2x32xf32>, vector<32x128xf32>, vector<2x128xf32> -> vector<2x128xf32>
    %238 = arith.addf %236, %237 : vector<2x128xf32>
    %239 = vector.extract_strided_slice %7 {offsets = [6, 128], sizes = [2, 128], strides = [1, 1]} : vector<16x256xf32> to vector<2x128xf32>
    %cst_46 = arith.constant dense<0.000000e+00> : vector<2x128xf32>
    %240 = tpu.matmul %235, %3, %cst_46 {dimension_numbers = #tpu.dot_dimension_numbers<[1], [0], [0], [1], [0, 0, 1, 1], [], []>} : vector<2x32xf32>, vector<32x128xf32>, vector<2x128xf32> -> vector<2x128xf32>
    %241 = arith.addf %239, %240 : vector<2x128xf32>
    %242 = vector.extract_strided_slice %238 {offsets = [0, 0], sizes = [2, 32], strides = [1, 1]} : vector<2x128xf32> to vector<2x32xf32>
    %243 = arith.negf %242 : vector<2x32xf32>
    %244 = math.exp %243 : vector<2x32xf32>
    %cst_47 = arith.constant 1.000000e+00 : f32
    %245 = vector.broadcast %cst_47 : f32 to vector<2x32xf32>
    %246 = arith.addf %245, %244 : vector<2x32xf32>
    %247 = arith.divf %245, %246 : vector<2x32xf32>
    %248 = vector.extract_strided_slice %238 {offsets = [0, 32], sizes = [2, 32], strides = [1, 1]} : vector<2x128xf32> to vector<2x32xf32>
    %249 = arith.negf %248 : vector<2x32xf32>
    %250 = math.exp %249 : vector<2x32xf32>
    %cst_48 = arith.constant 1.000000e+00 : f32
    %251 = vector.broadcast %cst_48 : f32 to vector<2x32xf32>
    %252 = arith.addf %251, %250 : vector<2x32xf32>
    %253 = arith.divf %251, %252 : vector<2x32xf32>
    %254 = vector.extract_strided_slice %238 {offsets = [0, 64], sizes = [2, 32], strides = [1, 1]} : vector<2x128xf32> to vector<2x32xf32>
    %255 = math.tanh %254 : vector<2x32xf32>
    %256 = vector.extract_strided_slice %238 {offsets = [0, 96], sizes = [2, 32], strides = [1, 1]} : vector<2x128xf32> to vector<2x32xf32>
    %257 = arith.negf %256 : vector<2x32xf32>
    %258 = math.exp %257 : vector<2x32xf32>
    %cst_49 = arith.constant 1.000000e+00 : f32
    %259 = vector.broadcast %cst_49 : f32 to vector<2x32xf32>
    %260 = arith.addf %259, %258 : vector<2x32xf32>
    %261 = arith.divf %259, %260 : vector<2x32xf32>
    %262 = arith.mulf %253, %208 : vector<2x32xf32>
    %263 = arith.mulf %247, %255 : vector<2x32xf32>
    %264 = arith.addf %262, %263 : vector<2x32xf32>
    %265 = math.tanh %264 : vector<2x32xf32>
    %266 = arith.mulf %261, %265 : vector<2x32xf32>
    %267 = vector.extract_strided_slice %241 {offsets = [0, 0], sizes = [2, 32], strides = [1, 1]} : vector<2x128xf32> to vector<2x32xf32>
    %268 = arith.negf %267 : vector<2x32xf32>
    %269 = math.exp %268 : vector<2x32xf32>
    %cst_50 = arith.constant 1.000000e+00 : f32
    %270 = vector.broadcast %cst_50 : f32 to vector<2x32xf32>
    %271 = arith.addf %270, %269 : vector<2x32xf32>
    %272 = arith.divf %270, %271 : vector<2x32xf32>
    %273 = vector.extract_strided_slice %241 {offsets = [0, 32], sizes = [2, 32], strides = [1, 1]} : vector<2x128xf32> to vector<2x32xf32>
    %274 = arith.negf %273 : vector<2x32xf32>
    %275 = math.exp %274 : vector<2x32xf32>
    %cst_51 = arith.constant 1.000000e+00 : f32
    %276 = vector.broadcast %cst_51 : f32 to vector<2x32xf32>
    %277 = arith.addf %276, %275 : vector<2x32xf32>
    %278 = arith.divf %276, %277 : vector<2x32xf32>
    %279 = vector.extract_strided_slice %241 {offsets = [0, 64], sizes = [2, 32], strides = [1, 1]} : vector<2x128xf32> to vector<2x32xf32>
    %280 = math.tanh %279 : vector<2x32xf32>
    %281 = vector.extract_strided_slice %241 {offsets = [0, 96], sizes = [2, 32], strides = [1, 1]} : vector<2x128xf32> to vector<2x32xf32>
    %282 = arith.negf %281 : vector<2x32xf32>
    %283 = math.exp %282 : vector<2x32xf32>
    %cst_52 = arith.constant 1.000000e+00 : f32
    %284 = vector.broadcast %cst_52 : f32 to vector<2x32xf32>
    %285 = arith.addf %284, %283 : vector<2x32xf32>
    %286 = arith.divf %284, %285 : vector<2x32xf32>
    %287 = arith.mulf %278, %233 : vector<2x32xf32>
    %288 = arith.mulf %272, %280 : vector<2x32xf32>
    %289 = arith.addf %287, %288 : vector<2x32xf32>
    %290 = math.tanh %289 : vector<2x32xf32>
    %291 = arith.mulf %286, %290 : vector<2x32xf32>
    %292 = vector.extract_strided_slice %7 {offsets = [10, 0], sizes = [2, 128], strides = [1, 1]} : vector<16x256xf32> to vector<2x128xf32>
    %cst_53 = arith.constant dense<0.000000e+00> : vector<2x128xf32>
    %293 = tpu.matmul %266, %2, %cst_53 {dimension_numbers = #tpu.dot_dimension_numbers<[1], [0], [0], [1], [0, 0, 1, 1], [], []>} : vector<2x32xf32>, vector<32x128xf32>, vector<2x128xf32> -> vector<2x128xf32>
    %294 = arith.addf %292, %293 : vector<2x128xf32>
    %295 = vector.extract_strided_slice %7 {offsets = [4, 128], sizes = [2, 128], strides = [1, 1]} : vector<16x256xf32> to vector<2x128xf32>
    %cst_54 = arith.constant dense<0.000000e+00> : vector<2x128xf32>
    %296 = tpu.matmul %291, %3, %cst_54 {dimension_numbers = #tpu.dot_dimension_numbers<[1], [0], [0], [1], [0, 0, 1, 1], [], []>} : vector<2x32xf32>, vector<32x128xf32>, vector<2x128xf32> -> vector<2x128xf32>
    %297 = arith.addf %295, %296 : vector<2x128xf32>
    %298 = vector.extract_strided_slice %294 {offsets = [0, 0], sizes = [2, 32], strides = [1, 1]} : vector<2x128xf32> to vector<2x32xf32>
    %299 = arith.negf %298 : vector<2x32xf32>
    %300 = math.exp %299 : vector<2x32xf32>
    %cst_55 = arith.constant 1.000000e+00 : f32
    %301 = vector.broadcast %cst_55 : f32 to vector<2x32xf32>
    %302 = arith.addf %301, %300 : vector<2x32xf32>
    %303 = arith.divf %301, %302 : vector<2x32xf32>
    %304 = vector.extract_strided_slice %294 {offsets = [0, 32], sizes = [2, 32], strides = [1, 1]} : vector<2x128xf32> to vector<2x32xf32>
    %305 = arith.negf %304 : vector<2x32xf32>
    %306 = math.exp %305 : vector<2x32xf32>
    %cst_56 = arith.constant 1.000000e+00 : f32
    %307 = vector.broadcast %cst_56 : f32 to vector<2x32xf32>
    %308 = arith.addf %307, %306 : vector<2x32xf32>
    %309 = arith.divf %307, %308 : vector<2x32xf32>
    %310 = vector.extract_strided_slice %294 {offsets = [0, 64], sizes = [2, 32], strides = [1, 1]} : vector<2x128xf32> to vector<2x32xf32>
    %311 = math.tanh %310 : vector<2x32xf32>
    %312 = vector.extract_strided_slice %294 {offsets = [0, 96], sizes = [2, 32], strides = [1, 1]} : vector<2x128xf32> to vector<2x32xf32>
    %313 = arith.negf %312 : vector<2x32xf32>
    %314 = math.exp %313 : vector<2x32xf32>
    %cst_57 = arith.constant 1.000000e+00 : f32
    %315 = vector.broadcast %cst_57 : f32 to vector<2x32xf32>
    %316 = arith.addf %315, %314 : vector<2x32xf32>
    %317 = arith.divf %315, %316 : vector<2x32xf32>
    %318 = arith.mulf %309, %264 : vector<2x32xf32>
    %319 = arith.mulf %303, %311 : vector<2x32xf32>
    %320 = arith.addf %318, %319 : vector<2x32xf32>
    %321 = math.tanh %320 : vector<2x32xf32>
    %322 = arith.mulf %317, %321 : vector<2x32xf32>
    %323 = vector.extract_strided_slice %297 {offsets = [0, 0], sizes = [2, 32], strides = [1, 1]} : vector<2x128xf32> to vector<2x32xf32>
    %324 = arith.negf %323 : vector<2x32xf32>
    %325 = math.exp %324 : vector<2x32xf32>
    %cst_58 = arith.constant 1.000000e+00 : f32
    %326 = vector.broadcast %cst_58 : f32 to vector<2x32xf32>
    %327 = arith.addf %326, %325 : vector<2x32xf32>
    %328 = arith.divf %326, %327 : vector<2x32xf32>
    %329 = vector.extract_strided_slice %297 {offsets = [0, 32], sizes = [2, 32], strides = [1, 1]} : vector<2x128xf32> to vector<2x32xf32>
    %330 = arith.negf %329 : vector<2x32xf32>
    %331 = math.exp %330 : vector<2x32xf32>
    %cst_59 = arith.constant 1.000000e+00 : f32
    %332 = vector.broadcast %cst_59 : f32 to vector<2x32xf32>
    %333 = arith.addf %332, %331 : vector<2x32xf32>
    %334 = arith.divf %332, %333 : vector<2x32xf32>
    %335 = vector.extract_strided_slice %297 {offsets = [0, 64], sizes = [2, 32], strides = [1, 1]} : vector<2x128xf32> to vector<2x32xf32>
    %336 = math.tanh %335 : vector<2x32xf32>
    %337 = vector.extract_strided_slice %297 {offsets = [0, 96], sizes = [2, 32], strides = [1, 1]} : vector<2x128xf32> to vector<2x32xf32>
    %338 = arith.negf %337 : vector<2x32xf32>
    %339 = math.exp %338 : vector<2x32xf32>
    %cst_60 = arith.constant 1.000000e+00 : f32
    %340 = vector.broadcast %cst_60 : f32 to vector<2x32xf32>
    %341 = arith.addf %340, %339 : vector<2x32xf32>
    %342 = arith.divf %340, %341 : vector<2x32xf32>
    %343 = arith.mulf %334, %289 : vector<2x32xf32>
    %344 = arith.mulf %328, %336 : vector<2x32xf32>
    %345 = arith.addf %343, %344 : vector<2x32xf32>
    %346 = math.tanh %345 : vector<2x32xf32>
    %347 = arith.mulf %342, %346 : vector<2x32xf32>
    %348 = vector.extract_strided_slice %7 {offsets = [12, 0], sizes = [2, 128], strides = [1, 1]} : vector<16x256xf32> to vector<2x128xf32>
    %cst_61 = arith.constant dense<0.000000e+00> : vector<2x128xf32>
    %349 = tpu.matmul %322, %2, %cst_61 {dimension_numbers = #tpu.dot_dimension_numbers<[1], [0], [0], [1], [0, 0, 1, 1], [], []>} : vector<2x32xf32>, vector<32x128xf32>, vector<2x128xf32> -> vector<2x128xf32>
    %350 = arith.addf %348, %349 : vector<2x128xf32>
    %351 = vector.extract_strided_slice %7 {offsets = [2, 128], sizes = [2, 128], strides = [1, 1]} : vector<16x256xf32> to vector<2x128xf32>
    %cst_62 = arith.constant dense<0.000000e+00> : vector<2x128xf32>
    %352 = tpu.matmul %347, %3, %cst_62 {dimension_numbers = #tpu.dot_dimension_numbers<[1], [0], [0], [1], [0, 0, 1, 1], [], []>} : vector<2x32xf32>, vector<32x128xf32>, vector<2x128xf32> -> vector<2x128xf32>
    %353 = arith.addf %351, %352 : vector<2x128xf32>
    %354 = vector.extract_strided_slice %350 {offsets = [0, 0], sizes = [2, 32], strides = [1, 1]} : vector<2x128xf32> to vector<2x32xf32>
    %355 = arith.negf %354 : vector<2x32xf32>
    %356 = math.exp %355 : vector<2x32xf32>
    %cst_63 = arith.constant 1.000000e+00 : f32
    %357 = vector.broadcast %cst_63 : f32 to vector<2x32xf32>
    %358 = arith.addf %357, %356 : vector<2x32xf32>
    %359 = arith.divf %357, %358 : vector<2x32xf32>
    %360 = vector.extract_strided_slice %350 {offsets = [0, 32], sizes = [2, 32], strides = [1, 1]} : vector<2x128xf32> to vector<2x32xf32>
    %361 = arith.negf %360 : vector<2x32xf32>
    %362 = math.exp %361 : vector<2x32xf32>
    %cst_64 = arith.constant 1.000000e+00 : f32
    %363 = vector.broadcast %cst_64 : f32 to vector<2x32xf32>
    %364 = arith.addf %363, %362 : vector<2x32xf32>
    %365 = arith.divf %363, %364 : vector<2x32xf32>
    %366 = vector.extract_strided_slice %350 {offsets = [0, 64], sizes = [2, 32], strides = [1, 1]} : vector<2x128xf32> to vector<2x32xf32>
    %367 = math.tanh %366 : vector<2x32xf32>
    %368 = vector.extract_strided_slice %350 {offsets = [0, 96], sizes = [2, 32], strides = [1, 1]} : vector<2x128xf32> to vector<2x32xf32>
    %369 = arith.negf %368 : vector<2x32xf32>
    %370 = math.exp %369 : vector<2x32xf32>
    %cst_65 = arith.constant 1.000000e+00 : f32
    %371 = vector.broadcast %cst_65 : f32 to vector<2x32xf32>
    %372 = arith.addf %371, %370 : vector<2x32xf32>
    %373 = arith.divf %371, %372 : vector<2x32xf32>
    %374 = arith.mulf %365, %320 : vector<2x32xf32>
    %375 = arith.mulf %359, %367 : vector<2x32xf32>
    %376 = arith.addf %374, %375 : vector<2x32xf32>
    %377 = math.tanh %376 : vector<2x32xf32>
    %378 = arith.mulf %373, %377 : vector<2x32xf32>
    %379 = vector.extract_strided_slice %353 {offsets = [0, 0], sizes = [2, 32], strides = [1, 1]} : vector<2x128xf32> to vector<2x32xf32>
    %380 = arith.negf %379 : vector<2x32xf32>
    %381 = math.exp %380 : vector<2x32xf32>
    %cst_66 = arith.constant 1.000000e+00 : f32
    %382 = vector.broadcast %cst_66 : f32 to vector<2x32xf32>
    %383 = arith.addf %382, %381 : vector<2x32xf32>
    %384 = arith.divf %382, %383 : vector<2x32xf32>
    %385 = vector.extract_strided_slice %353 {offsets = [0, 32], sizes = [2, 32], strides = [1, 1]} : vector<2x128xf32> to vector<2x32xf32>
    %386 = arith.negf %385 : vector<2x32xf32>
    %387 = math.exp %386 : vector<2x32xf32>
    %cst_67 = arith.constant 1.000000e+00 : f32
    %388 = vector.broadcast %cst_67 : f32 to vector<2x32xf32>
    %389 = arith.addf %388, %387 : vector<2x32xf32>
    %390 = arith.divf %388, %389 : vector<2x32xf32>
    %391 = vector.extract_strided_slice %353 {offsets = [0, 64], sizes = [2, 32], strides = [1, 1]} : vector<2x128xf32> to vector<2x32xf32>
    %392 = math.tanh %391 : vector<2x32xf32>
    %393 = vector.extract_strided_slice %353 {offsets = [0, 96], sizes = [2, 32], strides = [1, 1]} : vector<2x128xf32> to vector<2x32xf32>
    %394 = arith.negf %393 : vector<2x32xf32>
    %395 = math.exp %394 : vector<2x32xf32>
    %cst_68 = arith.constant 1.000000e+00 : f32
    %396 = vector.broadcast %cst_68 : f32 to vector<2x32xf32>
    %397 = arith.addf %396, %395 : vector<2x32xf32>
    %398 = arith.divf %396, %397 : vector<2x32xf32>
    %399 = arith.mulf %390, %345 : vector<2x32xf32>
    %400 = arith.mulf %384, %392 : vector<2x32xf32>
    %401 = arith.addf %399, %400 : vector<2x32xf32>
    %402 = math.tanh %401 : vector<2x32xf32>
    %403 = arith.mulf %398, %402 : vector<2x32xf32>
    %404 = vector.extract_strided_slice %7 {offsets = [14, 0], sizes = [2, 128], strides = [1, 1]} : vector<16x256xf32> to vector<2x128xf32>
    %cst_69 = arith.constant dense<0.000000e+00> : vector<2x128xf32>
    %405 = tpu.matmul %378, %2, %cst_69 {dimension_numbers = #tpu.dot_dimension_numbers<[1], [0], [0], [1], [0, 0, 1, 1], [], []>} : vector<2x32xf32>, vector<32x128xf32>, vector<2x128xf32> -> vector<2x128xf32>
    %406 = arith.addf %404, %405 : vector<2x128xf32>
    %407 = vector.extract_strided_slice %7 {offsets = [0, 128], sizes = [2, 128], strides = [1, 1]} : vector<16x256xf32> to vector<2x128xf32>
    %cst_70 = arith.constant dense<0.000000e+00> : vector<2x128xf32>
    %408 = tpu.matmul %403, %3, %cst_70 {dimension_numbers = #tpu.dot_dimension_numbers<[1], [0], [0], [1], [0, 0, 1, 1], [], []>} : vector<2x32xf32>, vector<32x128xf32>, vector<2x128xf32> -> vector<2x128xf32>
    %409 = arith.addf %407, %408 : vector<2x128xf32>
    %410 = vector.extract_strided_slice %406 {offsets = [0, 0], sizes = [2, 32], strides = [1, 1]} : vector<2x128xf32> to vector<2x32xf32>
    %411 = arith.negf %410 : vector<2x32xf32>
    %412 = math.exp %411 : vector<2x32xf32>
    %cst_71 = arith.constant 1.000000e+00 : f32
    %413 = vector.broadcast %cst_71 : f32 to vector<2x32xf32>
    %414 = arith.addf %413, %412 : vector<2x32xf32>
    %415 = arith.divf %413, %414 : vector<2x32xf32>
    %416 = vector.extract_strided_slice %406 {offsets = [0, 32], sizes = [2, 32], strides = [1, 1]} : vector<2x128xf32> to vector<2x32xf32>
    %417 = arith.negf %416 : vector<2x32xf32>
    %418 = math.exp %417 : vector<2x32xf32>
    %cst_72 = arith.constant 1.000000e+00 : f32
    %419 = vector.broadcast %cst_72 : f32 to vector<2x32xf32>
    %420 = arith.addf %419, %418 : vector<2x32xf32>
    %421 = arith.divf %419, %420 : vector<2x32xf32>
    %422 = vector.extract_strided_slice %406 {offsets = [0, 64], sizes = [2, 32], strides = [1, 1]} : vector<2x128xf32> to vector<2x32xf32>
    %423 = math.tanh %422 : vector<2x32xf32>
    %424 = vector.extract_strided_slice %406 {offsets = [0, 96], sizes = [2, 32], strides = [1, 1]} : vector<2x128xf32> to vector<2x32xf32>
    %425 = arith.negf %424 : vector<2x32xf32>
    %426 = math.exp %425 : vector<2x32xf32>
    %cst_73 = arith.constant 1.000000e+00 : f32
    %427 = vector.broadcast %cst_73 : f32 to vector<2x32xf32>
    %428 = arith.addf %427, %426 : vector<2x32xf32>
    %429 = arith.divf %427, %428 : vector<2x32xf32>
    %430 = arith.mulf %421, %376 : vector<2x32xf32>
    %431 = arith.mulf %415, %423 : vector<2x32xf32>
    %432 = arith.addf %430, %431 : vector<2x32xf32>
    %433 = math.tanh %432 : vector<2x32xf32>
    %434 = arith.mulf %429, %433 : vector<2x32xf32>
    %435 = vector.extract_strided_slice %409 {offsets = [0, 0], sizes = [2, 32], strides = [1, 1]} : vector<2x128xf32> to vector<2x32xf32>
    %436 = arith.negf %435 : vector<2x32xf32>
    %437 = math.exp %436 : vector<2x32xf32>
    %cst_74 = arith.constant 1.000000e+00 : f32
    %438 = vector.broadcast %cst_74 : f32 to vector<2x32xf32>
    %439 = arith.addf %438, %437 : vector<2x32xf32>
    %440 = arith.divf %438, %439 : vector<2x32xf32>
    %441 = vector.extract_strided_slice %409 {offsets = [0, 32], sizes = [2, 32], strides = [1, 1]} : vector<2x128xf32> to vector<2x32xf32>
    %442 = arith.negf %441 : vector<2x32xf32>
    %443 = math.exp %442 : vector<2x32xf32>
    %cst_75 = arith.constant 1.000000e+00 : f32
    %444 = vector.broadcast %cst_75 : f32 to vector<2x32xf32>
    %445 = arith.addf %444, %443 : vector<2x32xf32>
    %446 = arith.divf %444, %445 : vector<2x32xf32>
    %447 = vector.extract_strided_slice %409 {offsets = [0, 64], sizes = [2, 32], strides = [1, 1]} : vector<2x128xf32> to vector<2x32xf32>
    %448 = math.tanh %447 : vector<2x32xf32>
    %449 = vector.extract_strided_slice %409 {offsets = [0, 96], sizes = [2, 32], strides = [1, 1]} : vector<2x128xf32> to vector<2x32xf32>
    %450 = arith.negf %449 : vector<2x32xf32>
    %451 = math.exp %450 : vector<2x32xf32>
    %cst_76 = arith.constant 1.000000e+00 : f32
    %452 = vector.broadcast %cst_76 : f32 to vector<2x32xf32>
    %453 = arith.addf %452, %451 : vector<2x32xf32>
    %454 = arith.divf %452, %453 : vector<2x32xf32>
    %455 = arith.mulf %446, %401 : vector<2x32xf32>
    %456 = arith.mulf %440, %448 : vector<2x32xf32>
    %457 = arith.addf %455, %456 : vector<2x32xf32>
    %458 = math.tanh %457 : vector<2x32xf32>
    %459 = arith.mulf %454, %458 : vector<2x32xf32>
    %460 = tpu.concatenate %42, %98, %154, %210, %266, %322, %378, %434 in 0 : vector<2x32xf32>, vector<2x32xf32>, vector<2x32xf32>, vector<2x32xf32>, vector<2x32xf32>, vector<2x32xf32>, vector<2x32xf32>, vector<2x32xf32> -> vector<16x32xf32>
    %461 = tpu.concatenate %459, %403, %347, %291, %235, %179, %123, %67 in 0 : vector<2x32xf32>, vector<2x32xf32>, vector<2x32xf32>, vector<2x32xf32>, vector<2x32xf32>, vector<2x32xf32>, vector<2x32xf32>, vector<2x32xf32> -> vector<16x32xf32>
    %462 = tpu.concatenate %460, %461 in 1 : vector<16x32xf32>, vector<16x32xf32> -> vector<16x64xf32>
    %c0_77 = arith.constant 0 : index
    %c0_78 = arith.constant 0 : index
    %463 = vector.load %arg5[%c0_77, %c0_78] : memref<64x256xf32, #tpu.memory_space<vmem>>, vector<64x256xf32>
    %c0_79 = arith.constant 0 : index
    %c0_80 = arith.constant 0 : index
    %464 = vector.load %arg6[%c0_79, %c0_80] : memref<32x128xf32, #tpu.memory_space<vmem>>, vector<32x128xf32>
    %c0_81 = arith.constant 0 : index
    %c0_82 = arith.constant 0 : index
    %465 = vector.load %arg7[%c0_81, %c0_82] : memref<32x128xf32, #tpu.memory_space<vmem>>, vector<32x128xf32>
    %c0_83 = arith.constant 0 : index
    %c0_84 = arith.constant 0 : index
    %466 = vector.load %arg8[%c0_83, %c0_84] : memref<1x256xf32, #tpu.memory_space<vmem>>, vector<1x256xf32>
    %cst_85 = arith.constant dense<0.000000e+00> : vector<16x256xf32>
    %467 = tpu.matmul %462, %463, %cst_85 {dimension_numbers = #tpu.dot_dimension_numbers<[1], [0], [0], [1], [0, 0, 1, 1], [], []>} : vector<16x64xf32>, vector<64x256xf32>, vector<16x256xf32> -> vector<16x256xf32>
    %468 = vector.broadcast %466 : vector<1x256xf32> to vector<16x256xf32>
    %469 = arith.addf %467, %468 : vector<16x256xf32>
    %cst_86 = arith.constant 0.000000e+00 : f32
    %470 = vector.broadcast %cst_86 : f32 to vector<2x32xf32>
    %cst_87 = arith.constant 0.000000e+00 : f32
    %471 = vector.broadcast %cst_87 : f32 to vector<2x32xf32>
    %cst_88 = arith.constant 0.000000e+00 : f32
    %472 = vector.broadcast %cst_88 : f32 to vector<2x32xf32>
    %cst_89 = arith.constant 0.000000e+00 : f32
    %473 = vector.broadcast %cst_89 : f32 to vector<2x32xf32>
    %474 = vector.extract_strided_slice %469 {offsets = [0, 0], sizes = [2, 128], strides = [1, 1]} : vector<16x256xf32> to vector<2x128xf32>
    %cst_90 = arith.constant dense<0.000000e+00> : vector<2x128xf32>
    %475 = tpu.matmul %470, %464, %cst_90 {dimension_numbers = #tpu.dot_dimension_numbers<[1], [0], [0], [1], [0, 0, 1, 1], [], []>} : vector<2x32xf32>, vector<32x128xf32>, vector<2x128xf32> -> vector<2x128xf32>
    %476 = arith.addf %474, %475 : vector<2x128xf32>
    %477 = vector.extract_strided_slice %469 {offsets = [14, 128], sizes = [2, 128], strides = [1, 1]} : vector<16x256xf32> to vector<2x128xf32>
    %cst_91 = arith.constant dense<0.000000e+00> : vector<2x128xf32>
    %478 = tpu.matmul %472, %465, %cst_91 {dimension_numbers = #tpu.dot_dimension_numbers<[1], [0], [0], [1], [0, 0, 1, 1], [], []>} : vector<2x32xf32>, vector<32x128xf32>, vector<2x128xf32> -> vector<2x128xf32>
    %479 = arith.addf %477, %478 : vector<2x128xf32>
    %480 = vector.extract_strided_slice %476 {offsets = [0, 0], sizes = [2, 32], strides = [1, 1]} : vector<2x128xf32> to vector<2x32xf32>
    %481 = arith.negf %480 : vector<2x32xf32>
    %482 = math.exp %481 : vector<2x32xf32>
    %cst_92 = arith.constant 1.000000e+00 : f32
    %483 = vector.broadcast %cst_92 : f32 to vector<2x32xf32>
    %484 = arith.addf %483, %482 : vector<2x32xf32>
    %485 = arith.divf %483, %484 : vector<2x32xf32>
    %486 = vector.extract_strided_slice %476 {offsets = [0, 32], sizes = [2, 32], strides = [1, 1]} : vector<2x128xf32> to vector<2x32xf32>
    %487 = arith.negf %486 : vector<2x32xf32>
    %488 = math.exp %487 : vector<2x32xf32>
    %cst_93 = arith.constant 1.000000e+00 : f32
    %489 = vector.broadcast %cst_93 : f32 to vector<2x32xf32>
    %490 = arith.addf %489, %488 : vector<2x32xf32>
    %491 = arith.divf %489, %490 : vector<2x32xf32>
    %492 = vector.extract_strided_slice %476 {offsets = [0, 64], sizes = [2, 32], strides = [1, 1]} : vector<2x128xf32> to vector<2x32xf32>
    %493 = math.tanh %492 : vector<2x32xf32>
    %494 = vector.extract_strided_slice %476 {offsets = [0, 96], sizes = [2, 32], strides = [1, 1]} : vector<2x128xf32> to vector<2x32xf32>
    %495 = arith.negf %494 : vector<2x32xf32>
    %496 = math.exp %495 : vector<2x32xf32>
    %cst_94 = arith.constant 1.000000e+00 : f32
    %497 = vector.broadcast %cst_94 : f32 to vector<2x32xf32>
    %498 = arith.addf %497, %496 : vector<2x32xf32>
    %499 = arith.divf %497, %498 : vector<2x32xf32>
    %500 = arith.mulf %491, %471 : vector<2x32xf32>
    %501 = arith.mulf %485, %493 : vector<2x32xf32>
    %502 = arith.addf %500, %501 : vector<2x32xf32>
    %503 = math.tanh %502 : vector<2x32xf32>
    %504 = arith.mulf %499, %503 : vector<2x32xf32>
    %505 = vector.extract_strided_slice %479 {offsets = [0, 0], sizes = [2, 32], strides = [1, 1]} : vector<2x128xf32> to vector<2x32xf32>
    %506 = arith.negf %505 : vector<2x32xf32>
    %507 = math.exp %506 : vector<2x32xf32>
    %cst_95 = arith.constant 1.000000e+00 : f32
    %508 = vector.broadcast %cst_95 : f32 to vector<2x32xf32>
    %509 = arith.addf %508, %507 : vector<2x32xf32>
    %510 = arith.divf %508, %509 : vector<2x32xf32>
    %511 = vector.extract_strided_slice %479 {offsets = [0, 32], sizes = [2, 32], strides = [1, 1]} : vector<2x128xf32> to vector<2x32xf32>
    %512 = arith.negf %511 : vector<2x32xf32>
    %513 = math.exp %512 : vector<2x32xf32>
    %cst_96 = arith.constant 1.000000e+00 : f32
    %514 = vector.broadcast %cst_96 : f32 to vector<2x32xf32>
    %515 = arith.addf %514, %513 : vector<2x32xf32>
    %516 = arith.divf %514, %515 : vector<2x32xf32>
    %517 = vector.extract_strided_slice %479 {offsets = [0, 64], sizes = [2, 32], strides = [1, 1]} : vector<2x128xf32> to vector<2x32xf32>
    %518 = math.tanh %517 : vector<2x32xf32>
    %519 = vector.extract_strided_slice %479 {offsets = [0, 96], sizes = [2, 32], strides = [1, 1]} : vector<2x128xf32> to vector<2x32xf32>
    %520 = arith.negf %519 : vector<2x32xf32>
    %521 = math.exp %520 : vector<2x32xf32>
    %cst_97 = arith.constant 1.000000e+00 : f32
    %522 = vector.broadcast %cst_97 : f32 to vector<2x32xf32>
    %523 = arith.addf %522, %521 : vector<2x32xf32>
    %524 = arith.divf %522, %523 : vector<2x32xf32>
    %525 = arith.mulf %516, %473 : vector<2x32xf32>
    %526 = arith.mulf %510, %518 : vector<2x32xf32>
    %527 = arith.addf %525, %526 : vector<2x32xf32>
    %528 = math.tanh %527 : vector<2x32xf32>
    %529 = arith.mulf %524, %528 : vector<2x32xf32>
    %530 = vector.extract_strided_slice %469 {offsets = [2, 0], sizes = [2, 128], strides = [1, 1]} : vector<16x256xf32> to vector<2x128xf32>
    %cst_98 = arith.constant dense<0.000000e+00> : vector<2x128xf32>
    %531 = tpu.matmul %504, %464, %cst_98 {dimension_numbers = #tpu.dot_dimension_numbers<[1], [0], [0], [1], [0, 0, 1, 1], [], []>} : vector<2x32xf32>, vector<32x128xf32>, vector<2x128xf32> -> vector<2x128xf32>
    %532 = arith.addf %530, %531 : vector<2x128xf32>
    %533 = vector.extract_strided_slice %469 {offsets = [12, 128], sizes = [2, 128], strides = [1, 1]} : vector<16x256xf32> to vector<2x128xf32>
    %cst_99 = arith.constant dense<0.000000e+00> : vector<2x128xf32>
    %534 = tpu.matmul %529, %465, %cst_99 {dimension_numbers = #tpu.dot_dimension_numbers<[1], [0], [0], [1], [0, 0, 1, 1], [], []>} : vector<2x32xf32>, vector<32x128xf32>, vector<2x128xf32> -> vector<2x128xf32>
    %535 = arith.addf %533, %534 : vector<2x128xf32>
    %536 = vector.extract_strided_slice %532 {offsets = [0, 0], sizes = [2, 32], strides = [1, 1]} : vector<2x128xf32> to vector<2x32xf32>
    %537 = arith.negf %536 : vector<2x32xf32>
    %538 = math.exp %537 : vector<2x32xf32>
    %cst_100 = arith.constant 1.000000e+00 : f32
    %539 = vector.broadcast %cst_100 : f32 to vector<2x32xf32>
    %540 = arith.addf %539, %538 : vector<2x32xf32>
    %541 = arith.divf %539, %540 : vector<2x32xf32>
    %542 = vector.extract_strided_slice %532 {offsets = [0, 32], sizes = [2, 32], strides = [1, 1]} : vector<2x128xf32> to vector<2x32xf32>
    %543 = arith.negf %542 : vector<2x32xf32>
    %544 = math.exp %543 : vector<2x32xf32>
    %cst_101 = arith.constant 1.000000e+00 : f32
    %545 = vector.broadcast %cst_101 : f32 to vector<2x32xf32>
    %546 = arith.addf %545, %544 : vector<2x32xf32>
    %547 = arith.divf %545, %546 : vector<2x32xf32>
    %548 = vector.extract_strided_slice %532 {offsets = [0, 64], sizes = [2, 32], strides = [1, 1]} : vector<2x128xf32> to vector<2x32xf32>
    %549 = math.tanh %548 : vector<2x32xf32>
    %550 = vector.extract_strided_slice %532 {offsets = [0, 96], sizes = [2, 32], strides = [1, 1]} : vector<2x128xf32> to vector<2x32xf32>
    %551 = arith.negf %550 : vector<2x32xf32>
    %552 = math.exp %551 : vector<2x32xf32>
    %cst_102 = arith.constant 1.000000e+00 : f32
    %553 = vector.broadcast %cst_102 : f32 to vector<2x32xf32>
    %554 = arith.addf %553, %552 : vector<2x32xf32>
    %555 = arith.divf %553, %554 : vector<2x32xf32>
    %556 = arith.mulf %547, %502 : vector<2x32xf32>
    %557 = arith.mulf %541, %549 : vector<2x32xf32>
    %558 = arith.addf %556, %557 : vector<2x32xf32>
    %559 = math.tanh %558 : vector<2x32xf32>
    %560 = arith.mulf %555, %559 : vector<2x32xf32>
    %561 = vector.extract_strided_slice %535 {offsets = [0, 0], sizes = [2, 32], strides = [1, 1]} : vector<2x128xf32> to vector<2x32xf32>
    %562 = arith.negf %561 : vector<2x32xf32>
    %563 = math.exp %562 : vector<2x32xf32>
    %cst_103 = arith.constant 1.000000e+00 : f32
    %564 = vector.broadcast %cst_103 : f32 to vector<2x32xf32>
    %565 = arith.addf %564, %563 : vector<2x32xf32>
    %566 = arith.divf %564, %565 : vector<2x32xf32>
    %567 = vector.extract_strided_slice %535 {offsets = [0, 32], sizes = [2, 32], strides = [1, 1]} : vector<2x128xf32> to vector<2x32xf32>
    %568 = arith.negf %567 : vector<2x32xf32>
    %569 = math.exp %568 : vector<2x32xf32>
    %cst_104 = arith.constant 1.000000e+00 : f32
    %570 = vector.broadcast %cst_104 : f32 to vector<2x32xf32>
    %571 = arith.addf %570, %569 : vector<2x32xf32>
    %572 = arith.divf %570, %571 : vector<2x32xf32>
    %573 = vector.extract_strided_slice %535 {offsets = [0, 64], sizes = [2, 32], strides = [1, 1]} : vector<2x128xf32> to vector<2x32xf32>
    %574 = math.tanh %573 : vector<2x32xf32>
    %575 = vector.extract_strided_slice %535 {offsets = [0, 96], sizes = [2, 32], strides = [1, 1]} : vector<2x128xf32> to vector<2x32xf32>
    %576 = arith.negf %575 : vector<2x32xf32>
    %577 = math.exp %576 : vector<2x32xf32>
    %cst_105 = arith.constant 1.000000e+00 : f32
    %578 = vector.broadcast %cst_105 : f32 to vector<2x32xf32>
    %579 = arith.addf %578, %577 : vector<2x32xf32>
    %580 = arith.divf %578, %579 : vector<2x32xf32>
    %581 = arith.mulf %572, %527 : vector<2x32xf32>
    %582 = arith.mulf %566, %574 : vector<2x32xf32>
    %583 = arith.addf %581, %582 : vector<2x32xf32>
    %584 = math.tanh %583 : vector<2x32xf32>
    %585 = arith.mulf %580, %584 : vector<2x32xf32>
    %586 = vector.extract_strided_slice %469 {offsets = [4, 0], sizes = [2, 128], strides = [1, 1]} : vector<16x256xf32> to vector<2x128xf32>
    %cst_106 = arith.constant dense<0.000000e+00> : vector<2x128xf32>
    %587 = tpu.matmul %560, %464, %cst_106 {dimension_numbers = #tpu.dot_dimension_numbers<[1], [0], [0], [1], [0, 0, 1, 1], [], []>} : vector<2x32xf32>, vector<32x128xf32>, vector<2x128xf32> -> vector<2x128xf32>
    %588 = arith.addf %586, %587 : vector<2x128xf32>
    %589 = vector.extract_strided_slice %469 {offsets = [10, 128], sizes = [2, 128], strides = [1, 1]} : vector<16x256xf32> to vector<2x128xf32>
    %cst_107 = arith.constant dense<0.000000e+00> : vector<2x128xf32>
    %590 = tpu.matmul %585, %465, %cst_107 {dimension_numbers = #tpu.dot_dimension_numbers<[1], [0], [0], [1], [0, 0, 1, 1], [], []>} : vector<2x32xf32>, vector<32x128xf32>, vector<2x128xf32> -> vector<2x128xf32>
    %591 = arith.addf %589, %590 : vector<2x128xf32>
    %592 = vector.extract_strided_slice %588 {offsets = [0, 0], sizes = [2, 32], strides = [1, 1]} : vector<2x128xf32> to vector<2x32xf32>
    %593 = arith.negf %592 : vector<2x32xf32>
    %594 = math.exp %593 : vector<2x32xf32>
    %cst_108 = arith.constant 1.000000e+00 : f32
    %595 = vector.broadcast %cst_108 : f32 to vector<2x32xf32>
    %596 = arith.addf %595, %594 : vector<2x32xf32>
    %597 = arith.divf %595, %596 : vector<2x32xf32>
    %598 = vector.extract_strided_slice %588 {offsets = [0, 32], sizes = [2, 32], strides = [1, 1]} : vector<2x128xf32> to vector<2x32xf32>
    %599 = arith.negf %598 : vector<2x32xf32>
    %600 = math.exp %599 : vector<2x32xf32>
    %cst_109 = arith.constant 1.000000e+00 : f32
    %601 = vector.broadcast %cst_109 : f32 to vector<2x32xf32>
    %602 = arith.addf %601, %600 : vector<2x32xf32>
    %603 = arith.divf %601, %602 : vector<2x32xf32>
    %604 = vector.extract_strided_slice %588 {offsets = [0, 64], sizes = [2, 32], strides = [1, 1]} : vector<2x128xf32> to vector<2x32xf32>
    %605 = math.tanh %604 : vector<2x32xf32>
    %606 = vector.extract_strided_slice %588 {offsets = [0, 96], sizes = [2, 32], strides = [1, 1]} : vector<2x128xf32> to vector<2x32xf32>
    %607 = arith.negf %606 : vector<2x32xf32>
    %608 = math.exp %607 : vector<2x32xf32>
    %cst_110 = arith.constant 1.000000e+00 : f32
    %609 = vector.broadcast %cst_110 : f32 to vector<2x32xf32>
    %610 = arith.addf %609, %608 : vector<2x32xf32>
    %611 = arith.divf %609, %610 : vector<2x32xf32>
    %612 = arith.mulf %603, %558 : vector<2x32xf32>
    %613 = arith.mulf %597, %605 : vector<2x32xf32>
    %614 = arith.addf %612, %613 : vector<2x32xf32>
    %615 = math.tanh %614 : vector<2x32xf32>
    %616 = arith.mulf %611, %615 : vector<2x32xf32>
    %617 = vector.extract_strided_slice %591 {offsets = [0, 0], sizes = [2, 32], strides = [1, 1]} : vector<2x128xf32> to vector<2x32xf32>
    %618 = arith.negf %617 : vector<2x32xf32>
    %619 = math.exp %618 : vector<2x32xf32>
    %cst_111 = arith.constant 1.000000e+00 : f32
    %620 = vector.broadcast %cst_111 : f32 to vector<2x32xf32>
    %621 = arith.addf %620, %619 : vector<2x32xf32>
    %622 = arith.divf %620, %621 : vector<2x32xf32>
    %623 = vector.extract_strided_slice %591 {offsets = [0, 32], sizes = [2, 32], strides = [1, 1]} : vector<2x128xf32> to vector<2x32xf32>
    %624 = arith.negf %623 : vector<2x32xf32>
    %625 = math.exp %624 : vector<2x32xf32>
    %cst_112 = arith.constant 1.000000e+00 : f32
    %626 = vector.broadcast %cst_112 : f32 to vector<2x32xf32>
    %627 = arith.addf %626, %625 : vector<2x32xf32>
    %628 = arith.divf %626, %627 : vector<2x32xf32>
    %629 = vector.extract_strided_slice %591 {offsets = [0, 64], sizes = [2, 32], strides = [1, 1]} : vector<2x128xf32> to vector<2x32xf32>
    %630 = math.tanh %629 : vector<2x32xf32>
    %631 = vector.extract_strided_slice %591 {offsets = [0, 96], sizes = [2, 32], strides = [1, 1]} : vector<2x128xf32> to vector<2x32xf32>
    %632 = arith.negf %631 : vector<2x32xf32>
    %633 = math.exp %632 : vector<2x32xf32>
    %cst_113 = arith.constant 1.000000e+00 : f32
    %634 = vector.broadcast %cst_113 : f32 to vector<2x32xf32>
    %635 = arith.addf %634, %633 : vector<2x32xf32>
    %636 = arith.divf %634, %635 : vector<2x32xf32>
    %637 = arith.mulf %628, %583 : vector<2x32xf32>
    %638 = arith.mulf %622, %630 : vector<2x32xf32>
    %639 = arith.addf %637, %638 : vector<2x32xf32>
    %640 = math.tanh %639 : vector<2x32xf32>
    %641 = arith.mulf %636, %640 : vector<2x32xf32>
    %642 = vector.extract_strided_slice %469 {offsets = [6, 0], sizes = [2, 128], strides = [1, 1]} : vector<16x256xf32> to vector<2x128xf32>
    %cst_114 = arith.constant dense<0.000000e+00> : vector<2x128xf32>
    %643 = tpu.matmul %616, %464, %cst_114 {dimension_numbers = #tpu.dot_dimension_numbers<[1], [0], [0], [1], [0, 0, 1, 1], [], []>} : vector<2x32xf32>, vector<32x128xf32>, vector<2x128xf32> -> vector<2x128xf32>
    %644 = arith.addf %642, %643 : vector<2x128xf32>
    %645 = vector.extract_strided_slice %469 {offsets = [8, 128], sizes = [2, 128], strides = [1, 1]} : vector<16x256xf32> to vector<2x128xf32>
    %cst_115 = arith.constant dense<0.000000e+00> : vector<2x128xf32>
    %646 = tpu.matmul %641, %465, %cst_115 {dimension_numbers = #tpu.dot_dimension_numbers<[1], [0], [0], [1], [0, 0, 1, 1], [], []>} : vector<2x32xf32>, vector<32x128xf32>, vector<2x128xf32> -> vector<2x128xf32>
    %647 = arith.addf %645, %646 : vector<2x128xf32>
    %648 = vector.extract_strided_slice %644 {offsets = [0, 0], sizes = [2, 32], strides = [1, 1]} : vector<2x128xf32> to vector<2x32xf32>
    %649 = arith.negf %648 : vector<2x32xf32>
    %650 = math.exp %649 : vector<2x32xf32>
    %cst_116 = arith.constant 1.000000e+00 : f32
    %651 = vector.broadcast %cst_116 : f32 to vector<2x32xf32>
    %652 = arith.addf %651, %650 : vector<2x32xf32>
    %653 = arith.divf %651, %652 : vector<2x32xf32>
    %654 = vector.extract_strided_slice %644 {offsets = [0, 32], sizes = [2, 32], strides = [1, 1]} : vector<2x128xf32> to vector<2x32xf32>
    %655 = arith.negf %654 : vector<2x32xf32>
    %656 = math.exp %655 : vector<2x32xf32>
    %cst_117 = arith.constant 1.000000e+00 : f32
    %657 = vector.broadcast %cst_117 : f32 to vector<2x32xf32>
    %658 = arith.addf %657, %656 : vector<2x32xf32>
    %659 = arith.divf %657, %658 : vector<2x32xf32>
    %660 = vector.extract_strided_slice %644 {offsets = [0, 64], sizes = [2, 32], strides = [1, 1]} : vector<2x128xf32> to vector<2x32xf32>
    %661 = math.tanh %660 : vector<2x32xf32>
    %662 = vector.extract_strided_slice %644 {offsets = [0, 96], sizes = [2, 32], strides = [1, 1]} : vector<2x128xf32> to vector<2x32xf32>
    %663 = arith.negf %662 : vector<2x32xf32>
    %664 = math.exp %663 : vector<2x32xf32>
    %cst_118 = arith.constant 1.000000e+00 : f32
    %665 = vector.broadcast %cst_118 : f32 to vector<2x32xf32>
    %666 = arith.addf %665, %664 : vector<2x32xf32>
    %667 = arith.divf %665, %666 : vector<2x32xf32>
    %668 = arith.mulf %659, %614 : vector<2x32xf32>
    %669 = arith.mulf %653, %661 : vector<2x32xf32>
    %670 = arith.addf %668, %669 : vector<2x32xf32>
    %671 = math.tanh %670 : vector<2x32xf32>
    %672 = arith.mulf %667, %671 : vector<2x32xf32>
    %673 = vector.extract_strided_slice %647 {offsets = [0, 0], sizes = [2, 32], strides = [1, 1]} : vector<2x128xf32> to vector<2x32xf32>
    %674 = arith.negf %673 : vector<2x32xf32>
    %675 = math.exp %674 : vector<2x32xf32>
    %cst_119 = arith.constant 1.000000e+00 : f32
    %676 = vector.broadcast %cst_119 : f32 to vector<2x32xf32>
    %677 = arith.addf %676, %675 : vector<2x32xf32>
    %678 = arith.divf %676, %677 : vector<2x32xf32>
    %679 = vector.extract_strided_slice %647 {offsets = [0, 32], sizes = [2, 32], strides = [1, 1]} : vector<2x128xf32> to vector<2x32xf32>
    %680 = arith.negf %679 : vector<2x32xf32>
    %681 = math.exp %680 : vector<2x32xf32>
    %cst_120 = arith.constant 1.000000e+00 : f32
    %682 = vector.broadcast %cst_120 : f32 to vector<2x32xf32>
    %683 = arith.addf %682, %681 : vector<2x32xf32>
    %684 = arith.divf %682, %683 : vector<2x32xf32>
    %685 = vector.extract_strided_slice %647 {offsets = [0, 64], sizes = [2, 32], strides = [1, 1]} : vector<2x128xf32> to vector<2x32xf32>
    %686 = math.tanh %685 : vector<2x32xf32>
    %687 = vector.extract_strided_slice %647 {offsets = [0, 96], sizes = [2, 32], strides = [1, 1]} : vector<2x128xf32> to vector<2x32xf32>
    %688 = arith.negf %687 : vector<2x32xf32>
    %689 = math.exp %688 : vector<2x32xf32>
    %cst_121 = arith.constant 1.000000e+00 : f32
    %690 = vector.broadcast %cst_121 : f32 to vector<2x32xf32>
    %691 = arith.addf %690, %689 : vector<2x32xf32>
    %692 = arith.divf %690, %691 : vector<2x32xf32>
    %693 = arith.mulf %684, %639 : vector<2x32xf32>
    %694 = arith.mulf %678, %686 : vector<2x32xf32>
    %695 = arith.addf %693, %694 : vector<2x32xf32>
    %696 = math.tanh %695 : vector<2x32xf32>
    %697 = arith.mulf %692, %696 : vector<2x32xf32>
    %698 = vector.extract_strided_slice %469 {offsets = [8, 0], sizes = [2, 128], strides = [1, 1]} : vector<16x256xf32> to vector<2x128xf32>
    %cst_122 = arith.constant dense<0.000000e+00> : vector<2x128xf32>
    %699 = tpu.matmul %672, %464, %cst_122 {dimension_numbers = #tpu.dot_dimension_numbers<[1], [0], [0], [1], [0, 0, 1, 1], [], []>} : vector<2x32xf32>, vector<32x128xf32>, vector<2x128xf32> -> vector<2x128xf32>
    %700 = arith.addf %698, %699 : vector<2x128xf32>
    %701 = vector.extract_strided_slice %469 {offsets = [6, 128], sizes = [2, 128], strides = [1, 1]} : vector<16x256xf32> to vector<2x128xf32>
    %cst_123 = arith.constant dense<0.000000e+00> : vector<2x128xf32>
    %702 = tpu.matmul %697, %465, %cst_123 {dimension_numbers = #tpu.dot_dimension_numbers<[1], [0], [0], [1], [0, 0, 1, 1], [], []>} : vector<2x32xf32>, vector<32x128xf32>, vector<2x128xf32> -> vector<2x128xf32>
    %703 = arith.addf %701, %702 : vector<2x128xf32>
    %704 = vector.extract_strided_slice %700 {offsets = [0, 0], sizes = [2, 32], strides = [1, 1]} : vector<2x128xf32> to vector<2x32xf32>
    %705 = arith.negf %704 : vector<2x32xf32>
    %706 = math.exp %705 : vector<2x32xf32>
    %cst_124 = arith.constant 1.000000e+00 : f32
    %707 = vector.broadcast %cst_124 : f32 to vector<2x32xf32>
    %708 = arith.addf %707, %706 : vector<2x32xf32>
    %709 = arith.divf %707, %708 : vector<2x32xf32>
    %710 = vector.extract_strided_slice %700 {offsets = [0, 32], sizes = [2, 32], strides = [1, 1]} : vector<2x128xf32> to vector<2x32xf32>
    %711 = arith.negf %710 : vector<2x32xf32>
    %712 = math.exp %711 : vector<2x32xf32>
    %cst_125 = arith.constant 1.000000e+00 : f32
    %713 = vector.broadcast %cst_125 : f32 to vector<2x32xf32>
    %714 = arith.addf %713, %712 : vector<2x32xf32>
    %715 = arith.divf %713, %714 : vector<2x32xf32>
    %716 = vector.extract_strided_slice %700 {offsets = [0, 64], sizes = [2, 32], strides = [1, 1]} : vector<2x128xf32> to vector<2x32xf32>
    %717 = math.tanh %716 : vector<2x32xf32>
    %718 = vector.extract_strided_slice %700 {offsets = [0, 96], sizes = [2, 32], strides = [1, 1]} : vector<2x128xf32> to vector<2x32xf32>
    %719 = arith.negf %718 : vector<2x32xf32>
    %720 = math.exp %719 : vector<2x32xf32>
    %cst_126 = arith.constant 1.000000e+00 : f32
    %721 = vector.broadcast %cst_126 : f32 to vector<2x32xf32>
    %722 = arith.addf %721, %720 : vector<2x32xf32>
    %723 = arith.divf %721, %722 : vector<2x32xf32>
    %724 = arith.mulf %715, %670 : vector<2x32xf32>
    %725 = arith.mulf %709, %717 : vector<2x32xf32>
    %726 = arith.addf %724, %725 : vector<2x32xf32>
    %727 = math.tanh %726 : vector<2x32xf32>
    %728 = arith.mulf %723, %727 : vector<2x32xf32>
    %729 = vector.extract_strided_slice %703 {offsets = [0, 0], sizes = [2, 32], strides = [1, 1]} : vector<2x128xf32> to vector<2x32xf32>
    %730 = arith.negf %729 : vector<2x32xf32>
    %731 = math.exp %730 : vector<2x32xf32>
    %cst_127 = arith.constant 1.000000e+00 : f32
    %732 = vector.broadcast %cst_127 : f32 to vector<2x32xf32>
    %733 = arith.addf %732, %731 : vector<2x32xf32>
    %734 = arith.divf %732, %733 : vector<2x32xf32>
    %735 = vector.extract_strided_slice %703 {offsets = [0, 32], sizes = [2, 32], strides = [1, 1]} : vector<2x128xf32> to vector<2x32xf32>
    %736 = arith.negf %735 : vector<2x32xf32>
    %737 = math.exp %736 : vector<2x32xf32>
    %cst_128 = arith.constant 1.000000e+00 : f32
    %738 = vector.broadcast %cst_128 : f32 to vector<2x32xf32>
    %739 = arith.addf %738, %737 : vector<2x32xf32>
    %740 = arith.divf %738, %739 : vector<2x32xf32>
    %741 = vector.extract_strided_slice %703 {offsets = [0, 64], sizes = [2, 32], strides = [1, 1]} : vector<2x128xf32> to vector<2x32xf32>
    %742 = math.tanh %741 : vector<2x32xf32>
    %743 = vector.extract_strided_slice %703 {offsets = [0, 96], sizes = [2, 32], strides = [1, 1]} : vector<2x128xf32> to vector<2x32xf32>
    %744 = arith.negf %743 : vector<2x32xf32>
    %745 = math.exp %744 : vector<2x32xf32>
    %cst_129 = arith.constant 1.000000e+00 : f32
    %746 = vector.broadcast %cst_129 : f32 to vector<2x32xf32>
    %747 = arith.addf %746, %745 : vector<2x32xf32>
    %748 = arith.divf %746, %747 : vector<2x32xf32>
    %749 = arith.mulf %740, %695 : vector<2x32xf32>
    %750 = arith.mulf %734, %742 : vector<2x32xf32>
    %751 = arith.addf %749, %750 : vector<2x32xf32>
    %752 = math.tanh %751 : vector<2x32xf32>
    %753 = arith.mulf %748, %752 : vector<2x32xf32>
    %754 = vector.extract_strided_slice %469 {offsets = [10, 0], sizes = [2, 128], strides = [1, 1]} : vector<16x256xf32> to vector<2x128xf32>
    %cst_130 = arith.constant dense<0.000000e+00> : vector<2x128xf32>
    %755 = tpu.matmul %728, %464, %cst_130 {dimension_numbers = #tpu.dot_dimension_numbers<[1], [0], [0], [1], [0, 0, 1, 1], [], []>} : vector<2x32xf32>, vector<32x128xf32>, vector<2x128xf32> -> vector<2x128xf32>
    %756 = arith.addf %754, %755 : vector<2x128xf32>
    %757 = vector.extract_strided_slice %469 {offsets = [4, 128], sizes = [2, 128], strides = [1, 1]} : vector<16x256xf32> to vector<2x128xf32>
    %cst_131 = arith.constant dense<0.000000e+00> : vector<2x128xf32>
    %758 = tpu.matmul %753, %465, %cst_131 {dimension_numbers = #tpu.dot_dimension_numbers<[1], [0], [0], [1], [0, 0, 1, 1], [], []>} : vector<2x32xf32>, vector<32x128xf32>, vector<2x128xf32> -> vector<2x128xf32>
    %759 = arith.addf %757, %758 : vector<2x128xf32>
    %760 = vector.extract_strided_slice %756 {offsets = [0, 0], sizes = [2, 32], strides = [1, 1]} : vector<2x128xf32> to vector<2x32xf32>
    %761 = arith.negf %760 : vector<2x32xf32>
    %762 = math.exp %761 : vector<2x32xf32>
    %cst_132 = arith.constant 1.000000e+00 : f32
    %763 = vector.broadcast %cst_132 : f32 to vector<2x32xf32>
    %764 = arith.addf %763, %762 : vector<2x32xf32>
    %765 = arith.divf %763, %764 : vector<2x32xf32>
    %766 = vector.extract_strided_slice %756 {offsets = [0, 32], sizes = [2, 32], strides = [1, 1]} : vector<2x128xf32> to vector<2x32xf32>
    %767 = arith.negf %766 : vector<2x32xf32>
    %768 = math.exp %767 : vector<2x32xf32>
    %cst_133 = arith.constant 1.000000e+00 : f32
    %769 = vector.broadcast %cst_133 : f32 to vector<2x32xf32>
    %770 = arith.addf %769, %768 : vector<2x32xf32>
    %771 = arith.divf %769, %770 : vector<2x32xf32>
    %772 = vector.extract_strided_slice %756 {offsets = [0, 64], sizes = [2, 32], strides = [1, 1]} : vector<2x128xf32> to vector<2x32xf32>
    %773 = math.tanh %772 : vector<2x32xf32>
    %774 = vector.extract_strided_slice %756 {offsets = [0, 96], sizes = [2, 32], strides = [1, 1]} : vector<2x128xf32> to vector<2x32xf32>
    %775 = arith.negf %774 : vector<2x32xf32>
    %776 = math.exp %775 : vector<2x32xf32>
    %cst_134 = arith.constant 1.000000e+00 : f32
    %777 = vector.broadcast %cst_134 : f32 to vector<2x32xf32>
    %778 = arith.addf %777, %776 : vector<2x32xf32>
    %779 = arith.divf %777, %778 : vector<2x32xf32>
    %780 = arith.mulf %771, %726 : vector<2x32xf32>
    %781 = arith.mulf %765, %773 : vector<2x32xf32>
    %782 = arith.addf %780, %781 : vector<2x32xf32>
    %783 = math.tanh %782 : vector<2x32xf32>
    %784 = arith.mulf %779, %783 : vector<2x32xf32>
    %785 = vector.extract_strided_slice %759 {offsets = [0, 0], sizes = [2, 32], strides = [1, 1]} : vector<2x128xf32> to vector<2x32xf32>
    %786 = arith.negf %785 : vector<2x32xf32>
    %787 = math.exp %786 : vector<2x32xf32>
    %cst_135 = arith.constant 1.000000e+00 : f32
    %788 = vector.broadcast %cst_135 : f32 to vector<2x32xf32>
    %789 = arith.addf %788, %787 : vector<2x32xf32>
    %790 = arith.divf %788, %789 : vector<2x32xf32>
    %791 = vector.extract_strided_slice %759 {offsets = [0, 32], sizes = [2, 32], strides = [1, 1]} : vector<2x128xf32> to vector<2x32xf32>
    %792 = arith.negf %791 : vector<2x32xf32>
    %793 = math.exp %792 : vector<2x32xf32>
    %cst_136 = arith.constant 1.000000e+00 : f32
    %794 = vector.broadcast %cst_136 : f32 to vector<2x32xf32>
    %795 = arith.addf %794, %793 : vector<2x32xf32>
    %796 = arith.divf %794, %795 : vector<2x32xf32>
    %797 = vector.extract_strided_slice %759 {offsets = [0, 64], sizes = [2, 32], strides = [1, 1]} : vector<2x128xf32> to vector<2x32xf32>
    %798 = math.tanh %797 : vector<2x32xf32>
    %799 = vector.extract_strided_slice %759 {offsets = [0, 96], sizes = [2, 32], strides = [1, 1]} : vector<2x128xf32> to vector<2x32xf32>
    %800 = arith.negf %799 : vector<2x32xf32>
    %801 = math.exp %800 : vector<2x32xf32>
    %cst_137 = arith.constant 1.000000e+00 : f32
    %802 = vector.broadcast %cst_137 : f32 to vector<2x32xf32>
    %803 = arith.addf %802, %801 : vector<2x32xf32>
    %804 = arith.divf %802, %803 : vector<2x32xf32>
    %805 = arith.mulf %796, %751 : vector<2x32xf32>
    %806 = arith.mulf %790, %798 : vector<2x32xf32>
    %807 = arith.addf %805, %806 : vector<2x32xf32>
    %808 = math.tanh %807 : vector<2x32xf32>
    %809 = arith.mulf %804, %808 : vector<2x32xf32>
    %810 = vector.extract_strided_slice %469 {offsets = [12, 0], sizes = [2, 128], strides = [1, 1]} : vector<16x256xf32> to vector<2x128xf32>
    %cst_138 = arith.constant dense<0.000000e+00> : vector<2x128xf32>
    %811 = tpu.matmul %784, %464, %cst_138 {dimension_numbers = #tpu.dot_dimension_numbers<[1], [0], [0], [1], [0, 0, 1, 1], [], []>} : vector<2x32xf32>, vector<32x128xf32>, vector<2x128xf32> -> vector<2x128xf32>
    %812 = arith.addf %810, %811 : vector<2x128xf32>
    %813 = vector.extract_strided_slice %469 {offsets = [2, 128], sizes = [2, 128], strides = [1, 1]} : vector<16x256xf32> to vector<2x128xf32>
    %cst_139 = arith.constant dense<0.000000e+00> : vector<2x128xf32>
    %814 = tpu.matmul %809, %465, %cst_139 {dimension_numbers = #tpu.dot_dimension_numbers<[1], [0], [0], [1], [0, 0, 1, 1], [], []>} : vector<2x32xf32>, vector<32x128xf32>, vector<2x128xf32> -> vector<2x128xf32>
    %815 = arith.addf %813, %814 : vector<2x128xf32>
    %816 = vector.extract_strided_slice %812 {offsets = [0, 0], sizes = [2, 32], strides = [1, 1]} : vector<2x128xf32> to vector<2x32xf32>
    %817 = arith.negf %816 : vector<2x32xf32>
    %818 = math.exp %817 : vector<2x32xf32>
    %cst_140 = arith.constant 1.000000e+00 : f32
    %819 = vector.broadcast %cst_140 : f32 to vector<2x32xf32>
    %820 = arith.addf %819, %818 : vector<2x32xf32>
    %821 = arith.divf %819, %820 : vector<2x32xf32>
    %822 = vector.extract_strided_slice %812 {offsets = [0, 32], sizes = [2, 32], strides = [1, 1]} : vector<2x128xf32> to vector<2x32xf32>
    %823 = arith.negf %822 : vector<2x32xf32>
    %824 = math.exp %823 : vector<2x32xf32>
    %cst_141 = arith.constant 1.000000e+00 : f32
    %825 = vector.broadcast %cst_141 : f32 to vector<2x32xf32>
    %826 = arith.addf %825, %824 : vector<2x32xf32>
    %827 = arith.divf %825, %826 : vector<2x32xf32>
    %828 = vector.extract_strided_slice %812 {offsets = [0, 64], sizes = [2, 32], strides = [1, 1]} : vector<2x128xf32> to vector<2x32xf32>
    %829 = math.tanh %828 : vector<2x32xf32>
    %830 = vector.extract_strided_slice %812 {offsets = [0, 96], sizes = [2, 32], strides = [1, 1]} : vector<2x128xf32> to vector<2x32xf32>
    %831 = arith.negf %830 : vector<2x32xf32>
    %832 = math.exp %831 : vector<2x32xf32>
    %cst_142 = arith.constant 1.000000e+00 : f32
    %833 = vector.broadcast %cst_142 : f32 to vector<2x32xf32>
    %834 = arith.addf %833, %832 : vector<2x32xf32>
    %835 = arith.divf %833, %834 : vector<2x32xf32>
    %836 = arith.mulf %827, %782 : vector<2x32xf32>
    %837 = arith.mulf %821, %829 : vector<2x32xf32>
    %838 = arith.addf %836, %837 : vector<2x32xf32>
    %839 = math.tanh %838 : vector<2x32xf32>
    %840 = arith.mulf %835, %839 : vector<2x32xf32>
    %841 = vector.extract_strided_slice %815 {offsets = [0, 0], sizes = [2, 32], strides = [1, 1]} : vector<2x128xf32> to vector<2x32xf32>
    %842 = arith.negf %841 : vector<2x32xf32>
    %843 = math.exp %842 : vector<2x32xf32>
    %cst_143 = arith.constant 1.000000e+00 : f32
    %844 = vector.broadcast %cst_143 : f32 to vector<2x32xf32>
    %845 = arith.addf %844, %843 : vector<2x32xf32>
    %846 = arith.divf %844, %845 : vector<2x32xf32>
    %847 = vector.extract_strided_slice %815 {offsets = [0, 32], sizes = [2, 32], strides = [1, 1]} : vector<2x128xf32> to vector<2x32xf32>
    %848 = arith.negf %847 : vector<2x32xf32>
    %849 = math.exp %848 : vector<2x32xf32>
    %cst_144 = arith.constant 1.000000e+00 : f32
    %850 = vector.broadcast %cst_144 : f32 to vector<2x32xf32>
    %851 = arith.addf %850, %849 : vector<2x32xf32>
    %852 = arith.divf %850, %851 : vector<2x32xf32>
    %853 = vector.extract_strided_slice %815 {offsets = [0, 64], sizes = [2, 32], strides = [1, 1]} : vector<2x128xf32> to vector<2x32xf32>
    %854 = math.tanh %853 : vector<2x32xf32>
    %855 = vector.extract_strided_slice %815 {offsets = [0, 96], sizes = [2, 32], strides = [1, 1]} : vector<2x128xf32> to vector<2x32xf32>
    %856 = arith.negf %855 : vector<2x32xf32>
    %857 = math.exp %856 : vector<2x32xf32>
    %cst_145 = arith.constant 1.000000e+00 : f32
    %858 = vector.broadcast %cst_145 : f32 to vector<2x32xf32>
    %859 = arith.addf %858, %857 : vector<2x32xf32>
    %860 = arith.divf %858, %859 : vector<2x32xf32>
    %861 = arith.mulf %852, %807 : vector<2x32xf32>
    %862 = arith.mulf %846, %854 : vector<2x32xf32>
    %863 = arith.addf %861, %862 : vector<2x32xf32>
    %864 = math.tanh %863 : vector<2x32xf32>
    %865 = arith.mulf %860, %864 : vector<2x32xf32>
    %866 = vector.extract_strided_slice %469 {offsets = [14, 0], sizes = [2, 128], strides = [1, 1]} : vector<16x256xf32> to vector<2x128xf32>
    %cst_146 = arith.constant dense<0.000000e+00> : vector<2x128xf32>
    %867 = tpu.matmul %840, %464, %cst_146 {dimension_numbers = #tpu.dot_dimension_numbers<[1], [0], [0], [1], [0, 0, 1, 1], [], []>} : vector<2x32xf32>, vector<32x128xf32>, vector<2x128xf32> -> vector<2x128xf32>
    %868 = arith.addf %866, %867 : vector<2x128xf32>
    %869 = vector.extract_strided_slice %469 {offsets = [0, 128], sizes = [2, 128], strides = [1, 1]} : vector<16x256xf32> to vector<2x128xf32>
    %cst_147 = arith.constant dense<0.000000e+00> : vector<2x128xf32>
    %870 = tpu.matmul %865, %465, %cst_147 {dimension_numbers = #tpu.dot_dimension_numbers<[1], [0], [0], [1], [0, 0, 1, 1], [], []>} : vector<2x32xf32>, vector<32x128xf32>, vector<2x128xf32> -> vector<2x128xf32>
    %871 = arith.addf %869, %870 : vector<2x128xf32>
    %872 = vector.extract_strided_slice %868 {offsets = [0, 0], sizes = [2, 32], strides = [1, 1]} : vector<2x128xf32> to vector<2x32xf32>
    %873 = arith.negf %872 : vector<2x32xf32>
    %874 = math.exp %873 : vector<2x32xf32>
    %cst_148 = arith.constant 1.000000e+00 : f32
    %875 = vector.broadcast %cst_148 : f32 to vector<2x32xf32>
    %876 = arith.addf %875, %874 : vector<2x32xf32>
    %877 = arith.divf %875, %876 : vector<2x32xf32>
    %878 = vector.extract_strided_slice %868 {offsets = [0, 32], sizes = [2, 32], strides = [1, 1]} : vector<2x128xf32> to vector<2x32xf32>
    %879 = arith.negf %878 : vector<2x32xf32>
    %880 = math.exp %879 : vector<2x32xf32>
    %cst_149 = arith.constant 1.000000e+00 : f32
    %881 = vector.broadcast %cst_149 : f32 to vector<2x32xf32>
    %882 = arith.addf %881, %880 : vector<2x32xf32>
    %883 = arith.divf %881, %882 : vector<2x32xf32>
    %884 = vector.extract_strided_slice %868 {offsets = [0, 64], sizes = [2, 32], strides = [1, 1]} : vector<2x128xf32> to vector<2x32xf32>
    %885 = math.tanh %884 : vector<2x32xf32>
    %886 = vector.extract_strided_slice %868 {offsets = [0, 96], sizes = [2, 32], strides = [1, 1]} : vector<2x128xf32> to vector<2x32xf32>
    %887 = arith.negf %886 : vector<2x32xf32>
    %888 = math.exp %887 : vector<2x32xf32>
    %cst_150 = arith.constant 1.000000e+00 : f32
    %889 = vector.broadcast %cst_150 : f32 to vector<2x32xf32>
    %890 = arith.addf %889, %888 : vector<2x32xf32>
    %891 = arith.divf %889, %890 : vector<2x32xf32>
    %892 = arith.mulf %883, %838 : vector<2x32xf32>
    %893 = arith.mulf %877, %885 : vector<2x32xf32>
    %894 = arith.addf %892, %893 : vector<2x32xf32>
    %895 = math.tanh %894 : vector<2x32xf32>
    %896 = arith.mulf %891, %895 : vector<2x32xf32>
    %897 = vector.extract_strided_slice %871 {offsets = [0, 0], sizes = [2, 32], strides = [1, 1]} : vector<2x128xf32> to vector<2x32xf32>
    %898 = arith.negf %897 : vector<2x32xf32>
    %899 = math.exp %898 : vector<2x32xf32>
    %cst_151 = arith.constant 1.000000e+00 : f32
    %900 = vector.broadcast %cst_151 : f32 to vector<2x32xf32>
    %901 = arith.addf %900, %899 : vector<2x32xf32>
    %902 = arith.divf %900, %901 : vector<2x32xf32>
    %903 = vector.extract_strided_slice %871 {offsets = [0, 32], sizes = [2, 32], strides = [1, 1]} : vector<2x128xf32> to vector<2x32xf32>
    %904 = arith.negf %903 : vector<2x32xf32>
    %905 = math.exp %904 : vector<2x32xf32>
    %cst_152 = arith.constant 1.000000e+00 : f32
    %906 = vector.broadcast %cst_152 : f32 to vector<2x32xf32>
    %907 = arith.addf %906, %905 : vector<2x32xf32>
    %908 = arith.divf %906, %907 : vector<2x32xf32>
    %909 = vector.extract_strided_slice %871 {offsets = [0, 64], sizes = [2, 32], strides = [1, 1]} : vector<2x128xf32> to vector<2x32xf32>
    %910 = math.tanh %909 : vector<2x32xf32>
    %911 = vector.extract_strided_slice %871 {offsets = [0, 96], sizes = [2, 32], strides = [1, 1]} : vector<2x128xf32> to vector<2x32xf32>
    %912 = arith.negf %911 : vector<2x32xf32>
    %913 = math.exp %912 : vector<2x32xf32>
    %cst_153 = arith.constant 1.000000e+00 : f32
    %914 = vector.broadcast %cst_153 : f32 to vector<2x32xf32>
    %915 = arith.addf %914, %913 : vector<2x32xf32>
    %916 = arith.divf %914, %915 : vector<2x32xf32>
    %917 = arith.mulf %908, %863 : vector<2x32xf32>
    %918 = arith.mulf %902, %910 : vector<2x32xf32>
    %919 = arith.addf %917, %918 : vector<2x32xf32>
    %920 = math.tanh %919 : vector<2x32xf32>
    %921 = arith.mulf %916, %920 : vector<2x32xf32>
    %922 = tpu.concatenate %504, %560, %616, %672, %728, %784, %840, %896 in 0 : vector<2x32xf32>, vector<2x32xf32>, vector<2x32xf32>, vector<2x32xf32>, vector<2x32xf32>, vector<2x32xf32>, vector<2x32xf32>, vector<2x32xf32> -> vector<16x32xf32>
    %923 = tpu.concatenate %921, %865, %809, %753, %697, %641, %585, %529 in 0 : vector<2x32xf32>, vector<2x32xf32>, vector<2x32xf32>, vector<2x32xf32>, vector<2x32xf32>, vector<2x32xf32>, vector<2x32xf32>, vector<2x32xf32> -> vector<16x32xf32>
    %924 = tpu.concatenate %922, %923 in 1 : vector<16x32xf32>, vector<16x32xf32> -> vector<16x64xf32>
    %c0_154 = arith.constant 0 : index
    %c0_155 = arith.constant 0 : index
    %925 = vector.load %arg9[%c0_154, %c0_155] : memref<64x16xf32, #tpu.memory_space<vmem>>, vector<64x16xf32>
    %cst_156 = arith.constant dense<0.000000e+00> : vector<16x16xf32>
    %926 = tpu.matmul %924, %925, %cst_156 {dimension_numbers = #tpu.dot_dimension_numbers<[1], [0], [0], [1], [0, 0, 1, 1], [], []>} : vector<16x64xf32>, vector<64x16xf32>, vector<16x16xf32> -> vector<16x16xf32>
    %c0_157 = arith.constant 0 : index
    %c0_158 = arith.constant 0 : index
    %927 = vector.load %arg10[%c0_157, %c0_158] : memref<1x16xf32, #tpu.memory_space<vmem>>, vector<1x16xf32>
    %928 = vector.broadcast %927 : vector<1x16xf32> to vector<16x16xf32>
    %929 = arith.addf %926, %928 : vector<16x16xf32>
    %c0_159 = arith.constant 0 : index
    %c0_160 = arith.constant 0 : index
    %930 = vector.load %arg11[%c0_159, %c0_160] : memref<16x16xf32, #tpu.memory_space<vmem>>, vector<16x16xf32>
    tpu.vector_store %arg11[%c0_159, %c0_160], %929 {strides = array<i32>} : memref<16x16xf32, #tpu.memory_space<vmem>>, vector<16x16xf32>,
    return
  }
}

</mosaic_0001>

<llo_original>
// kernel: bidirectional_lstm_forward.1
$region0: #{bidirectional_lstm_forward.1}
  #allocation0 [shape = 'u32[]', space=smem, size = 0x4, offset = 0x4, fixed_abs, tag = 'smem constant byte address 0x4 - core index']
  #allocation1 [shape = 'u32[144,128]{1,0:T(1,128)}', space=vmem, size = 0x12000, scoped, tag = 'internal scratch']
  %s0 = inlined_call_operand.vmem [shape: f32[16,32], index: 0, kind: input, shape index: {}]
  %s1 = inlined_call_operand.vmem [shape: f32[32,256], index: 1, kind: input, shape index: {}]
  %s2 = inlined_call_operand.vmem [shape: f32[32,128], index: 2, kind: input, shape index: {}]
  %s3 = inlined_call_operand.hbm [shape: f32[32,128], index: 3, kind: input, shape index: {}]
  %s4 = inlined_call_operand.vmem [shape: f32[1,256], index: 4, kind: input, shape index: {}]
  %s5 = inlined_call_operand.hbm [shape: f32[64,256], index: 5, kind: input, shape index: {}]
  %s6 = inlined_call_operand.hbm [shape: f32[32,128], index: 6, kind: input, shape index: {}]
  %s7 = inlined_call_operand.hbm [shape: f32[32,128], index: 7, kind: input, shape index: {}]
  %s8 = inlined_call_operand.hbm [shape: f32[1,256], index: 8, kind: input, shape index: {}]
  %s9 = inlined_call_operand.vmem [shape: f32[64,16], index: 9, kind: input, shape index: {}]
  %s10 = inlined_call_operand.hbm [shape: f32[1,16], index: 10, kind: input, shape index: {}]
  %s11 = inlined_call_operand.hbm [shape: f32[16,16], index: 11, kind: output, shape index: {}]
  %s12 = sld [smem:[#allocation0]]
  $region78: #{bidirectional_lstm_forward.1} parent=0
    _
  %s14 = ssub.s32 1, %s12
  %s15 = scalar_select 0, %s14, %s12
  $region1: #{bidirectional_lstm_forward.1} parent=0
    #allocation2 [shape = 'u8[16384]{0}', space=vmem, size = 0x4000, scoped, tag = 'input window, operand 3, single buffered']
    #allocation3 [shape = 's32[1]{0}', space=sflag, size = 0x4, scoped, tag = 'scoped memory for bidirectional_lstm_forward.1']
    #allocation4 [shape = 's32[1]{0}', space=sflag, size = 0x4, scoped, tag = 'scoped memory for bidirectional_lstm_forward.1']
    #allocation5 [shape = 'u8[65536]{0}', space=vmem, size = 0x10000, scoped, tag = 'input window, operand 5, single buffered']
    #allocation6 [shape = 's32[1]{0}', space=sflag, size = 0x4, scoped, tag = 'scoped memory for bidirectional_lstm_forward.1']
    #allocation7 [shape = 'u8[16384]{0}', space=vmem, size = 0x4000, scoped, tag = 'input window, operand 6, single buffered']
    #allocation8 [shape = 'u8[16384]{0}', space=vmem, size = 0x4000, scoped, tag = 'input window, operand 7, single buffered']
    #allocation9 [shape = 's32[1]{0}', space=sflag, size = 0x4, scoped, tag = 'scoped memory for bidirectional_lstm_forward.1']
    #allocation10 [shape = 'u8[1024]{0}', space=vmem, size = 0x400, scoped, tag = 'input window, operand 8, single buffered']
    #allocation11 [shape = 'u8[512]{0}', space=vmem, size = 0x400, scoped, tag = 'input window, operand 10, single buffered']
    #allocation12 [shape = 's32[1]{0}', space=sflag, size = 0x4, scoped, tag = 'scoped memory for bidirectional_lstm_forward.1']
    #allocation13 [shape = 'u8[8192]{0}', space=vmem, size = 0x2000, scoped, tag = 'output window, operand 0, single buffered']
    %16 = vsyncpa [#allocation3], 0
    %17 = vsyncpa [#allocation6], 0
    %18 = vsyncpa [#allocation9], 0
    %19 = vsyncpa [#allocation12], 0
    %20 = vsyncpa [#allocation4], 0
    // Predicated region
    $region2: #{bidirectional_lstm_forward.1} parent=1 // pred_check
      _
    $region3: #{bidirectional_lstm_forward.1} parent=1 // pred_check_branch
      %22 = sbr.rel (0) target = $region5
    $region4: #{bidirectional_lstm_forward.1} parent=1 // pred_region
      _
    $region5: #{bidirectional_lstm_forward.1} parent=1 // pred_fallthru
      _
    // Predicated region
    $region6: #{bidirectional_lstm_forward.1} parent=1 // pred_check
      _
    $region7: #{bidirectional_lstm_forward.1} parent=1 // pred_check_branch
      %24 = sbr.rel (0) target = $region9
    $region8: #{bidirectional_lstm_forward.1} parent=1 // pred_region
      _
    $region9: #{bidirectional_lstm_forward.1} parent=1 // pred_fallthru
      _
    // Predicated region
    $region10: #{bidirectional_lstm_forward.1} parent=1 // pred_check
      _
    $region11: #{bidirectional_lstm_forward.1} parent=1 // pred_check_branch
      %26 = sbr.rel (0) target = $region13
    $region12: #{bidirectional_lstm_forward.1} parent=1 // pred_region
      _
    $region13: #{bidirectional_lstm_forward.1} parent=1 // pred_fallthru
      _
    // Predicated region
    $region14: #{bidirectional_lstm_forward.1} parent=1 // pred_check
      _
    $region15: #{bidirectional_lstm_forward.1} parent=1 // pred_check_branch
      %28 = sbr.rel (0) target = $region17
    $region16: #{bidirectional_lstm_forward.1} parent=1 // pred_region
      %s30 = ssub.s32 512, 512
      %31 = vsyncadd [#allocation3], %s30
      %s32 = sshll.u32 [#allocation2], 4
      %s33 = int_to_ptr.vmem [resolvable:$true] %s32
      %38 = dma.hbm_to_vmem [thread:$0]  %s3, 512, %s33, [#allocation3], 128, 128, 8
    $region17: #{bidirectional_lstm_forward.1} parent=1 // pred_fallthru
      _
    // Predicated region
    $region18: #{bidirectional_lstm_forward.1} parent=1 // pred_check
      _
    $region19: #{bidirectional_lstm_forward.1} parent=1 // pred_check_branch
      %40 = sbr.rel (0) target = $region21
    $region20: #{bidirectional_lstm_forward.1} parent=1 // pred_region
      _
    $region21: #{bidirectional_lstm_forward.1} parent=1 // pred_fallthru
      _
    // Predicated region
    $region22: #{bidirectional_lstm_forward.1} parent=1 // pred_check
      _
    $region23: #{bidirectional_lstm_forward.1} parent=1 // pred_check_branch
      %42 = sbr.rel (0) target = $region25
    $region24: #{bidirectional_lstm_forward.1} parent=1 // pred_region
      %s44 = ssub.s32 2048, 2048
      %45 = vsyncadd [#allocation6], %s44
      %s46 = sshll.u32 [#allocation5], 4
      %s47 = int_to_ptr.vmem [resolvable:$true] %s46
      %52 = dma.hbm_to_vmem [thread:$0]  %s5, 2048, %s47, [#allocation6], 256, 256, 16
    $region25: #{bidirectional_lstm_forward.1} parent=1 // pred_fallthru
      _
    // Predicated region
    $region26: #{bidirectional_lstm_forward.1} parent=1 // pred_check
      _
    $region27: #{bidirectional_lstm_forward.1} parent=1 // pred_check_branch
      %54 = sbr.rel (0) target = $region29
    $region28: #{bidirectional_lstm_forward.1} parent=1 // pred_region
      %s56 = ssub.s32 512, 512
      %57 = vsyncadd [#allocation6], %s56
      %s58 = sshll.u32 [#allocation7], 4
      %s59 = int_to_ptr.vmem [resolvable:$true] %s58
      %64 = dma.hbm_to_vmem [thread:$0]  %s6, 512, %s59, [#allocation6], 128, 128, 8
    $region29: #{bidirectional_lstm_forward.1} parent=1 // pred_fallthru
      _
    // Predicated region
    $region30: #{bidirectional_lstm_forward.1} parent=1 // pred_check
      _
    $region31: #{bidirectional_lstm_forward.1} parent=1 // pred_check_branch
      %66 = sbr.rel (0) target = $region33
    $region32: #{bidirectional_lstm_forward.1} parent=1 // pred_region
      %s68 = ssub.s32 512, 512
      %69 = vsyncadd [#allocation9], %s68
      %s70 = sshll.u32 [#allocation8], 4
      %s71 = int_to_ptr.vmem [resolvable:$true] %s70
      %76 = dma.hbm_to_vmem [thread:$0]  %s7, 512, %s71, [#allocation9], 128, 128, 8
    $region33: #{bidirectional_lstm_forward.1} parent=1 // pred_fallthru
      _
    // Predicated region
    $region34: #{bidirectional_lstm_forward.1} parent=1 // pred_check
      _
    $region35: #{bidirectional_lstm_forward.1} parent=1 // pred_check_branch
      %78 = sbr.rel (0) target = $region37
    $region36: #{bidirectional_lstm_forward.1} parent=1 // pred_region
      %s80 = ssub.s32 32, 32
      %81 = vsyncadd [#allocation9], %s80
      %s83 = sshll.u32 [#allocation10], 4
      %s84 = int_to_ptr.vmem [resolvable:$true] %s83
      %86 = dma.hbm_to_vmem [thread:$0]  %s8, 32, %s84, [#allocation9]
    $region37: #{bidirectional_lstm_forward.1} parent=1 // pred_fallthru
      _
    // Predicated region
    $region38: #{bidirectional_lstm_forward.1} parent=1 // pred_check
      _
    $region39: #{bidirectional_lstm_forward.1} parent=1 // pred_check_branch
      %88 = sbr.rel (0) target = $region41
    $region40: #{bidirectional_lstm_forward.1} parent=1 // pred_region
      _
    $region41: #{bidirectional_lstm_forward.1} parent=1 // pred_fallthru
      _
    // Predicated region
    $region42: #{bidirectional_lstm_forward.1} parent=1 // pred_check
      _
    $region43: #{bidirectional_lstm_forward.1} parent=1 // pred_check_branch
      %90 = sbr.rel (0) target = $region45
    $region44: #{bidirectional_lstm_forward.1} parent=1 // pred_region
      %s92 = ssub.s32 16, 16
      %93 = vsyncadd [#allocation12], %s92
      %s95 = sshll.u32 [#allocation11], 4
      %s96 = int_to_ptr.vmem [resolvable:$true] %s95
      %98 = dma.hbm_to_vmem [thread:$0]  %s10, 16, %s96, [#allocation12]
    $region45: #{bidirectional_lstm_forward.1} parent=1 // pred_fallthru
      _
    // Predicated region
    $region46: #{bidirectional_lstm_forward.1} parent=1 // pred_check
      _
    $region47: #{bidirectional_lstm_forward.1} parent=1 // pred_check_branch
      %100 = sbr.rel (0) target = $region49
    $region48: #{bidirectional_lstm_forward.1} parent=1 // pred_region
      %101 = dma.done [#allocation3], 512
    $region49: #{bidirectional_lstm_forward.1} parent=1 // pred_fallthru
      _
    // Predicated region
    $region50: #{bidirectional_lstm_forward.1} parent=1 // pred_check
      _
    $region51: #{bidirectional_lstm_forward.1} parent=1 // pred_check_branch
      %103 = sbr.rel (0) target = $region53
    $region52: #{bidirectional_lstm_forward.1} parent=1 // pred_region
      %104 = dma.done [#allocation6], 2048
    $region53: #{bidirectional_lstm_forward.1} parent=1 // pred_fallthru
      _
    // Predicated region
    $region54: #{bidirectional_lstm_forward.1} parent=1 // pred_check
      _
    $region55: #{bidirectional_lstm_forward.1} parent=1 // pred_check_branch
      %106 = sbr.rel (0) target = $region57
    $region56: #{bidirectional_lstm_forward.1} parent=1 // pred_region
      %107 = dma.done [#allocation6], 512
    $region57: #{bidirectional_lstm_forward.1} parent=1 // pred_fallthru
      _
    // Predicated region
    $region58: #{bidirectional_lstm_forward.1} parent=1 // pred_check
      _
    $region59: #{bidirectional_lstm_forward.1} parent=1 // pred_check_branch
      %109 = sbr.rel (0) target = $region61
    $region60: #{bidirectional_lstm_forward.1} parent=1 // pred_region
      %110 = dma.done [#allocation9], 512
    $region61: #{bidirectional_lstm_forward.1} parent=1 // pred_fallthru
      _
    // Predicated region
    $region62: #{bidirectional_lstm_forward.1} parent=1 // pred_check
      _
    $region63: #{bidirectional_lstm_forward.1} parent=1 // pred_check_branch
      %112 = sbr.rel (0) target = $region65
    $region64: #{bidirectional_lstm_forward.1} parent=1 // pred_region
      %113 = dma.done [#allocation9], 32
    $region65: #{bidirectional_lstm_forward.1} parent=1 // pred_fallthru
      _
    // Predicated region
    $region66: #{bidirectional_lstm_forward.1} parent=1 // pred_check
      _
    $region67: #{bidirectional_lstm_forward.1} parent=1 // pred_check_branch
      %115 = sbr.rel (0) target = $region69
    $region68: #{bidirectional_lstm_forward.1} parent=1 // pred_region
      %116 = dma.done [#allocation12], 16
    $region69: #{bidirectional_lstm_forward.1} parent=1 // pred_fallthru
      _
    %v117 = vld [vmem:[%s0] sm:$0xff]
    %v118 = vld [vmem:[%s0 + $0x8] sm:$0xff]
    %v119 = vld [vmem:[%s1] sm:$0xff]
    %v120 = vld [vmem:[%s1 + $0x8] sm:$0xff]
    %v121 = vld [vmem:[%s1 + $0x10] sm:$0xff]
    %v122 = vld [vmem:[%s1 + $0x18] sm:$0xff]
    %v123 = vld [vmem:[%s1 + $0x20] sm:$0xff]
    %v124 = vld [vmem:[%s1 + $0x28] sm:$0xff]
    %v125 = vld [vmem:[%s1 + $0x30] sm:$0xff]
    %v126 = vld [vmem:[%s1 + $0x38] sm:$0xff]
    %v127 = vld [vmem:[%s2] sm:$0xff]
    %v128 = vld [vmem:[%s2 + $0x8] sm:$0xff]
    %v129 = vld [vmem:[%s2 + $0x10] sm:$0xff]
    %v130 = vld [vmem:[%s2 + $0x18] sm:$0xff]
    %v131 = vld [vmem:[#allocation2] sm:$0xff]
    %v132 = vld [vmem:[#allocation2 + $0x8] sm:$0xff]
    %v133 = vld [vmem:[#allocation2 + $0x10] sm:$0xff]
    %v134 = vld [vmem:[#allocation2 + $0x18] sm:$0xff]
    %v135 = vld [vmem:[%s4] sm:$0x3]
    %v137 = vlaneseq
    %v138 = vshrl.u32 %v137, 7
    %v139 = vsub.s32 0, %v138
    %v140 = vrot.slane %v135, %v139
    %v141 = vlaneseq
    %v142 = vshrl.u32 %v141, 7
    %v143 = vsub.s32 1, %v142
    %v144 = vrot.slane %v135, %v143
    %vm147 = vcmask 261120
    %v149 = vsel %vm147, %v117, 0
    %v152 = vsel %vm147, %v118, 0
    %154 = vmatprep.subr.mxu0 %v120
    %155 = vmatpush1.msra.mxu0 %v119
    %156 = vmatprep.subr.mxu0 %v122
    %157 = vmatpush1.msra.mxu0 %v121
    %158 = vmatprep.subr.mxu0 %v124
    %159 = vmatpush1.msra.mxu0 %v123
    %160 = vmatprep.subr.mxu0 %v126
    %161 = vmatpush1.msra.mxu0 %v125
    %162 = vmatprep.subr.mxu0 0.0
    %163 = vmatpush1.msra.mxu0 0.0
    %164 = vmatprep.subr.mxu0 0.0
    %165 = vmatpush1.msra.mxu0 0.0
    %166 = vmatprep.subr.mxu0 0.0
    %167 = vmatpush1.msra.mxu0 0.0
    %168 = vmatprep.subr.mxu0 0.0
    %169 = vmatpush1.msra.mxu0 0.0
    %170 = vmatprep.subr.mxu0 0.0
    %171 = vmatpush1.msra.mxu0 0.0
    %172 = vmatprep.subr.mxu0 0.0
    %173 = vmatpush1.msra.mxu0 0.0
    %174 = vmatprep.subr.mxu0 0.0
    %175 = vmatpush1.msra.mxu0 0.0
    %176 = vmatprep.subr.mxu0 0.0
    %177 = vmatpush1.msra.mxu0 0.0
    %178 = vmatprep.subr.mxu0 0.0
    %179 = vmatpush1.msra.mxu0 0.0
    %180 = vmatprep.subr.mxu0 0.0
    %181 = vmatpush1.msra.mxu0 0.0
    %182 = vmatprep.subr.mxu0 0.0
    %183 = vmatpush1.msra.mxu0 0.0
    %184 = vmatprep.subr.mxu0 0.0
    %185 = vmatpush1.msra.mxu0 0.0
    %186 = vmatprep.subr.mxu0 0.0
    %187 = vmatpush1.msra.mxu0 0.0
    %188 = vmatprep.subr.mxu0 0.0
    %189 = vmatpush1.msra.mxu0 0.0
    %190 = vmatprep.subr.mxu0 0.0
    %191 = vmatpush1.msra.mxu0 0.0
    %192 = vmatprep.subr.mxu0 0.0
    %193 = vmatpush1.msra.mxu0 0.0
    %194 = vmatprep.subr.mxu0 0.0
    %195 = vmatpush1.msra.mxu0 0.0
    %196 = vmatprep.subr.mxu0 0.0
    %197 = vmatpush1.msra.mxu0 0.0
    %198 = vmatprep.subr.mxu0 0.0
    %199 = vmatpush1.msra.mxu0 0.0
    %200 = vmatprep.subr.mxu0 0.0
    %201 = vmatpush1.msra.mxu0 0.0
    %202 = vmatprep.subr.mxu0 0.0
    %203 = vmatpush1.msra.mxu0 0.0
    %204 = vmatprep.subr.mxu0 0.0
    %205 = vmatpush1.msra.mxu0 0.0
    %206 = vmatprep.subr.mxu0 0.0
    %207 = vmatpush1.msra.mxu0 0.0
    %208 = vmatprep.subr.mxu0 0.0
    %209 = vmatpush1.msra.mxu0 0.0
    %210 = vmatprep.subr.mxu0 0.0
    %211 = vmatpush1.msra.mxu0 0.0
    %212 = vmatprep.subr.mxu0 0.0
    %213 = vmatpush1.msra.mxu0 0.0
    %214 = vmatprep.subr.mxu0 0.0
    %215 = vmatpush1.msra.mxu0 0.0
    %216 = vmatprep.subr.mxu0 0.0
    %217 = vmatpush1.msra.mxu0 0.0
    %218 = vmatprep.mubr.f32.mxu0 0.0
    %219 = vmatmul.mubr.f32.gmra.mrb[0].mxu0 %v149
    %v220 = vpop.f32.mrb[0].mxu0
    %v221 = vadd.f32 %v140, %v220
    %v222 = vpop.f32.mrb[0].mxu0
    %v223 = vadd.f32 %v144, %v222
    %224 = vmatprep.mubr.f32.mxu0 0.0
    %225 = vmatmul.mubr.f32.gmra.mrb[0].mxu0 %v152
    %v226 = vpop.f32.mrb[0].mxu0
    %v227 = vadd.f32 %v140, %v226
    %v228 = vpop.f32.mrb[0].mxu0
    %v229 = vadd.f32 %v144, %v228
    %230 = vdwg.mxu0
    %v232 = vsel %vm147, 0.0, 0
    %234 = vmatprep.subr.mxu0 0.0
    %235 = vmatpush1.msra.mxu0 %v127
    %236 = vmatprep.subr.mxu0 0.0
    %237 = vmatpush1.msra.mxu0 %v128
    %238 = vmatprep.subr.mxu0 0.0
    %239 = vmatpush1.msra.mxu0 %v129
    %240 = vmatprep.subr.mxu0 0.0
    %241 = vmatpush1.msra.mxu0 %v130
    %242 = vmatprep.subr.mxu0 0.0
    %243 = vmatpush1.msra.mxu0 0.0
    %244 = vmatprep.subr.mxu0 0.0
    %245 = vmatpush1.msra.mxu0 0.0
    %246 = vmatprep.subr.mxu0 0.0
    %247 = vmatpush1.msra.mxu0 0.0
    %248 = vmatprep.subr.mxu0 0.0
    %249 = vmatpush1.msra.mxu0 0.0
    %250 = vmatprep.subr.mxu0 0.0
    %251 = vmatpush1.msra.mxu0 0.0
    %252 = vmatprep.subr.mxu0 0.0
    %253 = vmatpush1.msra.mxu0 0.0
    %254 = vmatprep.subr.mxu0 0.0
    %255 = vmatpush1.msra.mxu0 0.0
    %256 = vmatprep.subr.mxu0 0.0
    %257 = vmatpush1.msra.mxu0 0.0
    %258 = vmatprep.subr.mxu0 0.0
    %259 = vmatpush1.msra.mxu0 0.0
    %260 = vmatprep.subr.mxu0 0.0
    %261 = vmatpush1.msra.mxu0 0.0
    %262 = vmatprep.subr.mxu0 0.0
    %263 = vmatpush1.msra.mxu0 0.0
    %264 = vmatprep.subr.mxu0 0.0
    %265 = vmatpush1.msra.mxu0 0.0
    %266 = vmatprep.subr.mxu0 0.0
    %267 = vmatpush1.msra.mxu0 0.0
    %268 = vmatprep.subr.mxu0 0.0
    %269 = vmatpush1.msra.mxu0 0.0
    %270 = vmatprep.subr.mxu0 0.0
    %271 = vmatpush1.msra.mxu0 0.0
    %272 = vmatprep.subr.mxu0 0.0
    %273 = vmatpush1.msra.mxu0 0.0
    %274 = vmatprep.subr.mxu0 0.0
    %275 = vmatpush1.msra.mxu0 0.0
    %276 = vmatprep.subr.mxu0 0.0
    %277 = vmatpush1.msra.mxu0 0.0
    %278 = vmatprep.subr.mxu0 0.0
    %279 = vmatpush1.msra.mxu0 0.0
    %280 = vmatprep.subr.mxu0 0.0
    %281 = vmatpush1.msra.mxu0 0.0
    %282 = vmatprep.subr.mxu0 0.0
    %283 = vmatpush1.msra.mxu0 0.0
    %284 = vmatprep.subr.mxu0 0.0
    %285 = vmatpush1.msra.mxu0 0.0
    %286 = vmatprep.subr.mxu0 0.0
    %287 = vmatpush1.msra.mxu0 0.0
    %288 = vmatprep.subr.mxu0 0.0
    %289 = vmatpush1.msra.mxu0 0.0
    %290 = vmatprep.subr.mxu0 0.0
    %291 = vmatpush1.msra.mxu0 0.0
    %292 = vmatprep.subr.mxu0 0.0
    %293 = vmatpush1.msra.mxu0 0.0
    %294 = vmatprep.subr.mxu0 0.0
    %295 = vmatpush1.msra.mxu0 0.0
    %296 = vmatprep.subr.mxu0 0.0
    %297 = vmatpush1.msra.mxu0 0.0
    %298 = vmatprep.mubr.f32.mxu0 0.0
    %299 = vmatmul.mubr.f32.gmra.mrb[0].mxu0 %v232
    %v300 = vpop.f32.mrb[0].mxu0
    %v301 = vadd.f32 0.0, %v300
    %v302 = vpop.f32.mrb[0].mxu0
    %303 = vdwg.mxu0
    %v304 = vadd.f32 %v221, %v301
    %305 = vmatprep.subr.mxu0 0.0
    %306 = vmatpush1.msra.mxu0 %v131
    %307 = vmatprep.subr.mxu0 0.0
    %308 = vmatpush1.msra.mxu0 %v132
    %309 = vmatprep.subr.mxu0 0.0
    %310 = vmatpush1.msra.mxu0 %v133
    %311 = vmatprep.subr.mxu0 0.0
    %312 = vmatpush1.msra.mxu0 %v134
    %313 = vmatprep.subr.mxu0 0.0
    %314 = vmatpush1.msra.mxu0 0.0
    %315 = vmatprep.subr.mxu0 0.0
    %316 = vmatpush1.msra.mxu0 0.0
    %317 = vmatprep.subr.mxu0 0.0
    %318 = vmatpush1.msra.mxu0 0.0
    %319 = vmatprep.subr.mxu0 0.0
    %320 = vmatpush1.msra.mxu0 0.0
    %321 = vmatprep.subr.mxu0 0.0
    %322 = vmatpush1.msra.mxu0 0.0
    %323 = vmatprep.subr.mxu0 0.0
    %324 = vmatpush1.msra.mxu0 0.0
    %325 = vmatprep.subr.mxu0 0.0
    %326 = vmatpush1.msra.mxu0 0.0
    %327 = vmatprep.subr.mxu0 0.0
    %328 = vmatpush1.msra.mxu0 0.0
    %329 = vmatprep.subr.mxu0 0.0
    %330 = vmatpush1.msra.mxu0 0.0
    %331 = vmatprep.subr.mxu0 0.0
    %332 = vmatpush1.msra.mxu0 0.0
    %333 = vmatprep.subr.mxu0 0.0
    %334 = vmatpush1.msra.mxu0 0.0
    %335 = vmatprep.subr.mxu0 0.0
    %336 = vmatpush1.msra.mxu0 0.0
    %337 = vmatprep.subr.mxu0 0.0
    %338 = vmatpush1.msra.mxu0 0.0
    %339 = vmatprep.subr.mxu0 0.0
    %340 = vmatpush1.msra.mxu0 0.0
    %341 = vmatprep.subr.mxu0 0.0
    %342 = vmatpush1.msra.mxu0 0.0
    %343 = vmatprep.subr.mxu0 0.0
    %344 = vmatpush1.msra.mxu0 0.0
    %345 = vmatprep.subr.mxu0 0.0
    %346 = vmatpush1.msra.mxu0 0.0
    %347 = vmatprep.subr.mxu0 0.0
    %348 = vmatpush1.msra.mxu0 0.0
    %349 = vmatprep.subr.mxu0 0.0
    %350 = vmatpush1.msra.mxu0 0.0
    %351 = vmatprep.subr.mxu0 0.0
    %352 = vmatpush1.msra.mxu0 0.0
    %353 = vmatprep.subr.mxu0 0.0
    %354 = vmatpush1.msra.mxu0 0.0
    %355 = vmatprep.subr.mxu0 0.0
    %356 = vmatpush1.msra.mxu0 0.0
    %357 = vmatprep.subr.mxu0 0.0
    %358 = vmatpush1.msra.mxu0 0.0
    %359 = vmatprep.subr.mxu0 0.0
    %360 = vmatpush1.msra.mxu0 0.0
    %361 = vmatprep.subr.mxu0 0.0
    %362 = vmatpush1.msra.mxu0 0.0
    %363 = vmatprep.subr.mxu0 0.0
    %364 = vmatpush1.msra.mxu0 0.0
    %365 = vmatprep.subr.mxu0 0.0
    %366 = vmatpush1.msra.mxu0 0.0
    %367 = vmatprep.subr.mxu0 0.0
    %368 = vmatpush1.msra.mxu0 0.0
    %369 = vmatprep.mubr.f32.mxu0 0.0
    %370 = vmatmul.mubr.f32.gmra.mrb[0].mxu0 %v232
    %v371 = vpop.f32.mrb[0].mxu0
    %v372 = vadd.f32 0.0, %v371
    %v373 = vpop.f32.mrb[0].mxu0
    %374 = vdwg.mxu0
    %v376 = vrot.slane %v372, 2
    %v378 = vadd.f32 %v229, %v376
    %v379 = vxor.u32 %v304, 2147483648
    %v380 = vmul.f32 %v379, 1.442695
    %v381 = vpow.pop %v380
    %v382 = vadd.f32 %v381, 1.0
    %v383 = vrcp.pop %v382
    %v384 = vmul.f32 1.0, %v383
    %v385 = vtanh.pop %v304
    %v386 = vmul.f32 %v384, 0.0
    %388 = vrot.lane.b32.xlu0 %v385, 64
    %v389 = vpop.permute.xlu0 %388
    %v391 = vmul.f32 %v384, %v389
    %393 = vrot.lane.b32.xlu0 %v391, 32
    %v394 = vpop.permute.xlu0 %393
    %v396 = vadd.f32 %v386, %v394
    %v397 = vtanh.pop %v396
    %399 = vrot.lane.b32.xlu0 %v397, 64
    %v400 = vpop.permute.xlu0 %399
    %v402 = vmul.f32 %v384, %v400
    %v403 = vxor.u32 %v378, 2147483648
    %v404 = vmul.f32 %v403, 1.442695
    %v405 = vpow.pop %v404
    %v406 = vadd.f32 %v405, 1.0
    %v407 = vrcp.pop %v406
    %v408 = vmul.f32 1.0, %v407
    %v409 = vtanh.pop %v378
    %v410 = vmul.f32 %v408, 0.0
    %412 = vrot.lane.b32.xlu0 %v409, 64
    %v413 = vpop.permute.xlu0 %412
    %v415 = vmul.f32 %v408, %v413
    %417 = vrot.lane.b32.xlu0 %v415, 32
    %v418 = vpop.permute.xlu0 %417
    %v420 = vadd.f32 %v410, %v418
    %v421 = vtanh.pop %v420
    %423 = vrot.lane.b32.xlu0 %v421, 64
    %v424 = vpop.permute.xlu0 %423
    %v426 = vmul.f32 %v408, %v424
    %428 = vrot.lane.b32.xlu0 %v402, 32
    %v429 = vpop.permute.xlu0 %428
    %v430 = vsel %vm147, %v429, 0
    %432 = vmatprep.subr.mxu0 0.0
    %433 = vmatpush1.msra.mxu0 %v127
    %434 = vmatprep.subr.mxu0 0.0
    %435 = vmatpush1.msra.mxu0 %v128
    %436 = vmatprep.subr.mxu0 0.0
    %437 = vmatpush1.msra.mxu0 %v129
    %438 = vmatprep.subr.mxu0 0.0
    %439 = vmatpush1.msra.mxu0 %v130
    %440 = vmatprep.subr.mxu0 0.0
    %441 = vmatpush1.msra.mxu0 0.0
    %442 = vmatprep.subr.mxu0 0.0
    %443 = vmatpush1.msra.mxu0 0.0
    %444 = vmatprep.subr.mxu0 0.0
    %445 = vmatpush1.msra.mxu0 0.0
    %446 = vmatprep.subr.mxu0 0.0
    %447 = vmatpush1.msra.mxu0 0.0
    %448 = vmatprep.subr.mxu0 0.0
    %449 = vmatpush1.msra.mxu0 0.0
    %450 = vmatprep.subr.mxu0 0.0
    %451 = vmatpush1.msra.mxu0 0.0
    %452 = vmatprep.subr.mxu0 0.0
    %453 = vmatpush1.msra.mxu0 0.0
    %454 = vmatprep.subr.mxu0 0.0
    %455 = vmatpush1.msra.mxu0 0.0
    %456 = vmatprep.subr.mxu0 0.0
    %457 = vmatpush1.msra.mxu0 0.0
    %458 = vmatprep.subr.mxu0 0.0
    %459 = vmatpush1.msra.mxu0 0.0
    %460 = vmatprep.subr.mxu0 0.0
    %461 = vmatpush1.msra.mxu0 0.0
    %462 = vmatprep.subr.mxu0 0.0
    %463 = vmatpush1.msra.mxu0 0.0
    %464 = vmatprep.subr.mxu0 0.0
    %465 = vmatpush1.msra.mxu0 0.0
    %466 = vmatprep.subr.mxu0 0.0
    %467 = vmatpush1.msra.mxu0 0.0
    %468 = vmatprep.subr.mxu0 0.0
    %469 = vmatpush1.msra.mxu0 0.0
    %470 = vmatprep.subr.mxu0 0.0
    %471 = vmatpush1.msra.mxu0 0.0
    %472 = vmatprep.subr.mxu0 0.0
    %473 = vmatpush1.msra.mxu0 0.0
    %474 = vmatprep.subr.mxu0 0.0
    %475 = vmatpush1.msra.mxu0 0.0
    %476 = vmatprep.subr.mxu0 0.0
    %477 = vmatpush1.msra.mxu0 0.0
    %478 = vmatprep.subr.mxu0 0.0
    %479 = vmatpush1.msra.mxu0 0.0
    %480 = vmatprep.subr.mxu0 0.0
    %481 = vmatpush1.msra.mxu0 0.0
    %482 = vmatprep.subr.mxu0 0.0
    %483 = vmatpush1.msra.mxu0 0.0
    %484 = vmatprep.subr.mxu0 0.0
    %485 = vmatpush1.msra.mxu0 0.0
    %486 = vmatprep.subr.mxu0 0.0
    %487 = vmatpush1.msra.mxu0 0.0
    %488 = vmatprep.subr.mxu0 0.0
    %489 = vmatpush1.msra.mxu0 0.0
    %490 = vmatprep.subr.mxu0 0.0
    %491 = vmatpush1.msra.mxu0 0.0
    %492 = vmatprep.subr.mxu0 0.0
    %493 = vmatpush1.msra.mxu0 0.0
    %494 = vmatprep.subr.mxu0 0.0
    %495 = vmatpush1.msra.mxu0 0.0
    %496 = vmatprep.mubr.f32.mxu0 0.0
    %497 = vmatmul.mubr.f32.gmra.mrb[0].mxu0 %v430
    %v498 = vpop.f32.mrb[0].mxu0
    %v499 = vadd.f32 0.0, %v498
    %v500 = vpop.f32.mrb[0].mxu0
    %501 = vdwg.mxu0
    %v503 = vrot.slane %v499, 6
    %v505 = vadd.f32 %v221, %v503
    %v507 = vrot.slane %v426, 6
    %508 = vrot.lane.b32.xlu0 %v507, 32
    %v509 = vpop.permute.xlu0 %508
    %v510 = vsel %vm147, %v509, 0
    %512 = vmatprep.subr.mxu0 0.0
    %513 = vmatpush1.msra.mxu0 %v131
    %514 = vmatprep.subr.mxu0 0.0
    %515 = vmatpush1.msra.mxu0 %v132
    %516 = vmatprep.subr.mxu0 0.0
    %517 = vmatpush1.msra.mxu0 %v133
    %518 = vmatprep.subr.mxu0 0.0
    %519 = vmatpush1.msra.mxu0 %v134
    %520 = vmatprep.subr.mxu0 0.0
    %521 = vmatpush1.msra.mxu0 0.0
    %522 = vmatprep.subr.mxu0 0.0
    %523 = vmatpush1.msra.mxu0 0.0
    %524 = vmatprep.subr.mxu0 0.0
    %525 = vmatpush1.msra.mxu0 0.0
    %526 = vmatprep.subr.mxu0 0.0
    %527 = vmatpush1.msra.mxu0 0.0
    %528 = vmatprep.subr.mxu0 0.0
    %529 = vmatpush1.msra.mxu0 0.0
    %530 = vmatprep.subr.mxu0 0.0
    %531 = vmatpush1.msra.mxu0 0.0
    %532 = vmatprep.subr.mxu0 0.0
    %533 = vmatpush1.msra.mxu0 0.0
    %534 = vmatprep.subr.mxu0 0.0
    %535 = vmatpush1.msra.mxu0 0.0
    %536 = vmatprep.subr.mxu0 0.0
    %537 = vmatpush1.msra.mxu0 0.0
    %538 = vmatprep.subr.mxu0 0.0
    %539 = vmatpush1.msra.mxu0 0.0
    %540 = vmatprep.subr.mxu0 0.0
    %541 = vmatpush1.msra.mxu0 0.0
    %542 = vmatprep.subr.mxu0 0.0
    %543 = vmatpush1.msra.mxu0 0.0
    %544 = vmatprep.subr.mxu0 0.0
    %545 = vmatpush1.msra.mxu0 0.0
    %546 = vmatprep.subr.mxu0 0.0
    %547 = vmatpush1.msra.mxu0 0.0
    %548 = vmatprep.subr.mxu0 0.0
    %549 = vmatpush1.msra.mxu0 0.0
    %550 = vmatprep.subr.mxu0 0.0
    %551 = vmatpush1.msra.mxu0 0.0
    %552 = vmatprep.subr.mxu0 0.0
    %553 = vmatpush1.msra.mxu0 0.0
    %554 = vmatprep.subr.mxu0 0.0
    %555 = vmatpush1.msra.mxu0 0.0
    %556 = vmatprep.subr.mxu0 0.0
    %557 = vmatpush1.msra.mxu0 0.0
    %558 = vmatprep.subr.mxu0 0.0
    %559 = vmatpush1.msra.mxu0 0.0
    %560 = vmatprep.subr.mxu0 0.0
    %561 = vmatpush1.msra.mxu0 0.0
    %562 = vmatprep.subr.mxu0 0.0
    %563 = vmatpush1.msra.mxu0 0.0
    %564 = vmatprep.subr.mxu0 0.0
    %565 = vmatpush1.msra.mxu0 0.0
    %566 = vmatprep.subr.mxu0 0.0
    %567 = vmatpush1.msra.mxu0 0.0
    %568 = vmatprep.subr.mxu0 0.0
    %569 = vmatpush1.msra.mxu0 0.0
    %570 = vmatprep.subr.mxu0 0.0
    %571 = vmatpush1.msra.mxu0 0.0
    %572 = vmatprep.subr.mxu0 0.0
    %573 = vmatpush1.msra.mxu0 0.0
    %574 = vmatprep.subr.mxu0 0.0
    %575 = vmatpush1.msra.mxu0 0.0
    %576 = vmatprep.mubr.f32.mxu0 0.0
    %577 = vmatmul.mubr.f32.gmra.mrb[0].mxu0 %v510
    %v578 = vpop.f32.mrb[0].mxu0
    %v579 = vadd.f32 0.0, %v578
    %v580 = vpop.f32.mrb[0].mxu0
    %581 = vdwg.mxu0
    %v583 = vrot.slane %v579, 4
    %v585 = vadd.f32 %v229, %v583
    %v586 = vxor.u32 %v505, 2147483648
    %v587 = vmul.f32 %v586, 1.442695
    %v588 = vpow.pop %v587
    %v589 = vadd.f32 %v588, 1.0
    %v590 = vrcp.pop %v589
    %v591 = vmul.f32 1.0, %v590
    %v592 = vtanh.pop %v505
    %v594 = vrot.slane %v396, 6
    %v596 = vmul.f32 %v591, %v594
    %598 = vrot.lane.b32.xlu0 %v592, 64
    %v599 = vpop.permute.xlu0 %598
    %v601 = vmul.f32 %v591, %v599
    %603 = vrot.lane.b32.xlu0 %v601, 32
    %v604 = vpop.permute.xlu0 %603
    %v606 = vadd.f32 %v596, %v604
    %v607 = vtanh.pop %v606
    %609 = vrot.lane.b32.xlu0 %v607, 64
    %v610 = vpop.permute.xlu0 %609
    %v612 = vmul.f32 %v591, %v610
    %v613 = vxor.u32 %v585, 2147483648
    %v614 = vmul.f32 %v613, 1.442695
    %v615 = vpow.pop %v614
    %v616 = vadd.f32 %v615, 1.0
    %v617 = vrcp.pop %v616
    %v618 = vmul.f32 1.0, %v617
    %v619 = vtanh.pop %v585
    %v621 = vrot.slane %v420, 2
    %v623 = vmul.f32 %v618, %v621
    %625 = vrot.lane.b32.xlu0 %v619, 64
    %v626 = vpop.permute.xlu0 %625
    %v628 = vmul.f32 %v618, %v626
    %630 = vrot.lane.b32.xlu0 %v628, 32
    %v631 = vpop.permute.xlu0 %630
    %v633 = vadd.f32 %v623, %v631
    %v634 = vtanh.pop %v633
    %636 = vrot.lane.b32.xlu0 %v634, 64
    %v637 = vpop.permute.xlu0 %636
    %v639 = vmul.f32 %v618, %v637
    %v641 = vrot.slane %v612, 2
    %642 = vrot.lane.b32.xlu0 %v641, 32
    %v643 = vpop.permute.xlu0 %642
    %v644 = vsel %vm147, %v643, 0
    %646 = vmatprep.subr.mxu0 0.0
    %647 = vmatpush1.msra.mxu0 %v127
    %648 = vmatprep.subr.mxu0 0.0
    %649 = vmatpush1.msra.mxu0 %v128
    %650 = vmatprep.subr.mxu0 0.0
    %651 = vmatpush1.msra.mxu0 %v129
    %652 = vmatprep.subr.mxu0 0.0
    %653 = vmatpush1.msra.mxu0 %v130
    %654 = vmatprep.subr.mxu0 0.0
    %655 = vmatpush1.msra.mxu0 0.0
    %656 = vmatprep.subr.mxu0 0.0
    %657 = vmatpush1.msra.mxu0 0.0
    %658 = vmatprep.subr.mxu0 0.0
    %659 = vmatpush1.msra.mxu0 0.0
    %660 = vmatprep.subr.mxu0 0.0
    %661 = vmatpush1.msra.mxu0 0.0
    %662 = vmatprep.subr.mxu0 0.0
    %663 = vmatpush1.msra.mxu0 0.0
    %664 = vmatprep.subr.mxu0 0.0
    %665 = vmatpush1.msra.mxu0 0.0
    %666 = vmatprep.subr.mxu0 0.0
    %667 = vmatpush1.msra.mxu0 0.0
    %668 = vmatprep.subr.mxu0 0.0
    %669 = vmatpush1.msra.mxu0 0.0
    %670 = vmatprep.subr.mxu0 0.0
    %671 = vmatpush1.msra.mxu0 0.0
    %672 = vmatprep.subr.mxu0 0.0
    %673 = vmatpush1.msra.mxu0 0.0
    %674 = vmatprep.subr.mxu0 0.0
    %675 = vmatpush1.msra.mxu0 0.0
    %676 = vmatprep.subr.mxu0 0.0
    %677 = vmatpush1.msra.mxu0 0.0
    %678 = vmatprep.subr.mxu0 0.0
    %679 = vmatpush1.msra.mxu0 0.0
    %680 = vmatprep.subr.mxu0 0.0
    %681 = vmatpush1.msra.mxu0 0.0
    %682 = vmatprep.subr.mxu0 0.0
    %683 = vmatpush1.msra.mxu0 0.0
    %684 = vmatprep.subr.mxu0 0.0
    %685 = vmatpush1.msra.mxu0 0.0
    %686 = vmatprep.subr.mxu0 0.0
    %687 = vmatpush1.msra.mxu0 0.0
    %688 = vmatprep.subr.mxu0 0.0
    %689 = vmatpush1.msra.mxu0 0.0
    %690 = vmatprep.subr.mxu0 0.0
    %691 = vmatpush1.msra.mxu0 0.0
    %692 = vmatprep.subr.mxu0 0.0
    %693 = vmatpush1.msra.mxu0 0.0
    %694 = vmatprep.subr.mxu0 0.0
    %695 = vmatpush1.msra.mxu0 0.0
    %696 = vmatprep.subr.mxu0 0.0
    %697 = vmatpush1.msra.mxu0 0.0
    %698 = vmatprep.subr.mxu0 0.0
    %699 = vmatpush1.msra.mxu0 0.0
    %700 = vmatprep.subr.mxu0 0.0
    %701 = vmatpush1.msra.mxu0 0.0
    %702 = vmatprep.subr.mxu0 0.0
    %703 = vmatpush1.msra.mxu0 0.0
    %704 = vmatprep.subr.mxu0 0.0
    %705 = vmatpush1.msra.mxu0 0.0
    %706 = vmatprep.subr.mxu0 0.0
    %707 = vmatpush1.msra.mxu0 0.0
    %708 = vmatprep.subr.mxu0 0.0
    %709 = vmatpush1.msra.mxu0 0.0
    %710 = vmatprep.mubr.f32.mxu0 0.0
    %711 = vmatmul.mubr.f32.gmra.mrb[0].mxu0 %v644
    %v712 = vpop.f32.mrb[0].mxu0
    %v713 = vadd.f32 0.0, %v712
    %v714 = vpop.f32.mrb[0].mxu0
    %715 = vdwg.mxu0
    %v717 = vrot.slane %v713, 4
    %v719 = vadd.f32 %v221, %v717
    %v721 = vrot.slane %v639, 4
    %722 = vrot.lane.b32.xlu0 %v721, 32
    %v723 = vpop.permute.xlu0 %722
    %v724 = vsel %vm147, %v723, 0
    %726 = vmatprep.subr.mxu0 0.0
    %727 = vmatpush1.msra.mxu0 %v131
    %728 = vmatprep.subr.mxu0 0.0
    %729 = vmatpush1.msra.mxu0 %v132
    %730 = vmatprep.subr.mxu0 0.0
    %731 = vmatpush1.msra.mxu0 %v133
    %732 = vmatprep.subr.mxu0 0.0
    %733 = vmatpush1.msra.mxu0 %v134
    %734 = vmatprep.subr.mxu0 0.0
    %735 = vmatpush1.msra.mxu0 0.0
    %736 = vmatprep.subr.mxu0 0.0
    %737 = vmatpush1.msra.mxu0 0.0
    %738 = vmatprep.subr.mxu0 0.0
    %739 = vmatpush1.msra.mxu0 0.0
    %740 = vmatprep.subr.mxu0 0.0
    %741 = vmatpush1.msra.mxu0 0.0
    %742 = vmatprep.subr.mxu0 0.0
    %743 = vmatpush1.msra.mxu0 0.0
    %744 = vmatprep.subr.mxu0 0.0
    %745 = vmatpush1.msra.mxu0 0.0
    %746 = vmatprep.subr.mxu0 0.0
    %747 = vmatpush1.msra.mxu0 0.0
    %748 = vmatprep.subr.mxu0 0.0
    %749 = vmatpush1.msra.mxu0 0.0
    %750 = vmatprep.subr.mxu0 0.0
    %751 = vmatpush1.msra.mxu0 0.0
    %752 = vmatprep.subr.mxu0 0.0
    %753 = vmatpush1.msra.mxu0 0.0
    %754 = vmatprep.subr.mxu0 0.0
    %755 = vmatpush1.msra.mxu0 0.0
    %756 = vmatprep.subr.mxu0 0.0
    %757 = vmatpush1.msra.mxu0 0.0
    %758 = vmatprep.subr.mxu0 0.0
    %759 = vmatpush1.msra.mxu0 0.0
    %760 = vmatprep.subr.mxu0 0.0
    %761 = vmatpush1.msra.mxu0 0.0
    %762 = vmatprep.subr.mxu0 0.0
    %763 = vmatpush1.msra.mxu0 0.0
    %764 = vmatprep.subr.mxu0 0.0
    %765 = vmatpush1.msra.mxu0 0.0
    %766 = vmatprep.subr.mxu0 0.0
    %767 = vmatpush1.msra.mxu0 0.0
    %768 = vmatprep.subr.mxu0 0.0
    %769 = vmatpush1.msra.mxu0 0.0
    %770 = vmatprep.subr.mxu0 0.0
    %771 = vmatpush1.msra.mxu0 0.0
    %772 = vmatprep.subr.mxu0 0.0
    %773 = vmatpush1.msra.mxu0 0.0
    %774 = vmatprep.subr.mxu0 0.0
    %775 = vmatpush1.msra.mxu0 0.0
    %776 = vmatprep.subr.mxu0 0.0
    %777 = vmatpush1.msra.mxu0 0.0
    %778 = vmatprep.subr.mxu0 0.0
    %779 = vmatpush1.msra.mxu0 0.0
    %780 = vmatprep.subr.mxu0 0.0
    %781 = vmatpush1.msra.mxu0 0.0
    %782 = vmatprep.subr.mxu0 0.0
    %783 = vmatpush1.msra.mxu0 0.0
    %784 = vmatprep.subr.mxu0 0.0
    %785 = vmatpush1.msra.mxu0 0.0
    %786 = vmatprep.subr.mxu0 0.0
    %787 = vmatpush1.msra.mxu0 0.0
    %788 = vmatprep.subr.mxu0 0.0
    %789 = vmatpush1.msra.mxu0 0.0
    %790 = vmatprep.mubr.f32.mxu0 0.0
    %791 = vmatmul.mubr.f32.gmra.mrb[0].mxu0 %v724
    %v792 = vpop.f32.mrb[0].mxu0
    %v793 = vadd.f32 0.0, %v792
    %v794 = vpop.f32.mrb[0].mxu0
    %795 = vdwg.mxu0
    %v797 = vrot.slane %v793, 6
    %v799 = vadd.f32 %v229, %v797
    %v800 = vxor.u32 %v719, 2147483648
    %v801 = vmul.f32 %v800, 1.442695
    %v802 = vpow.pop %v801
    %v803 = vadd.f32 %v802, 1.0
    %v804 = vrcp.pop %v803
    %v805 = vmul.f32 1.0, %v804
    %v806 = vtanh.pop %v719
    %v808 = vrot.slane %v606, 6
    %v810 = vmul.f32 %v805, %v808
    %812 = vrot.lane.b32.xlu0 %v806, 64
    %v813 = vpop.permute.xlu0 %812
    %v815 = vmul.f32 %v805, %v813
    %817 = vrot.lane.b32.xlu0 %v815, 32
    %v818 = vpop.permute.xlu0 %817
    %v820 = vadd.f32 %v810, %v818
    %v821 = vtanh.pop %v820
    %823 = vrot.lane.b32.xlu0 %v821, 64
    %v824 = vpop.permute.xlu0 %823
    %v826 = vmul.f32 %v805, %v824
    %v827 = vxor.u32 %v799, 2147483648
    %v828 = vmul.f32 %v827, 1.442695
    %v829 = vpow.pop %v828
    %v830 = vadd.f32 %v829, 1.0
    %v831 = vrcp.pop %v830
    %v832 = vmul.f32 1.0, %v831
    %v833 = vtanh.pop %v799
    %v835 = vrot.slane %v633, 2
    %v837 = vmul.f32 %v832, %v835
    %839 = vrot.lane.b32.xlu0 %v833, 64
    %v840 = vpop.permute.xlu0 %839
    %v842 = vmul.f32 %v832, %v840
    %844 = vrot.lane.b32.xlu0 %v842, 32
    %v845 = vpop.permute.xlu0 %844
    %v847 = vadd.f32 %v837, %v845
    %v848 = vtanh.pop %v847
    %850 = vrot.lane.b32.xlu0 %v848, 64
    %v851 = vpop.permute.xlu0 %850
    %v853 = vmul.f32 %v832, %v851
    %v855 = vrot.slane %v826, 4
    %856 = vrot.lane.b32.xlu0 %v855, 32
    %v857 = vpop.permute.xlu0 %856
    %v858 = vsel %vm147, %v857, 0
    %860 = vmatprep.subr.mxu0 0.0
    %861 = vmatpush1.msra.mxu0 %v127
    %862 = vmatprep.subr.mxu0 0.0
    %863 = vmatpush1.msra.mxu0 %v128
    %864 = vmatprep.subr.mxu0 0.0
    %865 = vmatpush1.msra.mxu0 %v129
    %866 = vmatprep.subr.mxu0 0.0
    %867 = vmatpush1.msra.mxu0 %v130
    %868 = vmatprep.subr.mxu0 0.0
    %869 = vmatpush1.msra.mxu0 0.0
    %870 = vmatprep.subr.mxu0 0.0
    %871 = vmatpush1.msra.mxu0 0.0
    %872 = vmatprep.subr.mxu0 0.0
    %873 = vmatpush1.msra.mxu0 0.0
    %874 = vmatprep.subr.mxu0 0.0
    %875 = vmatpush1.msra.mxu0 0.0
    %876 = vmatprep.subr.mxu0 0.0
    %877 = vmatpush1.msra.mxu0 0.0
    %878 = vmatprep.subr.mxu0 0.0
    %879 = vmatpush1.msra.mxu0 0.0
    %880 = vmatprep.subr.mxu0 0.0
    %881 = vmatpush1.msra.mxu0 0.0
    %882 = vmatprep.subr.mxu0 0.0
    %883 = vmatpush1.msra.mxu0 0.0
    %884 = vmatprep.subr.mxu0 0.0
    %885 = vmatpush1.msra.mxu0 0.0
    %886 = vmatprep.subr.mxu0 0.0
    %887 = vmatpush1.msra.mxu0 0.0
    %888 = vmatprep.subr.mxu0 0.0
    %889 = vmatpush1.msra.mxu0 0.0
    %890 = vmatprep.subr.mxu0 0.0
    %891 = vmatpush1.msra.mxu0 0.0
    %892 = vmatprep.subr.mxu0 0.0
    %893 = vmatpush1.msra.mxu0 0.0
    %894 = vmatprep.subr.mxu0 0.0
    %895 = vmatpush1.msra.mxu0 0.0
    %896 = vmatprep.subr.mxu0 0.0
    %897 = vmatpush1.msra.mxu0 0.0
    %898 = vmatprep.subr.mxu0 0.0
    %899 = vmatpush1.msra.mxu0 0.0
    %900 = vmatprep.subr.mxu0 0.0
    %901 = vmatpush1.msra.mxu0 0.0
    %902 = vmatprep.subr.mxu0 0.0
    %903 = vmatpush1.msra.mxu0 0.0
    %904 = vmatprep.subr.mxu0 0.0
    %905 = vmatpush1.msra.mxu0 0.0
    %906 = vmatprep.subr.mxu0 0.0
    %907 = vmatpush1.msra.mxu0 0.0
    %908 = vmatprep.subr.mxu0 0.0
    %909 = vmatpush1.msra.mxu0 0.0
    %910 = vmatprep.subr.mxu0 0.0
    %911 = vmatpush1.msra.mxu0 0.0
    %912 = vmatprep.subr.mxu0 0.0
    %913 = vmatpush1.msra.mxu0 0.0
    %914 = vmatprep.subr.mxu0 0.0
    %915 = vmatpush1.msra.mxu0 0.0
    %916 = vmatprep.subr.mxu0 0.0
    %917 = vmatpush1.msra.mxu0 0.0
    %918 = vmatprep.subr.mxu0 0.0
    %919 = vmatpush1.msra.mxu0 0.0
    %920 = vmatprep.subr.mxu0 0.0
    %921 = vmatpush1.msra.mxu0 0.0
    %922 = vmatprep.subr.mxu0 0.0
    %923 = vmatpush1.msra.mxu0 0.0
    %924 = vmatprep.mubr.f32.mxu0 0.0
    %925 = vmatmul.mubr.f32.gmra.mrb[0].mxu0 %v858
    %v926 = vpop.f32.mrb[0].mxu0
    %v927 = vadd.f32 0.0, %v926
    %v928 = vpop.f32.mrb[0].mxu0
    %929 = vdwg.mxu0
    %v931 = vrot.slane %v927, 2
    %v933 = vadd.f32 %v221, %v931
    %v935 = vrot.slane %v853, 2
    %936 = vrot.lane.b32.xlu0 %v935, 32
    %v937 = vpop.permute.xlu0 %936
    %v938 = vsel %vm147, %v937, 0
    %940 = vmatprep.subr.mxu0 0.0
    %941 = vmatpush1.msra.mxu0 %v131
    %942 = vmatprep.subr.mxu0 0.0
    %943 = vmatpush1.msra.mxu0 %v132
    %944 = vmatprep.subr.mxu0 0.0
    %945 = vmatpush1.msra.mxu0 %v133
    %946 = vmatprep.subr.mxu0 0.0
    %947 = vmatpush1.msra.mxu0 %v134
    %948 = vmatprep.subr.mxu0 0.0
    %949 = vmatpush1.msra.mxu0 0.0
    %950 = vmatprep.subr.mxu0 0.0
    %951 = vmatpush1.msra.mxu0 0.0
    %952 = vmatprep.subr.mxu0 0.0
    %953 = vmatpush1.msra.mxu0 0.0
    %954 = vmatprep.subr.mxu0 0.0
    %955 = vmatpush1.msra.mxu0 0.0
    %956 = vmatprep.subr.mxu0 0.0
    %957 = vmatpush1.msra.mxu0 0.0
    %958 = vmatprep.subr.mxu0 0.0
    %959 = vmatpush1.msra.mxu0 0.0
    %960 = vmatprep.subr.mxu0 0.0
    %961 = vmatpush1.msra.mxu0 0.0
    %962 = vmatprep.subr.mxu0 0.0
    %963 = vmatpush1.msra.mxu0 0.0
    %964 = vmatprep.subr.mxu0 0.0
    %965 = vmatpush1.msra.mxu0 0.0
    %966 = vmatprep.subr.mxu0 0.0
    %967 = vmatpush1.msra.mxu0 0.0
    %968 = vmatprep.subr.mxu0 0.0
    %969 = vmatpush1.msra.mxu0 0.0
    %970 = vmatprep.subr.mxu0 0.0
    %971 = vmatpush1.msra.mxu0 0.0
    %972 = vmatprep.subr.mxu0 0.0
    %973 = vmatpush1.msra.mxu0 0.0
    %974 = vmatprep.subr.mxu0 0.0
    %975 = vmatpush1.msra.mxu0 0.0
    %976 = vmatprep.subr.mxu0 0.0
    %977 = vmatpush1.msra.mxu0 0.0
    %978 = vmatprep.subr.mxu0 0.0
    %979 = vmatpush1.msra.mxu0 0.0
    %980 = vmatprep.subr.mxu0 0.0
    %981 = vmatpush1.msra.mxu0 0.0
    %982 = vmatprep.subr.mxu0 0.0
    %983 = vmatpush1.msra.mxu0 0.0
    %984 = vmatprep.subr.mxu0 0.0
    %985 = vmatpush1.msra.mxu0 0.0
    %986 = vmatprep.subr.mxu0 0.0
    %987 = vmatpush1.msra.mxu0 0.0
    %988 = vmatprep.subr.mxu0 0.0
    %989 = vmatpush1.msra.mxu0 0.0
    %990 = vmatprep.subr.mxu0 0.0
    %991 = vmatpush1.msra.mxu0 0.0
    %992 = vmatprep.subr.mxu0 0.0
    %993 = vmatpush1.msra.mxu0 0.0
    %994 = vmatprep.subr.mxu0 0.0
    %995 = vmatpush1.msra.mxu0 0.0
    %996 = vmatprep.subr.mxu0 0.0
    %997 = vmatpush1.msra.mxu0 0.0
    %998 = vmatprep.subr.mxu0 0.0
    %999 = vmatpush1.msra.mxu0 0.0
    %1000 = vmatprep.subr.mxu0 0.0
    %1001 = vmatpush1.msra.mxu0 0.0
    %1002 = vmatprep.subr.mxu0 0.0
    %1003 = vmatpush1.msra.mxu0 0.0
    %1004 = vmatprep.mubr.f32.mxu0 0.0
    %1005 = vmatmul.mubr.f32.gmra.mrb[0].mxu0 %v938
    %v1006 = vpop.f32.mrb[0].mxu0
    %v1007 = vadd.f32 0.0, %v1006
    %v1008 = vpop.f32.mrb[0].mxu0
    %1009 = vdwg.mxu0
    %v1010 = vadd.f32 %v229, %v1007
    %v1011 = vxor.u32 %v933, 2147483648
    %v1012 = vmul.f32 %v1011, 1.442695
    %v1013 = vpow.pop %v1012
    %v1014 = vadd.f32 %v1013, 1.0
    %v1015 = vrcp.pop %v1014
    %v1016 = vmul.f32 1.0, %v1015
    %v1017 = vtanh.pop %v933
    %v1019 = vrot.slane %v820, 6
    %v1021 = vmul.f32 %v1016, %v1019
    %1023 = vrot.lane.b32.xlu0 %v1017, 64
    %v1024 = vpop.permute.xlu0 %1023
    %v1026 = vmul.f32 %v1016, %v1024
    %1028 = vrot.lane.b32.xlu0 %v1026, 32
    %v1029 = vpop.permute.xlu0 %1028
    %v1031 = vadd.f32 %v1021, %v1029
    %v1032 = vtanh.pop %v1031
    %1034 = vrot.lane.b32.xlu0 %v1032, 64
    %v1035 = vpop.permute.xlu0 %1034
    %v1037 = vmul.f32 %v1016, %v1035
    %v1038 = vxor.u32 %v1010, 2147483648
    %v1039 = vmul.f32 %v1038, 1.442695
    %v1040 = vpow.pop %v1039
    %v1041 = vadd.f32 %v1040, 1.0
    %v1042 = vrcp.pop %v1041
    %v1043 = vmul.f32 1.0, %v1042
    %v1044 = vtanh.pop %v1010
    %v1046 = vrot.slane %v847, 2
    %v1048 = vmul.f32 %v1043, %v1046
    %1050 = vrot.lane.b32.xlu0 %v1044, 64
    %v1051 = vpop.permute.xlu0 %1050
    %v1053 = vmul.f32 %v1043, %v1051
    %1055 = vrot.lane.b32.xlu0 %v1053, 32
    %v1056 = vpop.permute.xlu0 %1055
    %v1058 = vadd.f32 %v1048, %v1056
    %v1059 = vtanh.pop %v1058
    %1061 = vrot.lane.b32.xlu0 %v1059, 64
    %v1062 = vpop.permute.xlu0 %1061
    %v1064 = vmul.f32 %v1043, %v1062
    %v1066 = vrot.slane %v1037, 6
    %1067 = vrot.lane.b32.xlu0 %v1066, 32
    %v1068 = vpop.permute.xlu0 %1067
    %v1069 = vsel %vm147, %v1068, 0
    %1071 = vmatprep.subr.mxu0 0.0
    %1072 = vmatpush1.msra.mxu0 %v127
    %1073 = vmatprep.subr.mxu0 0.0
    %1074 = vmatpush1.msra.mxu0 %v128
    %1075 = vmatprep.subr.mxu0 0.0
    %1076 = vmatpush1.msra.mxu0 %v129
    %1077 = vmatprep.subr.mxu0 0.0
    %1078 = vmatpush1.msra.mxu0 %v130
    %1079 = vmatprep.subr.mxu0 0.0
    %1080 = vmatpush1.msra.mxu0 0.0
    %1081 = vmatprep.subr.mxu0 0.0
    %1082 = vmatpush1.msra.mxu0 0.0
    %1083 = vmatprep.subr.mxu0 0.0
    %1084 = vmatpush1.msra.mxu0 0.0
    %1085 = vmatprep.subr.mxu0 0.0
    %1086 = vmatpush1.msra.mxu0 0.0
    %1087 = vmatprep.subr.mxu0 0.0
    %1088 = vmatpush1.msra.mxu0 0.0
    %1089 = vmatprep.subr.mxu0 0.0
    %1090 = vmatpush1.msra.mxu0 0.0
    %1091 = vmatprep.subr.mxu0 0.0
    %1092 = vmatpush1.msra.mxu0 0.0
    %1093 = vmatprep.subr.mxu0 0.0
    %1094 = vmatpush1.msra.mxu0 0.0
    %1095 = vmatprep.subr.mxu0 0.0
    %1096 = vmatpush1.msra.mxu0 0.0
    %1097 = vmatprep.subr.mxu0 0.0
    %1098 = vmatpush1.msra.mxu0 0.0
    %1099 = vmatprep.subr.mxu0 0.0
    %1100 = vmatpush1.msra.mxu0 0.0
    %1101 = vmatprep.subr.mxu0 0.0
    %1102 = vmatpush1.msra.mxu0 0.0
    %1103 = vmatprep.subr.mxu0 0.0
    %1104 = vmatpush1.msra.mxu0 0.0
    %1105 = vmatprep.subr.mxu0 0.0
    %1106 = vmatpush1.msra.mxu0 0.0
    %1107 = vmatprep.subr.mxu0 0.0
    %1108 = vmatpush1.msra.mxu0 0.0
    %1109 = vmatprep.subr.mxu0 0.0
    %1110 = vmatpush1.msra.mxu0 0.0
    %1111 = vmatprep.subr.mxu0 0.0
    %1112 = vmatpush1.msra.mxu0 0.0
    %1113 = vmatprep.subr.mxu0 0.0
    %1114 = vmatpush1.msra.mxu0 0.0
    %1115 = vmatprep.subr.mxu0 0.0
    %1116 = vmatpush1.msra.mxu0 0.0
    %1117 = vmatprep.subr.mxu0 0.0
    %1118 = vmatpush1.msra.mxu0 0.0
    %1119 = vmatprep.subr.mxu0 0.0
    %1120 = vmatpush1.msra.mxu0 0.0
    %1121 = vmatprep.subr.mxu0 0.0
    %1122 = vmatpush1.msra.mxu0 0.0
    %1123 = vmatprep.subr.mxu0 0.0
    %1124 = vmatpush1.msra.mxu0 0.0
    %1125 = vmatprep.subr.mxu0 0.0
    %1126 = vmatpush1.msra.mxu0 0.0
    %1127 = vmatprep.subr.mxu0 0.0
    %1128 = vmatpush1.msra.mxu0 0.0
    %1129 = vmatprep.subr.mxu0 0.0
    %1130 = vmatpush1.msra.mxu0 0.0
    %1131 = vmatprep.subr.mxu0 0.0
    %1132 = vmatpush1.msra.mxu0 0.0
    %1133 = vmatprep.subr.mxu0 0.0
    %1134 = vmatpush1.msra.mxu0 0.0
    %1135 = vmatprep.mubr.f32.mxu0 0.0
    %1136 = vmatmul.mubr.f32.gmra.mrb[0].mxu0 %v1069
    %v1137 = vpop.f32.mrb[0].mxu0
    %v1138 = vadd.f32 0.0, %v1137
    %v1139 = vpop.f32.mrb[0].mxu0
    %1140 = vdwg.mxu0
    %v1141 = vadd.f32 %v227, %v1138
    %1143 = vrot.lane.b32.xlu0 %v1064, 32
    %v1144 = vpop.permute.xlu0 %1143
    %v1145 = vsel %vm147, %v1144, 0
    %1147 = vmatprep.subr.mxu0 0.0
    %1148 = vmatpush1.msra.mxu0 %v131
    %1149 = vmatprep.subr.mxu0 0.0
    %1150 = vmatpush1.msra.mxu0 %v132
    %1151 = vmatprep.subr.mxu0 0.0
    %1152 = vmatpush1.msra.mxu0 %v133
    %1153 = vmatprep.subr.mxu0 0.0
    %1154 = vmatpush1.msra.mxu0 %v134
    %1155 = vmatprep.subr.mxu0 0.0
    %1156 = vmatpush1.msra.mxu0 0.0
    %1157 = vmatprep.subr.mxu0 0.0
    %1158 = vmatpush1.msra.mxu0 0.0
    %1159 = vmatprep.subr.mxu0 0.0
    %1160 = vmatpush1.msra.mxu0 0.0
    %1161 = vmatprep.subr.mxu0 0.0
    %1162 = vmatpush1.msra.mxu0 0.0
    %1163 = vmatprep.subr.mxu0 0.0
    %1164 = vmatpush1.msra.mxu0 0.0
    %1165 = vmatprep.subr.mxu0 0.0
    %1166 = vmatpush1.msra.mxu0 0.0
    %1167 = vmatprep.subr.mxu0 0.0
    %1168 = vmatpush1.msra.mxu0 0.0
    %1169 = vmatprep.subr.mxu0 0.0
    %1170 = vmatpush1.msra.mxu0 0.0
    %1171 = vmatprep.subr.mxu0 0.0
    %1172 = vmatpush1.msra.mxu0 0.0
    %1173 = vmatprep.subr.mxu0 0.0
    %1174 = vmatpush1.msra.mxu0 0.0
    %1175 = vmatprep.subr.mxu0 0.0
    %1176 = vmatpush1.msra.mxu0 0.0
    %1177 = vmatprep.subr.mxu0 0.0
    %1178 = vmatpush1.msra.mxu0 0.0
    %1179 = vmatprep.subr.mxu0 0.0
    %1180 = vmatpush1.msra.mxu0 0.0
    %1181 = vmatprep.subr.mxu0 0.0
    %1182 = vmatpush1.msra.mxu0 0.0
    %1183 = vmatprep.subr.mxu0 0.0
    %1184 = vmatpush1.msra.mxu0 0.0
    %1185 = vmatprep.subr.mxu0 0.0
    %1186 = vmatpush1.msra.mxu0 0.0
    %1187 = vmatprep.subr.mxu0 0.0
    %1188 = vmatpush1.msra.mxu0 0.0
    %1189 = vmatprep.subr.mxu0 0.0
    %1190 = vmatpush1.msra.mxu0 0.0
    %1191 = vmatprep.subr.mxu0 0.0
    %1192 = vmatpush1.msra.mxu0 0.0
    %1193 = vmatprep.subr.mxu0 0.0
    %1194 = vmatpush1.msra.mxu0 0.0
    %1195 = vmatprep.subr.mxu0 0.0
    %1196 = vmatpush1.msra.mxu0 0.0
    %1197 = vmatprep.subr.mxu0 0.0
    %1198 = vmatpush1.msra.mxu0 0.0
    %1199 = vmatprep.subr.mxu0 0.0
    %1200 = vmatpush1.msra.mxu0 0.0
    %1201 = vmatprep.subr.mxu0 0.0
    %1202 = vmatpush1.msra.mxu0 0.0
    %1203 = vmatprep.subr.mxu0 0.0
    %1204 = vmatpush1.msra.mxu0 0.0
    %1205 = vmatprep.subr.mxu0 0.0
    %1206 = vmatpush1.msra.mxu0 0.0
    %1207 = vmatprep.subr.mxu0 0.0
    %1208 = vmatpush1.msra.mxu0 0.0
    %1209 = vmatprep.subr.mxu0 0.0
    %1210 = vmatpush1.msra.mxu0 0.0
    %1211 = vmatprep.mubr.f32.mxu0 0.0
    %1212 = vmatmul.mubr.f32.gmra.mrb[0].mxu0 %v1145
    %v1213 = vpop.f32.mrb[0].mxu0
    %v1214 = vadd.f32 0.0, %v1213
    %v1215 = vpop.f32.mrb[0].mxu0
    %1216 = vdwg.mxu0
    %v1218 = vrot.slane %v1214, 2
    %v1220 = vadd.f32 %v223, %v1218
    %v1221 = vxor.u32 %v1141, 2147483648
    %v1222 = vmul.f32 %v1221, 1.442695
    %v1223 = vpow.pop %v1222
    %v1224 = vadd.f32 %v1223, 1.0
    %v1225 = vrcp.pop %v1224
    %v1226 = vmul.f32 1.0, %v1225
    %v1227 = vtanh.pop %v1141
    %v1229 = vrot.slane %v1031, 6
    %v1231 = vmul.f32 %v1226, %v1229
    %1233 = vrot.lane.b32.xlu0 %v1227, 64
    %v1234 = vpop.permute.xlu0 %1233
    %v1236 = vmul.f32 %v1226, %v1234
    %1238 = vrot.lane.b32.xlu0 %v1236, 32
    %v1239 = vpop.permute.xlu0 %1238
    %v1241 = vadd.f32 %v1231, %v1239
    %v1242 = vtanh.pop %v1241
    %1244 = vrot.lane.b32.xlu0 %v1242, 64
    %v1245 = vpop.permute.xlu0 %1244
    %v1247 = vmul.f32 %v1226, %v1245
    %v1248 = vxor.u32 %v1220, 2147483648
    %v1249 = vmul.f32 %v1248, 1.442695
    %v1250 = vpow.pop %v1249
    %v1251 = vadd.f32 %v1250, 1.0
    %v1252 = vrcp.pop %v1251
    %v1253 = vmul.f32 1.0, %v1252
    %v1254 = vtanh.pop %v1220
    %v1256 = vrot.slane %v1058, 2
    %v1258 = vmul.f32 %v1253, %v1256
    %1260 = vrot.lane.b32.xlu0 %v1254, 64
    %v1261 = vpop.permute.xlu0 %1260
    %v1263 = vmul.f32 %v1253, %v1261
    %1265 = vrot.lane.b32.xlu0 %v1263, 32
    %v1266 = vpop.permute.xlu0 %1265
    %v1268 = vadd.f32 %v1258, %v1266
    %v1269 = vtanh.pop %v1268
    %1271 = vrot.lane.b32.xlu0 %v1269, 64
    %v1272 = vpop.permute.xlu0 %1271
    %v1274 = vmul.f32 %v1253, %v1272
    %1276 = vrot.lane.b32.xlu0 %v1247, 32
    %v1277 = vpop.permute.xlu0 %1276
    %v1278 = vsel %vm147, %v1277, 0
    %1280 = vmatprep.subr.mxu0 0.0
    %1281 = vmatpush1.msra.mxu0 %v127
    %1282 = vmatprep.subr.mxu0 0.0
    %1283 = vmatpush1.msra.mxu0 %v128
    %1284 = vmatprep.subr.mxu0 0.0
    %1285 = vmatpush1.msra.mxu0 %v129
    %1286 = vmatprep.subr.mxu0 0.0
    %1287 = vmatpush1.msra.mxu0 %v130
    %1288 = vmatprep.subr.mxu0 0.0
    %1289 = vmatpush1.msra.mxu0 0.0
    %1290 = vmatprep.subr.mxu0 0.0
    %1291 = vmatpush1.msra.mxu0 0.0
    %1292 = vmatprep.subr.mxu0 0.0
    %1293 = vmatpush1.msra.mxu0 0.0
    %1294 = vmatprep.subr.mxu0 0.0
    %1295 = vmatpush1.msra.mxu0 0.0
    %1296 = vmatprep.subr.mxu0 0.0
    %1297 = vmatpush1.msra.mxu0 0.0
    %1298 = vmatprep.subr.mxu0 0.0
    %1299 = vmatpush1.msra.mxu0 0.0
    %1300 = vmatprep.subr.mxu0 0.0
    %1301 = vmatpush1.msra.mxu0 0.0
    %1302 = vmatprep.subr.mxu0 0.0
    %1303 = vmatpush1.msra.mxu0 0.0
    %1304 = vmatprep.subr.mxu0 0.0
    %1305 = vmatpush1.msra.mxu0 0.0
    %1306 = vmatprep.subr.mxu0 0.0
    %1307 = vmatpush1.msra.mxu0 0.0
    %1308 = vmatprep.subr.mxu0 0.0
    %1309 = vmatpush1.msra.mxu0 0.0
    %1310 = vmatprep.subr.mxu0 0.0
    %1311 = vmatpush1.msra.mxu0 0.0
    %1312 = vmatprep.subr.mxu0 0.0
    %1313 = vmatpush1.msra.mxu0 0.0
    %1314 = vmatprep.subr.mxu0 0.0
    %1315 = vmatpush1.msra.mxu0 0.0
    %1316 = vmatprep.subr.mxu0 0.0
    %1317 = vmatpush1.msra.mxu0 0.0
    %1318 = vmatprep.subr.mxu0 0.0
    %1319 = vmatpush1.msra.mxu0 0.0
    %1320 = vmatprep.subr.mxu0 0.0
    %1321 = vmatpush1.msra.mxu0 0.0
    %1322 = vmatprep.subr.mxu0 0.0
    %1323 = vmatpush1.msra.mxu0 0.0
    %1324 = vmatprep.subr.mxu0 0.0
    %1325 = vmatpush1.msra.mxu0 0.0
    %1326 = vmatprep.subr.mxu0 0.0
    %1327 = vmatpush1.msra.mxu0 0.0
    %1328 = vmatprep.subr.mxu0 0.0
    %1329 = vmatpush1.msra.mxu0 0.0
    %1330 = vmatprep.subr.mxu0 0.0
    %1331 = vmatpush1.msra.mxu0 0.0
    %1332 = vmatprep.subr.mxu0 0.0
    %1333 = vmatpush1.msra.mxu0 0.0
    %1334 = vmatprep.subr.mxu0 0.0
    %1335 = vmatpush1.msra.mxu0 0.0
    %1336 = vmatprep.subr.mxu0 0.0
    %1337 = vmatpush1.msra.mxu0 0.0
    %1338 = vmatprep.subr.mxu0 0.0
    %1339 = vmatpush1.msra.mxu0 0.0
    %1340 = vmatprep.subr.mxu0 0.0
    %1341 = vmatpush1.msra.mxu0 0.0
    %1342 = vmatprep.subr.mxu0 0.0
    %1343 = vmatpush1.msra.mxu0 0.0
    %1344 = vmatprep.mubr.f32.mxu0 0.0
    %1345 = vmatmul.mubr.f32.gmra.mrb[0].mxu0 %v1278
    %v1346 = vpop.f32.mrb[0].mxu0
    %v1347 = vadd.f32 0.0, %v1346
    %v1348 = vpop.f32.mrb[0].mxu0
    %1349 = vdwg.mxu0
    %v1351 = vrot.slane %v1347, 6
    %v1353 = vadd.f32 %v227, %v1351
    %v1355 = vrot.slane %v1274, 6
    %1356 = vrot.lane.b32.xlu0 %v1355, 32
    %v1357 = vpop.permute.xlu0 %1356
    %v1358 = vsel %vm147, %v1357, 0
    %1360 = vmatprep.subr.mxu0 0.0
    %1361 = vmatpush1.msra.mxu0 %v131
    %1362 = vmatprep.subr.mxu0 0.0
    %1363 = vmatpush1.msra.mxu0 %v132
    %1364 = vmatprep.subr.mxu0 0.0
    %1365 = vmatpush1.msra.mxu0 %v133
    %1366 = vmatprep.subr.mxu0 0.0
    %1367 = vmatpush1.msra.mxu0 %v134
    %1368 = vmatprep.subr.mxu0 0.0
    %1369 = vmatpush1.msra.mxu0 0.0
    %1370 = vmatprep.subr.mxu0 0.0
    %1371 = vmatpush1.msra.mxu0 0.0
    %1372 = vmatprep.subr.mxu0 0.0
    %1373 = vmatpush1.msra.mxu0 0.0
    %1374 = vmatprep.subr.mxu0 0.0
    %1375 = vmatpush1.msra.mxu0 0.0
    %1376 = vmatprep.subr.mxu0 0.0
    %1377 = vmatpush1.msra.mxu0 0.0
    %1378 = vmatprep.subr.mxu0 0.0
    %1379 = vmatpush1.msra.mxu0 0.0
    %1380 = vmatprep.subr.mxu0 0.0
    %1381 = vmatpush1.msra.mxu0 0.0
    %1382 = vmatprep.subr.mxu0 0.0
    %1383 = vmatpush1.msra.mxu0 0.0
    %1384 = vmatprep.subr.mxu0 0.0
    %1385 = vmatpush1.msra.mxu0 0.0
    %1386 = vmatprep.subr.mxu0 0.0
    %1387 = vmatpush1.msra.mxu0 0.0
    %1388 = vmatprep.subr.mxu0 0.0
    %1389 = vmatpush1.msra.mxu0 0.0
    %1390 = vmatprep.subr.mxu0 0.0
    %1391 = vmatpush1.msra.mxu0 0.0
    %1392 = vmatprep.subr.mxu0 0.0
    %1393 = vmatpush1.msra.mxu0 0.0
    %1394 = vmatprep.subr.mxu0 0.0
    %1395 = vmatpush1.msra.mxu0 0.0
    %1396 = vmatprep.subr.mxu0 0.0
    %1397 = vmatpush1.msra.mxu0 0.0
    %1398 = vmatprep.subr.mxu0 0.0
    %1399 = vmatpush1.msra.mxu0 0.0
    %1400 = vmatprep.subr.mxu0 0.0
    %1401 = vmatpush1.msra.mxu0 0.0
    %1402 = vmatprep.subr.mxu0 0.0
    %1403 = vmatpush1.msra.mxu0 0.0
    %1404 = vmatprep.subr.mxu0 0.0
    %1405 = vmatpush1.msra.mxu0 0.0
    %1406 = vmatprep.subr.mxu0 0.0
    %1407 = vmatpush1.msra.mxu0 0.0
    %1408 = vmatprep.subr.mxu0 0.0
    %1409 = vmatpush1.msra.mxu0 0.0
    %1410 = vmatprep.subr.mxu0 0.0
    %1411 = vmatpush1.msra.mxu0 0.0
    %1412 = vmatprep.subr.mxu0 0.0
    %1413 = vmatpush1.msra.mxu0 0.0
    %1414 = vmatprep.subr.mxu0 0.0
    %1415 = vmatpush1.msra.mxu0 0.0
    %1416 = vmatprep.subr.mxu0 0.0
    %1417 = vmatpush1.msra.mxu0 0.0
    %1418 = vmatprep.subr.mxu0 0.0
    %1419 = vmatpush1.msra.mxu0 0.0
    %1420 = vmatprep.subr.mxu0 0.0
    %1421 = vmatpush1.msra.mxu0 0.0
    %1422 = vmatprep.subr.mxu0 0.0
    %1423 = vmatpush1.msra.mxu0 0.0
    %1424 = vmatprep.mubr.f32.mxu0 0.0
    %1425 = vmatmul.mubr.f32.gmra.mrb[0].mxu0 %v1358
    %v1426 = vpop.f32.mrb[0].mxu0
    %v1427 = vadd.f32 0.0, %v1426
    %v1428 = vpop.f32.mrb[0].mxu0
    %1429 = vdwg.mxu0
    %v1431 = vrot.slane %v1427, 4
    %v1433 = vadd.f32 %v223, %v1431
    %v1434 = vxor.u32 %v1353, 2147483648
    %v1435 = vmul.f32 %v1434, 1.442695
    %v1436 = vpow.pop %v1435
    %v1437 = vadd.f32 %v1436, 1.0
    %v1438 = vrcp.pop %v1437
    %v1439 = vmul.f32 1.0, %v1438
    %v1440 = vtanh.pop %v1353
    %v1442 = vrot.slane %v1241, 6
    %v1444 = vmul.f32 %v1439, %v1442
    %1446 = vrot.lane.b32.xlu0 %v1440, 64
    %v1447 = vpop.permute.xlu0 %1446
    %v1449 = vmul.f32 %v1439, %v1447
    %1451 = vrot.lane.b32.xlu0 %v1449, 32
    %v1452 = vpop.permute.xlu0 %1451
    %v1454 = vadd.f32 %v1444, %v1452
    %v1455 = vtanh.pop %v1454
    %1457 = vrot.lane.b32.xlu0 %v1455, 64
    %v1458 = vpop.permute.xlu0 %1457
    %v1460 = vmul.f32 %v1439, %v1458
    %v1461 = vxor.u32 %v1433, 2147483648
    %v1462 = vmul.f32 %v1461, 1.442695
    %v1463 = vpow.pop %v1462
    %v1464 = vadd.f32 %v1463, 1.0
    %v1465 = vrcp.pop %v1464
    %v1466 = vmul.f32 1.0, %v1465
    %v1467 = vtanh.pop %v1433
    %v1469 = vrot.slane %v1268, 2
    %v1471 = vmul.f32 %v1466, %v1469
    %1473 = vrot.lane.b32.xlu0 %v1467, 64
    %v1474 = vpop.permute.xlu0 %1473
    %v1476 = vmul.f32 %v1466, %v1474
    %1478 = vrot.lane.b32.xlu0 %v1476, 32
    %v1479 = vpop.permute.xlu0 %1478
    %v1481 = vadd.f32 %v1471, %v1479
    %v1482 = vtanh.pop %v1481
    %1484 = vrot.lane.b32.xlu0 %v1482, 64
    %v1485 = vpop.permute.xlu0 %1484
    %v1487 = vmul.f32 %v1466, %v1485
    %v1489 = vrot.slane %v1460, 2
    %1490 = vrot.lane.b32.xlu0 %v1489, 32
    %v1491 = vpop.permute.xlu0 %1490
    %v1492 = vsel %vm147, %v1491, 0
    %1494 = vmatprep.subr.mxu0 0.0
    %1495 = vmatpush1.msra.mxu0 %v127
    %1496 = vmatprep.subr.mxu0 0.0
    %1497 = vmatpush1.msra.mxu0 %v128
    %1498 = vmatprep.subr.mxu0 0.0
    %1499 = vmatpush1.msra.mxu0 %v129
    %1500 = vmatprep.subr.mxu0 0.0
    %1501 = vmatpush1.msra.mxu0 %v130
    %1502 = vmatprep.subr.mxu0 0.0
    %1503 = vmatpush1.msra.mxu0 0.0
    %1504 = vmatprep.subr.mxu0 0.0
    %1505 = vmatpush1.msra.mxu0 0.0
    %1506 = vmatprep.subr.mxu0 0.0
    %1507 = vmatpush1.msra.mxu0 0.0
    %1508 = vmatprep.subr.mxu0 0.0
    %1509 = vmatpush1.msra.mxu0 0.0
    %1510 = vmatprep.subr.mxu0 0.0
    %1511 = vmatpush1.msra.mxu0 0.0
    %1512 = vmatprep.subr.mxu0 0.0
    %1513 = vmatpush1.msra.mxu0 0.0
    %1514 = vmatprep.subr.mxu0 0.0
    %1515 = vmatpush1.msra.mxu0 0.0
    %1516 = vmatprep.subr.mxu0 0.0
    %1517 = vmatpush1.msra.mxu0 0.0
    %1518 = vmatprep.subr.mxu0 0.0
    %1519 = vmatpush1.msra.mxu0 0.0
    %1520 = vmatprep.subr.mxu0 0.0
    %1521 = vmatpush1.msra.mxu0 0.0
    %1522 = vmatprep.subr.mxu0 0.0
    %1523 = vmatpush1.msra.mxu0 0.0
    %1524 = vmatprep.subr.mxu0 0.0
    %1525 = vmatpush1.msra.mxu0 0.0
    %1526 = vmatprep.subr.mxu0 0.0
    %1527 = vmatpush1.msra.mxu0 0.0
    %1528 = vmatprep.subr.mxu0 0.0
    %1529 = vmatpush1.msra.mxu0 0.0
    %1530 = vmatprep.subr.mxu0 0.0
    %1531 = vmatpush1.msra.mxu0 0.0
    %1532 = vmatprep.subr.mxu0 0.0
    %1533 = vmatpush1.msra.mxu0 0.0
    %1534 = vmatprep.subr.mxu0 0.0
    %1535 = vmatpush1.msra.mxu0 0.0
    %1536 = vmatprep.subr.mxu0 0.0
    %1537 = vmatpush1.msra.mxu0 0.0
    %1538 = vmatprep.subr.mxu0 0.0
    %1539 = vmatpush1.msra.mxu0 0.0
    %1540 = vmatprep.subr.mxu0 0.0
    %1541 = vmatpush1.msra.mxu0 0.0
    %1542 = vmatprep.subr.mxu0 0.0
    %1543 = vmatpush1.msra.mxu0 0.0
    %1544 = vmatprep.subr.mxu0 0.0
    %1545 = vmatpush1.msra.mxu0 0.0
    %1546 = vmatprep.subr.mxu0 0.0
    %1547 = vmatpush1.msra.mxu0 0.0
    %1548 = vmatprep.subr.mxu0 0.0
    %1549 = vmatpush1.msra.mxu0 0.0
    %1550 = vmatprep.subr.mxu0 0.0
    %1551 = vmatpush1.msra.mxu0 0.0
    %1552 = vmatprep.subr.mxu0 0.0
    %1553 = vmatpush1.msra.mxu0 0.0
    %1554 = vmatprep.subr.mxu0 0.0
    %1555 = vmatpush1.msra.mxu0 0.0
    %1556 = vmatprep.subr.mxu0 0.0
    %1557 = vmatpush1.msra.mxu0 0.0
    %1558 = vmatprep.mubr.f32.mxu0 0.0
    %1559 = vmatmul.mubr.f32.gmra.mrb[0].mxu0 %v1492
    %v1560 = vpop.f32.mrb[0].mxu0
    %v1561 = vadd.f32 0.0, %v1560
    %v1562 = vpop.f32.mrb[0].mxu0
    %1563 = vdwg.mxu0
    %v1565 = vrot.slane %v1561, 4
    %v1567 = vadd.f32 %v227, %v1565
    %v1569 = vrot.slane %v1487, 4
    %1570 = vrot.lane.b32.xlu0 %v1569, 32
    %v1571 = vpop.permute.xlu0 %1570
    %v1572 = vsel %vm147, %v1571, 0
    %1574 = vmatprep.subr.mxu0 0.0
    %1575 = vmatpush1.msra.mxu0 %v131
    %1576 = vmatprep.subr.mxu0 0.0
    %1577 = vmatpush1.msra.mxu0 %v132
    %1578 = vmatprep.subr.mxu0 0.0
    %1579 = vmatpush1.msra.mxu0 %v133
    %1580 = vmatprep.subr.mxu0 0.0
    %1581 = vmatpush1.msra.mxu0 %v134
    %1582 = vmatprep.subr.mxu0 0.0
    %1583 = vmatpush1.msra.mxu0 0.0
    %1584 = vmatprep.subr.mxu0 0.0
    %1585 = vmatpush1.msra.mxu0 0.0
    %1586 = vmatprep.subr.mxu0 0.0
    %1587 = vmatpush1.msra.mxu0 0.0
    %1588 = vmatprep.subr.mxu0 0.0
    %1589 = vmatpush1.msra.mxu0 0.0
    %1590 = vmatprep.subr.mxu0 0.0
    %1591 = vmatpush1.msra.mxu0 0.0
    %1592 = vmatprep.subr.mxu0 0.0
    %1593 = vmatpush1.msra.mxu0 0.0
    %1594 = vmatprep.subr.mxu0 0.0
    %1595 = vmatpush1.msra.mxu0 0.0
    %1596 = vmatprep.subr.mxu0 0.0
    %1597 = vmatpush1.msra.mxu0 0.0
    %1598 = vmatprep.subr.mxu0 0.0
    %1599 = vmatpush1.msra.mxu0 0.0
    %1600 = vmatprep.subr.mxu0 0.0
    %1601 = vmatpush1.msra.mxu0 0.0
    %1602 = vmatprep.subr.mxu0 0.0
    %1603 = vmatpush1.msra.mxu0 0.0
    %1604 = vmatprep.subr.mxu0 0.0
    %1605 = vmatpush1.msra.mxu0 0.0
    %1606 = vmatprep.subr.mxu0 0.0
    %1607 = vmatpush1.msra.mxu0 0.0
    %1608 = vmatprep.subr.mxu0 0.0
    %1609 = vmatpush1.msra.mxu0 0.0
    %1610 = vmatprep.subr.mxu0 0.0
    %1611 = vmatpush1.msra.mxu0 0.0
    %1612 = vmatprep.subr.mxu0 0.0
    %1613 = vmatpush1.msra.mxu0 0.0
    %1614 = vmatprep.subr.mxu0 0.0
    %1615 = vmatpush1.msra.mxu0 0.0
    %1616 = vmatprep.subr.mxu0 0.0
    %1617 = vmatpush1.msra.mxu0 0.0
    %1618 = vmatprep.subr.mxu0 0.0
    %1619 = vmatpush1.msra.mxu0 0.0
    %1620 = vmatprep.subr.mxu0 0.0
    %1621 = vmatpush1.msra.mxu0 0.0
    %1622 = vmatprep.subr.mxu0 0.0
    %1623 = vmatpush1.msra.mxu0 0.0
    %1624 = vmatprep.subr.mxu0 0.0
    %1625 = vmatpush1.msra.mxu0 0.0
    %1626 = vmatprep.subr.mxu0 0.0
    %1627 = vmatpush1.msra.mxu0 0.0
    %1628 = vmatprep.subr.mxu0 0.0
    %1629 = vmatpush1.msra.mxu0 0.0
    %1630 = vmatprep.subr.mxu0 0.0
    %1631 = vmatpush1.msra.mxu0 0.0
    %1632 = vmatprep.subr.mxu0 0.0
    %1633 = vmatpush1.msra.mxu0 0.0
    %1634 = vmatprep.subr.mxu0 0.0
    %1635 = vmatpush1.msra.mxu0 0.0
    %1636 = vmatprep.subr.mxu0 0.0
    %1637 = vmatpush1.msra.mxu0 0.0
    %1638 = vmatprep.mubr.f32.mxu0 0.0
    %1639 = vmatmul.mubr.f32.gmra.mrb[0].mxu0 %v1572
    %v1640 = vpop.f32.mrb[0].mxu0
    %v1641 = vadd.f32 0.0, %v1640
    %v1642 = vpop.f32.mrb[0].mxu0
    %1643 = vdwg.mxu0
    %v1645 = vrot.slane %v1641, 6
    %v1647 = vadd.f32 %v223, %v1645
    %v1648 = vxor.u32 %v1567, 2147483648
    %v1649 = vmul.f32 %v1648, 1.442695
    %v1650 = vpow.pop %v1649
    %v1651 = vadd.f32 %v1650, 1.0
    %v1652 = vrcp.pop %v1651
    %v1653 = vmul.f32 1.0, %v1652
    %v1654 = vtanh.pop %v1567
    %v1656 = vrot.slane %v1454, 6
    %v1658 = vmul.f32 %v1653, %v1656
    %1660 = vrot.lane.b32.xlu0 %v1654, 64
    %v1661 = vpop.permute.xlu0 %1660
    %v1663 = vmul.f32 %v1653, %v1661
    %1665 = vrot.lane.b32.xlu0 %v1663, 32
    %v1666 = vpop.permute.xlu0 %1665
    %v1668 = vadd.f32 %v1658, %v1666
    %v1669 = vtanh.pop %v1668
    %1671 = vrot.lane.b32.xlu0 %v1669, 64
    %v1672 = vpop.permute.xlu0 %1671
    %v1674 = vmul.f32 %v1653, %v1672
    %v1675 = vxor.u32 %v1647, 2147483648
    %v1676 = vmul.f32 %v1675, 1.442695
    %v1677 = vpow.pop %v1676
    %v1678 = vadd.f32 %v1677, 1.0
    %v1679 = vrcp.pop %v1678
    %v1680 = vmul.f32 1.0, %v1679
    %v1681 = vtanh.pop %v1647
    %v1683 = vrot.slane %v1481, 2
    %v1685 = vmul.f32 %v1680, %v1683
    %1687 = vrot.lane.b32.xlu0 %v1681, 64
    %v1688 = vpop.permute.xlu0 %1687
    %v1690 = vmul.f32 %v1680, %v1688
    %1692 = vrot.lane.b32.xlu0 %v1690, 32
    %v1693 = vpop.permute.xlu0 %1692
    %v1695 = vadd.f32 %v1685, %v1693
    %v1696 = vtanh.pop %v1695
    %1698 = vrot.lane.b32.xlu0 %v1696, 64
    %v1699 = vpop.permute.xlu0 %1698
    %v1701 = vmul.f32 %v1680, %v1699
    %v1703 = vrot.slane %v1674, 4
    %1704 = vrot.lane.b32.xlu0 %v1703, 32
    %v1705 = vpop.permute.xlu0 %1704
    %v1706 = vsel %vm147, %v1705, 0
    %1708 = vmatprep.subr.mxu0 0.0
    %1709 = vmatpush1.msra.mxu0 %v127
    %1710 = vmatprep.subr.mxu0 0.0
    %1711 = vmatpush1.msra.mxu0 %v128
    %1712 = vmatprep.subr.mxu0 0.0
    %1713 = vmatpush1.msra.mxu0 %v129
    %1714 = vmatprep.subr.mxu0 0.0
    %1715 = vmatpush1.msra.mxu0 %v130
    %1716 = vmatprep.subr.mxu0 0.0
    %1717 = vmatpush1.msra.mxu0 0.0
    %1718 = vmatprep.subr.mxu0 0.0
    %1719 = vmatpush1.msra.mxu0 0.0
    %1720 = vmatprep.subr.mxu0 0.0
    %1721 = vmatpush1.msra.mxu0 0.0
    %1722 = vmatprep.subr.mxu0 0.0
    %1723 = vmatpush1.msra.mxu0 0.0
    %1724 = vmatprep.subr.mxu0 0.0
    %1725 = vmatpush1.msra.mxu0 0.0
    %1726 = vmatprep.subr.mxu0 0.0
    %1727 = vmatpush1.msra.mxu0 0.0
    %1728 = vmatprep.subr.mxu0 0.0
    %1729 = vmatpush1.msra.mxu0 0.0
    %1730 = vmatprep.subr.mxu0 0.0
    %1731 = vmatpush1.msra.mxu0 0.0
    %1732 = vmatprep.subr.mxu0 0.0
    %1733 = vmatpush1.msra.mxu0 0.0
    %1734 = vmatprep.subr.mxu0 0.0
    %1735 = vmatpush1.msra.mxu0 0.0
    %1736 = vmatprep.subr.mxu0 0.0
    %1737 = vmatpush1.msra.mxu0 0.0
    %1738 = vmatprep.subr.mxu0 0.0
    %1739 = vmatpush1.msra.mxu0 0.0
    %1740 = vmatprep.subr.mxu0 0.0
    %1741 = vmatpush1.msra.mxu0 0.0
    %1742 = vmatprep.subr.mxu0 0.0
    %1743 = vmatpush1.msra.mxu0 0.0
    %1744 = vmatprep.subr.mxu0 0.0
    %1745 = vmatpush1.msra.mxu0 0.0
    %1746 = vmatprep.subr.mxu0 0.0
    %1747 = vmatpush1.msra.mxu0 0.0
    %1748 = vmatprep.subr.mxu0 0.0
    %1749 = vmatpush1.msra.mxu0 0.0
    %1750 = vmatprep.subr.mxu0 0.0
    %1751 = vmatpush1.msra.mxu0 0.0
    %1752 = vmatprep.subr.mxu0 0.0
    %1753 = vmatpush1.msra.mxu0 0.0
    %1754 = vmatprep.subr.mxu0 0.0
    %1755 = vmatpush1.msra.mxu0 0.0
    %1756 = vmatprep.subr.mxu0 0.0
    %1757 = vmatpush1.msra.mxu0 0.0
    %1758 = vmatprep.subr.mxu0 0.0
    %1759 = vmatpush1.msra.mxu0 0.0
    %1760 = vmatprep.subr.mxu0 0.0
    %1761 = vmatpush1.msra.mxu0 0.0
    %1762 = vmatprep.subr.mxu0 0.0
    %1763 = vmatpush1.msra.mxu0 0.0
    %1764 = vmatprep.subr.mxu0 0.0
    %1765 = vmatpush1.msra.mxu0 0.0
    %1766 = vmatprep.subr.mxu0 0.0
    %1767 = vmatpush1.msra.mxu0 0.0
    %1768 = vmatprep.subr.mxu0 0.0
    %1769 = vmatpush1.msra.mxu0 0.0
    %1770 = vmatprep.subr.mxu0 0.0
    %1771 = vmatpush1.msra.mxu0 0.0
    %1772 = vmatprep.mubr.f32.mxu0 0.0
    %1773 = vmatmul.mubr.f32.gmra.mrb[0].mxu0 %v1706
    %v1774 = vpop.f32.mrb[0].mxu0
    %v1775 = vadd.f32 0.0, %v1774
    %v1776 = vpop.f32.mrb[0].mxu0
    %1777 = vdwg.mxu0
    %v1779 = vrot.slane %v1775, 2
    %v1781 = vadd.f32 %v227, %v1779
    %v1783 = vrot.slane %v1701, 2
    %1784 = vrot.lane.b32.xlu0 %v1783, 32
    %v1785 = vpop.permute.xlu0 %1784
    %v1786 = vsel %vm147, %v1785, 0
    %1788 = vmatprep.subr.mxu0 0.0
    %1789 = vmatpush1.msra.mxu0 %v131
    %1790 = vmatprep.subr.mxu0 0.0
    %1791 = vmatpush1.msra.mxu0 %v132
    %1792 = vmatprep.subr.mxu0 0.0
    %1793 = vmatpush1.msra.mxu0 %v133
    %1794 = vmatprep.subr.mxu0 0.0
    %1795 = vmatpush1.msra.mxu0 %v134
    %1796 = vmatprep.subr.mxu0 0.0
    %1797 = vmatpush1.msra.mxu0 0.0
    %1798 = vmatprep.subr.mxu0 0.0
    %1799 = vmatpush1.msra.mxu0 0.0
    %1800 = vmatprep.subr.mxu0 0.0
    %1801 = vmatpush1.msra.mxu0 0.0
    %1802 = vmatprep.subr.mxu0 0.0
    %1803 = vmatpush1.msra.mxu0 0.0
    %1804 = vmatprep.subr.mxu0 0.0
    %1805 = vmatpush1.msra.mxu0 0.0
    %1806 = vmatprep.subr.mxu0 0.0
    %1807 = vmatpush1.msra.mxu0 0.0
    %1808 = vmatprep.subr.mxu0 0.0
    %1809 = vmatpush1.msra.mxu0 0.0
    %1810 = vmatprep.subr.mxu0 0.0
    %1811 = vmatpush1.msra.mxu0 0.0
    %1812 = vmatprep.subr.mxu0 0.0
    %1813 = vmatpush1.msra.mxu0 0.0
    %1814 = vmatprep.subr.mxu0 0.0
    %1815 = vmatpush1.msra.mxu0 0.0
    %1816 = vmatprep.subr.mxu0 0.0
    %1817 = vmatpush1.msra.mxu0 0.0
    %1818 = vmatprep.subr.mxu0 0.0
    %1819 = vmatpush1.msra.mxu0 0.0
    %1820 = vmatprep.subr.mxu0 0.0
    %1821 = vmatpush1.msra.mxu0 0.0
    %1822 = vmatprep.subr.mxu0 0.0
    %1823 = vmatpush1.msra.mxu0 0.0
    %1824 = vmatprep.subr.mxu0 0.0
    %1825 = vmatpush1.msra.mxu0 0.0
    %1826 = vmatprep.subr.mxu0 0.0
    %1827 = vmatpush1.msra.mxu0 0.0
    %1828 = vmatprep.subr.mxu0 0.0
    %1829 = vmatpush1.msra.mxu0 0.0
    %1830 = vmatprep.subr.mxu0 0.0
    %1831 = vmatpush1.msra.mxu0 0.0
    %1832 = vmatprep.subr.mxu0 0.0
    %1833 = vmatpush1.msra.mxu0 0.0
    %1834 = vmatprep.subr.mxu0 0.0
    %1835 = vmatpush1.msra.mxu0 0.0
    %1836 = vmatprep.subr.mxu0 0.0
    %1837 = vmatpush1.msra.mxu0 0.0
    %1838 = vmatprep.subr.mxu0 0.0
    %1839 = vmatpush1.msra.mxu0 0.0
    %1840 = vmatprep.subr.mxu0 0.0
    %1841 = vmatpush1.msra.mxu0 0.0
    %1842 = vmatprep.subr.mxu0 0.0
    %1843 = vmatpush1.msra.mxu0 0.0
    %1844 = vmatprep.subr.mxu0 0.0
    %1845 = vmatpush1.msra.mxu0 0.0
    %1846 = vmatprep.subr.mxu0 0.0
    %1847 = vmatpush1.msra.mxu0 0.0
    %1848 = vmatprep.subr.mxu0 0.0
    %1849 = vmatpush1.msra.mxu0 0.0
    %1850 = vmatprep.subr.mxu0 0.0
    %1851 = vmatpush1.msra.mxu0 0.0
    %1852 = vmatprep.mubr.f32.mxu0 0.0
    %1853 = vmatmul.mubr.f32.gmra.mrb[0].mxu0 %v1786
    %v1854 = vpop.f32.mrb[0].mxu0
    %v1855 = vadd.f32 0.0, %v1854
    %v1856 = vpop.f32.mrb[0].mxu0
    %1857 = vdwg.mxu0
    %v1858 = vadd.f32 %v223, %v1855
    %v1859 = vxor.u32 %v1781, 2147483648
    %v1860 = vmul.f32 %v1859, 1.442695
    %v1861 = vpow.pop %v1860
    %v1862 = vadd.f32 %v1861, 1.0
    %v1863 = vrcp.pop %v1862
    %v1864 = vmul.f32 1.0, %v1863
    %v1865 = vtanh.pop %v1781
    %v1867 = vrot.slane %v1668, 6
    %v1869 = vmul.f32 %v1864, %v1867
    %1871 = vrot.lane.b32.xlu0 %v1865, 64
    %v1872 = vpop.permute.xlu0 %1871
    %v1874 = vmul.f32 %v1864, %v1872
    %1876 = vrot.lane.b32.xlu0 %v1874, 32
    %v1877 = vpop.permute.xlu0 %1876
    %v1879 = vadd.f32 %v1869, %v1877
    %v1880 = vtanh.pop %v1879
    %1882 = vrot.lane.b32.xlu0 %v1880, 64
    %v1883 = vpop.permute.xlu0 %1882
    %v1885 = vmul.f32 %v1864, %v1883
    %v1886 = vxor.u32 %v1858, 2147483648
    %v1887 = vmul.f32 %v1886, 1.442695
    %v1888 = vpow.pop %v1887
    %v1889 = vadd.f32 %v1888, 1.0
    %v1890 = vrcp.pop %v1889
    %v1891 = vmul.f32 1.0, %v1890
    %v1892 = vtanh.pop %v1858
    %v1894 = vrot.slane %v1695, 2
    %v1896 = vmul.f32 %v1891, %v1894
    %1898 = vrot.lane.b32.xlu0 %v1892, 64
    %v1899 = vpop.permute.xlu0 %1898
    %v1901 = vmul.f32 %v1891, %v1899
    %1903 = vrot.lane.b32.xlu0 %v1901, 32
    %v1904 = vpop.permute.xlu0 %1903
    %v1906 = vadd.f32 %v1896, %v1904
    %v1907 = vtanh.pop %v1906
    %1909 = vrot.lane.b32.xlu0 %v1907, 64
    %v1910 = vpop.permute.xlu0 %1909
    %v1912 = vmul.f32 %v1891, %v1910
    %vm1913 = vcmask 1041408
    %v1914 = vsel %vm1913, %v402, %v612
    %vm1915 = vcmask 1043456
    %v1916 = vsel %vm1915, %v1914, %v826
    %vm1917 = vcmask 1045504
    %v1918 = vsel %vm1917, %v1916, %v1037
    %v1919 = vsel %vm1913, %v1247, %v1460
    %v1920 = vsel %vm1915, %v1919, %v1674
    %v1921 = vsel %vm1917, %v1920, %v1885
    %v1922 = vsel %vm1913, %v1912, %v1701
    %v1923 = vsel %vm1915, %v1922, %v1487
    %v1924 = vsel %vm1917, %v1923, %v1274
    %v1925 = vsel %vm1913, %v1064, %v853
    %v1926 = vsel %vm1915, %v1925, %v639
    %v1927 = vsel %vm1917, %v1926, %v426
    %1930 = vrot.lane.b32.xlu0 %v1918, 32
    %v1931 = vpop.permute.xlu0 %1930
    %1932 = vrot.lane.b32.xlu0 %v1921, 32
    %v1933 = vpop.permute.xlu0 %1932
    %1938 = vrot.lane.b32.xlu0 %v1924, 64
    %v1939 = vpop.permute.xlu0 %1938
    %1940 = vrot.lane.b32.xlu0 %v1927, 64
    %v1941 = vpop.permute.xlu0 %1940
    %v1944 = vsel %vm147, %v1931, %v1939
    %v1945 = vsel %vm147, %v1933, %v1941
    %v1946 = vld [vmem:[#allocation5] sm:$0xff]
    %v1947 = vld [vmem:[#allocation5 + $0x8] sm:$0xff]
    %v1948 = vld [vmem:[#allocation5 + $0x10] sm:$0xff]
    %v1949 = vld [vmem:[#allocation5 + $0x18] sm:$0xff]
    %v1950 = vld [vmem:[#allocation5 + $0x20] sm:$0xff]
    %v1951 = vld [vmem:[#allocation5 + $0x28] sm:$0xff]
    %v1952 = vld [vmem:[#allocation5 + $0x30] sm:$0xff]
    %v1953 = vld [vmem:[#allocation5 + $0x38] sm:$0xff]
    %v1954 = vld [vmem:[#allocation5 + $0x40] sm:$0xff]
    %v1955 = vld [vmem:[#allocation5 + $0x48] sm:$0xff]
    %v1956 = vld [vmem:[#allocation5 + $0x50] sm:$0xff]
    %v1957 = vld [vmem:[#allocation5 + $0x58] sm:$0xff]
    %v1958 = vld [vmem:[#allocation5 + $0x60] sm:$0xff]
    %v1959 = vld [vmem:[#allocation5 + $0x68] sm:$0xff]
    %v1960 = vld [vmem:[#allocation5 + $0x70] sm:$0xff]
    %v1961 = vld [vmem:[#allocation5 + $0x78] sm:$0xff]
    %v1962 = vld [vmem:[#allocation7] sm:$0xff]
    %v1963 = vld [vmem:[#allocation7 + $0x8] sm:$0xff]
    %v1964 = vld [vmem:[#allocation7 + $0x10] sm:$0xff]
    %v1965 = vld [vmem:[#allocation7 + $0x18] sm:$0xff]
    %v1966 = vld [vmem:[#allocation8] sm:$0xff]
    %v1967 = vld [vmem:[#allocation8 + $0x8] sm:$0xff]
    %v1968 = vld [vmem:[#allocation8 + $0x10] sm:$0xff]
    %v1969 = vld [vmem:[#allocation8 + $0x18] sm:$0xff]
    %v1970 = vld [vmem:[#allocation10] sm:$0x3]
    %v1972 = vlaneseq
    %v1973 = vshrl.u32 %v1972, 7
    %v1974 = vsub.s32 0, %v1973
    %v1975 = vrot.slane %v1970, %v1974
    %v1976 = vlaneseq
    %v1977 = vshrl.u32 %v1976, 7
    %v1978 = vsub.s32 1, %v1977
    %v1979 = vrot.slane %v1970, %v1978
    %vm1982 = vcmask 523264
    %v1984 = vsel %vm1982, %v1944, 0
    %v1987 = vsel %vm1982, %v1945, 0
    %1989 = vmatprep.subr.mxu0 %v1947
    %1990 = vmatpush1.msra.mxu0 %v1946
    %1991 = vmatprep.subr.mxu0 %v1949
    %1992 = vmatpush1.msra.mxu0 %v1948
    %1993 = vmatprep.subr.mxu0 %v1951
    %1994 = vmatpush1.msra.mxu0 %v1950
    %1995 = vmatprep.subr.mxu0 %v1953
    %1996 = vmatpush1.msra.mxu0 %v1952
    %1997 = vmatprep.subr.mxu0 %v1955
    %1998 = vmatpush1.msra.mxu0 %v1954
    %1999 = vmatprep.subr.mxu0 %v1957
    %2000 = vmatpush1.msra.mxu0 %v1956
    %2001 = vmatprep.subr.mxu0 %v1959
    %2002 = vmatpush1.msra.mxu0 %v1958
    %2003 = vmatprep.subr.mxu0 %v1961
    %2004 = vmatpush1.msra.mxu0 %v1960
    %2005 = vmatprep.subr.mxu0 0.0
    %2006 = vmatpush1.msra.mxu0 0.0
    %2007 = vmatprep.subr.mxu0 0.0
    %2008 = vmatpush1.msra.mxu0 0.0
    %2009 = vmatprep.subr.mxu0 0.0
    %2010 = vmatpush1.msra.mxu0 0.0
    %2011 = vmatprep.subr.mxu0 0.0
    %2012 = vmatpush1.msra.mxu0 0.0
    %2013 = vmatprep.subr.mxu0 0.0
    %2014 = vmatpush1.msra.mxu0 0.0
    %2015 = vmatprep.subr.mxu0 0.0
    %2016 = vmatpush1.msra.mxu0 0.0
    %2017 = vmatprep.subr.mxu0 0.0
    %2018 = vmatpush1.msra.mxu0 0.0
    %2019 = vmatprep.subr.mxu0 0.0
    %2020 = vmatpush1.msra.mxu0 0.0
    %2021 = vmatprep.subr.mxu0 0.0
    %2022 = vmatpush1.msra.mxu0 0.0
    %2023 = vmatprep.subr.mxu0 0.0
    %2024 = vmatpush1.msra.mxu0 0.0
    %2025 = vmatprep.subr.mxu0 0.0
    %2026 = vmatpush1.msra.mxu0 0.0
    %2027 = vmatprep.subr.mxu0 0.0
    %2028 = vmatpush1.msra.mxu0 0.0
    %2029 = vmatprep.subr.mxu0 0.0
    %2030 = vmatpush1.msra.mxu0 0.0
    %2031 = vmatprep.subr.mxu0 0.0
    %2032 = vmatpush1.msra.mxu0 0.0
    %2033 = vmatprep.subr.mxu0 0.0
    %2034 = vmatpush1.msra.mxu0 0.0
    %2035 = vmatprep.subr.mxu0 0.0
    %2036 = vmatpush1.msra.mxu0 0.0
    %2037 = vmatprep.subr.mxu0 0.0
    %2038 = vmatpush1.msra.mxu0 0.0
    %2039 = vmatprep.subr.mxu0 0.0
    %2040 = vmatpush1.msra.mxu0 0.0
    %2041 = vmatprep.subr.mxu0 0.0
    %2042 = vmatpush1.msra.mxu0 0.0
    %2043 = vmatprep.subr.mxu0 0.0
    %2044 = vmatpush1.msra.mxu0 0.0
    %2045 = vmatprep.subr.mxu0 0.0
    %2046 = vmatpush1.msra.mxu0 0.0
    %2047 = vmatprep.subr.mxu0 0.0
    %2048 = vmatpush1.msra.mxu0 0.0
    %2049 = vmatprep.subr.mxu0 0.0
    %2050 = vmatpush1.msra.mxu0 0.0
    %2051 = vmatprep.subr.mxu0 0.0
    %2052 = vmatpush1.msra.mxu0 0.0
    %2053 = vmatprep.mubr.f32.mxu0 0.0
    %2054 = vmatmul.mubr.f32.gmra.mrb[0].mxu0 %v1984
    %v2055 = vpop.f32.mrb[0].mxu0
    %v2056 = vadd.f32 %v1975, %v2055
    %v2057 = vpop.f32.mrb[0].mxu0
    %v2058 = vadd.f32 %v1979, %v2057
    %2059 = vmatprep.mubr.f32.mxu0 0.0
    %2060 = vmatmul.mubr.f32.gmra.mrb[0].mxu0 %v1987
    %v2061 = vpop.f32.mrb[0].mxu0
    %v2062 = vadd.f32 %v1975, %v2061
    %v2063 = vpop.f32.mrb[0].mxu0
    %v2064 = vadd.f32 %v1979, %v2063
    %2065 = vdwg.mxu0
    %2066 = vmatprep.subr.mxu0 0.0
    %2067 = vmatpush1.msra.mxu0 %v1962
    %2068 = vmatprep.subr.mxu0 0.0
    %2069 = vmatpush1.msra.mxu0 %v1963
    %2070 = vmatprep.subr.mxu0 0.0
    %2071 = vmatpush1.msra.mxu0 %v1964
    %2072 = vmatprep.subr.mxu0 0.0
    %2073 = vmatpush1.msra.mxu0 %v1965
    %2074 = vmatprep.subr.mxu0 0.0
    %2075 = vmatpush1.msra.mxu0 0.0
    %2076 = vmatprep.subr.mxu0 0.0
    %2077 = vmatpush1.msra.mxu0 0.0
    %2078 = vmatprep.subr.mxu0 0.0
    %2079 = vmatpush1.msra.mxu0 0.0
    %2080 = vmatprep.subr.mxu0 0.0
    %2081 = vmatpush1.msra.mxu0 0.0
    %2082 = vmatprep.subr.mxu0 0.0
    %2083 = vmatpush1.msra.mxu0 0.0
    %2084 = vmatprep.subr.mxu0 0.0
    %2085 = vmatpush1.msra.mxu0 0.0
    %2086 = vmatprep.subr.mxu0 0.0
    %2087 = vmatpush1.msra.mxu0 0.0
    %2088 = vmatprep.subr.mxu0 0.0
    %2089 = vmatpush1.msra.mxu0 0.0
    %2090 = vmatprep.subr.mxu0 0.0
    %2091 = vmatpush1.msra.mxu0 0.0
    %2092 = vmatprep.subr.mxu0 0.0
    %2093 = vmatpush1.msra.mxu0 0.0
    %2094 = vmatprep.subr.mxu0 0.0
    %2095 = vmatpush1.msra.mxu0 0.0
    %2096 = vmatprep.subr.mxu0 0.0
    %2097 = vmatpush1.msra.mxu0 0.0
    %2098 = vmatprep.subr.mxu0 0.0
    %2099 = vmatpush1.msra.mxu0 0.0
    %2100 = vmatprep.subr.mxu0 0.0
    %2101 = vmatpush1.msra.mxu0 0.0
    %2102 = vmatprep.subr.mxu0 0.0
    %2103 = vmatpush1.msra.mxu0 0.0
    %2104 = vmatprep.subr.mxu0 0.0
    %2105 = vmatpush1.msra.mxu0 0.0
    %2106 = vmatprep.subr.mxu0 0.0
    %2107 = vmatpush1.msra.mxu0 0.0
    %2108 = vmatprep.subr.mxu0 0.0
    %2109 = vmatpush1.msra.mxu0 0.0
    %2110 = vmatprep.subr.mxu0 0.0
    %2111 = vmatpush1.msra.mxu0 0.0
    %2112 = vmatprep.subr.mxu0 0.0
    %2113 = vmatpush1.msra.mxu0 0.0
    %2114 = vmatprep.subr.mxu0 0.0
    %2115 = vmatpush1.msra.mxu0 0.0
    %2116 = vmatprep.subr.mxu0 0.0
    %2117 = vmatpush1.msra.mxu0 0.0
    %2118 = vmatprep.subr.mxu0 0.0
    %2119 = vmatpush1.msra.mxu0 0.0
    %2120 = vmatprep.subr.mxu0 0.0
    %2121 = vmatpush1.msra.mxu0 0.0
    %2122 = vmatprep.subr.mxu0 0.0
    %2123 = vmatpush1.msra.mxu0 0.0
    %2124 = vmatprep.subr.mxu0 0.0
    %2125 = vmatpush1.msra.mxu0 0.0
    %2126 = vmatprep.subr.mxu0 0.0
    %2127 = vmatpush1.msra.mxu0 0.0
    %2128 = vmatprep.subr.mxu0 0.0
    %2129 = vmatpush1.msra.mxu0 0.0
    %2130 = vmatprep.mubr.f32.mxu0 0.0
    %2131 = vmatmul.mubr.f32.gmra.mrb[0].mxu0 %v232
    %v2132 = vpop.f32.mrb[0].mxu0
    %v2133 = vadd.f32 0.0, %v2132
    %v2134 = vpop.f32.mrb[0].mxu0
    %2135 = vdwg.mxu0
    %v2136 = vadd.f32 %v2056, %v2133
    %2137 = vmatprep.subr.mxu0 0.0
    %2138 = vmatpush1.msra.mxu0 %v1966
    %2139 = vmatprep.subr.mxu0 0.0
    %2140 = vmatpush1.msra.mxu0 %v1967
    %2141 = vmatprep.subr.mxu0 0.0
    %2142 = vmatpush1.msra.mxu0 %v1968
    %2143 = vmatprep.subr.mxu0 0.0
    %2144 = vmatpush1.msra.mxu0 %v1969
    %2145 = vmatprep.subr.mxu0 0.0
    %2146 = vmatpush1.msra.mxu0 0.0
    %2147 = vmatprep.subr.mxu0 0.0
    %2148 = vmatpush1.msra.mxu0 0.0
    %2149 = vmatprep.subr.mxu0 0.0
    %2150 = vmatpush1.msra.mxu0 0.0
    %2151 = vmatprep.subr.mxu0 0.0
    %2152 = vmatpush1.msra.mxu0 0.0
    %2153 = vmatprep.subr.mxu0 0.0
    %2154 = vmatpush1.msra.mxu0 0.0
    %2155 = vmatprep.subr.mxu0 0.0
    %2156 = vmatpush1.msra.mxu0 0.0
    %2157 = vmatprep.subr.mxu0 0.0
    %2158 = vmatpush1.msra.mxu0 0.0
    %2159 = vmatprep.subr.mxu0 0.0
    %2160 = vmatpush1.msra.mxu0 0.0
    %2161 = vmatprep.subr.mxu0 0.0
    %2162 = vmatpush1.msra.mxu0 0.0
    %2163 = vmatprep.subr.mxu0 0.0
    %2164 = vmatpush1.msra.mxu0 0.0
    %2165 = vmatprep.subr.mxu0 0.0
    %2166 = vmatpush1.msra.mxu0 0.0
    %2167 = vmatprep.subr.mxu0 0.0
    %2168 = vmatpush1.msra.mxu0 0.0
    %2169 = vmatprep.subr.mxu0 0.0
    %2170 = vmatpush1.msra.mxu0 0.0
    %2171 = vmatprep.subr.mxu0 0.0
    %2172 = vmatpush1.msra.mxu0 0.0
    %2173 = vmatprep.subr.mxu0 0.0
    %2174 = vmatpush1.msra.mxu0 0.0
    %2175 = vmatprep.subr.mxu0 0.0
    %2176 = vmatpush1.msra.mxu0 0.0
    %2177 = vmatprep.subr.mxu0 0.0
    %2178 = vmatpush1.msra.mxu0 0.0
    %2179 = vmatprep.subr.mxu0 0.0
    %2180 = vmatpush1.msra.mxu0 0.0
    %2181 = vmatprep.subr.mxu0 0.0
    %2182 = vmatpush1.msra.mxu0 0.0
    %2183 = vmatprep.subr.mxu0 0.0
    %2184 = vmatpush1.msra.mxu0 0.0
    %2185 = vmatprep.subr.mxu0 0.0
    %2186 = vmatpush1.msra.mxu0 0.0
    %2187 = vmatprep.subr.mxu0 0.0
    %2188 = vmatpush1.msra.mxu0 0.0
    %2189 = vmatprep.subr.mxu0 0.0
    %2190 = vmatpush1.msra.mxu0 0.0
    %2191 = vmatprep.subr.mxu0 0.0
    %2192 = vmatpush1.msra.mxu0 0.0
    %2193 = vmatprep.subr.mxu0 0.0
    %2194 = vmatpush1.msra.mxu0 0.0
    %2195 = vmatprep.subr.mxu0 0.0
    %2196 = vmatpush1.msra.mxu0 0.0
    %2197 = vmatprep.subr.mxu0 0.0
    %2198 = vmatpush1.msra.mxu0 0.0
    %2199 = vmatprep.subr.mxu0 0.0
    %2200 = vmatpush1.msra.mxu0 0.0
    %2201 = vmatprep.mubr.f32.mxu0 0.0
    %2202 = vmatmul.mubr.f32.gmra.mrb[0].mxu0 %v232
    %v2203 = vpop.f32.mrb[0].mxu0
    %v2204 = vadd.f32 0.0, %v2203
    %v2205 = vpop.f32.mrb[0].mxu0
    %2206 = vdwg.mxu0
    %v2208 = vrot.slane %v2204, 2
    %v2210 = vadd.f32 %v2064, %v2208
    %v2211 = vxor.u32 %v2136, 2147483648
    %v2212 = vmul.f32 %v2211, 1.442695
    %v2213 = vpow.pop %v2212
    %v2214 = vadd.f32 %v2213, 1.0
    %v2215 = vrcp.pop %v2214
    %v2216 = vmul.f32 1.0, %v2215
    %v2217 = vtanh.pop %v2136
    %v2218 = vmul.f32 %v2216, 0.0
    %2220 = vrot.lane.b32.xlu0 %v2217, 64
    %v2221 = vpop.permute.xlu0 %2220
    %v2223 = vmul.f32 %v2216, %v2221
    %2225 = vrot.lane.b32.xlu0 %v2223, 32
    %v2226 = vpop.permute.xlu0 %2225
    %v2228 = vadd.f32 %v2218, %v2226
    %v2229 = vtanh.pop %v2228
    %2231 = vrot.lane.b32.xlu0 %v2229, 64
    %v2232 = vpop.permute.xlu0 %2231
    %v2234 = vmul.f32 %v2216, %v2232
    %v2235 = vxor.u32 %v2210, 2147483648
    %v2236 = vmul.f32 %v2235, 1.442695
    %v2237 = vpow.pop %v2236
    %v2238 = vadd.f32 %v2237, 1.0
    %v2239 = vrcp.pop %v2238
    %v2240 = vmul.f32 1.0, %v2239
    %v2241 = vtanh.pop %v2210
    %v2242 = vmul.f32 %v2240, 0.0
    %2244 = vrot.lane.b32.xlu0 %v2241, 64
    %v2245 = vpop.permute.xlu0 %2244
    %v2247 = vmul.f32 %v2240, %v2245
    %2249 = vrot.lane.b32.xlu0 %v2247, 32
    %v2250 = vpop.permute.xlu0 %2249
    %v2252 = vadd.f32 %v2242, %v2250
    %v2253 = vtanh.pop %v2252
    %2255 = vrot.lane.b32.xlu0 %v2253, 64
    %v2256 = vpop.permute.xlu0 %2255
    %v2258 = vmul.f32 %v2240, %v2256
    %2260 = vrot.lane.b32.xlu0 %v2234, 32
    %v2261 = vpop.permute.xlu0 %2260
    %v2262 = vsel %vm147, %v2261, 0
    %2264 = vmatprep.subr.mxu0 0.0
    %2265 = vmatpush1.msra.mxu0 %v1962
    %2266 = vmatprep.subr.mxu0 0.0
    %2267 = vmatpush1.msra.mxu0 %v1963
    %2268 = vmatprep.subr.mxu0 0.0
    %2269 = vmatpush1.msra.mxu0 %v1964
    %2270 = vmatprep.subr.mxu0 0.0
    %2271 = vmatpush1.msra.mxu0 %v1965
    %2272 = vmatprep.subr.mxu0 0.0
    %2273 = vmatpush1.msra.mxu0 0.0
    %2274 = vmatprep.subr.mxu0 0.0
    %2275 = vmatpush1.msra.mxu0 0.0
    %2276 = vmatprep.subr.mxu0 0.0
    %2277 = vmatpush1.msra.mxu0 0.0
    %2278 = vmatprep.subr.mxu0 0.0
    %2279 = vmatpush1.msra.mxu0 0.0
    %2280 = vmatprep.subr.mxu0 0.0
    %2281 = vmatpush1.msra.mxu0 0.0
    %2282 = vmatprep.subr.mxu0 0.0
    %2283 = vmatpush1.msra.mxu0 0.0
    %2284 = vmatprep.subr.mxu0 0.0
    %2285 = vmatpush1.msra.mxu0 0.0
    %2286 = vmatprep.subr.mxu0 0.0
    %2287 = vmatpush1.msra.mxu0 0.0
    %2288 = vmatprep.subr.mxu0 0.0
    %2289 = vmatpush1.msra.mxu0 0.0
    %2290 = vmatprep.subr.mxu0 0.0
    %2291 = vmatpush1.msra.mxu0 0.0
    %2292 = vmatprep.subr.mxu0 0.0
    %2293 = vmatpush1.msra.mxu0 0.0
    %2294 = vmatprep.subr.mxu0 0.0
    %2295 = vmatpush1.msra.mxu0 0.0
    %2296 = vmatprep.subr.mxu0 0.0
    %2297 = vmatpush1.msra.mxu0 0.0
    %2298 = vmatprep.subr.mxu0 0.0
    %2299 = vmatpush1.msra.mxu0 0.0
    %2300 = vmatprep.subr.mxu0 0.0
    %2301 = vmatpush1.msra.mxu0 0.0
    %2302 = vmatprep.subr.mxu0 0.0
    %2303 = vmatpush1.msra.mxu0 0.0
    %2304 = vmatprep.subr.mxu0 0.0
    %2305 = vmatpush1.msra.mxu0 0.0
    %2306 = vmatprep.subr.mxu0 0.0
    %2307 = vmatpush1.msra.mxu0 0.0
    %2308 = vmatprep.subr.mxu0 0.0
    %2309 = vmatpush1.msra.mxu0 0.0
    %2310 = vmatprep.subr.mxu0 0.0
    %2311 = vmatpush1.msra.mxu0 0.0
    %2312 = vmatprep.subr.mxu0 0.0
    %2313 = vmatpush1.msra.mxu0 0.0
    %2314 = vmatprep.subr.mxu0 0.0
    %2315 = vmatpush1.msra.mxu0 0.0
    %2316 = vmatprep.subr.mxu0 0.0
    %2317 = vmatpush1.msra.mxu0 0.0
    %2318 = vmatprep.subr.mxu0 0.0
    %2319 = vmatpush1.msra.mxu0 0.0
    %2320 = vmatprep.subr.mxu0 0.0
    %2321 = vmatpush1.msra.mxu0 0.0
    %2322 = vmatprep.subr.mxu0 0.0
    %2323 = vmatpush1.msra.mxu0 0.0
    %2324 = vmatprep.subr.mxu0 0.0
    %2325 = vmatpush1.msra.mxu0 0.0
    %2326 = vmatprep.subr.mxu0 0.0
    %2327 = vmatpush1.msra.mxu0 0.0
    %2328 = vmatprep.mubr.f32.mxu0 0.0
    %2329 = vmatmul.mubr.f32.gmra.mrb[0].mxu0 %v2262
    %v2330 = vpop.f32.mrb[0].mxu0
    %v2331 = vadd.f32 0.0, %v2330
    %v2332 = vpop.f32.mrb[0].mxu0
    %2333 = vdwg.mxu0
    %v2335 = vrot.slane %v2331, 6
    %v2337 = vadd.f32 %v2056, %v2335
    %v2339 = vrot.slane %v2258, 6
    %2340 = vrot.lane.b32.xlu0 %v2339, 32
    %v2341 = vpop.permute.xlu0 %2340
    %v2342 = vsel %vm147, %v2341, 0
    %2344 = vmatprep.subr.mxu0 0.0
    %2345 = vmatpush1.msra.mxu0 %v1966
    %2346 = vmatprep.subr.mxu0 0.0
    %2347 = vmatpush1.msra.mxu0 %v1967
    %2348 = vmatprep.subr.mxu0 0.0
    %2349 = vmatpush1.msra.mxu0 %v1968
    %2350 = vmatprep.subr.mxu0 0.0
    %2351 = vmatpush1.msra.mxu0 %v1969
    %2352 = vmatprep.subr.mxu0 0.0
    %2353 = vmatpush1.msra.mxu0 0.0
    %2354 = vmatprep.subr.mxu0 0.0
    %2355 = vmatpush1.msra.mxu0 0.0
    %2356 = vmatprep.subr.mxu0 0.0
    %2357 = vmatpush1.msra.mxu0 0.0
    %2358 = vmatprep.subr.mxu0 0.0
    %2359 = vmatpush1.msra.mxu0 0.0
    %2360 = vmatprep.subr.mxu0 0.0
    %2361 = vmatpush1.msra.mxu0 0.0
    %2362 = vmatprep.subr.mxu0 0.0
    %2363 = vmatpush1.msra.mxu0 0.0
    %2364 = vmatprep.subr.mxu0 0.0
    %2365 = vmatpush1.msra.mxu0 0.0
    %2366 = vmatprep.subr.mxu0 0.0
    %2367 = vmatpush1.msra.mxu0 0.0
    %2368 = vmatprep.subr.mxu0 0.0
    %2369 = vmatpush1.msra.mxu0 0.0
    %2370 = vmatprep.subr.mxu0 0.0
    %2371 = vmatpush1.msra.mxu0 0.0
    %2372 = vmatprep.subr.mxu0 0.0
    %2373 = vmatpush1.msra.mxu0 0.0
    %2374 = vmatprep.subr.mxu0 0.0
    %2375 = vmatpush1.msra.mxu0 0.0
    %2376 = vmatprep.subr.mxu0 0.0
    %2377 = vmatpush1.msra.mxu0 0.0
    %2378 = vmatprep.subr.mxu0 0.0
    %2379 = vmatpush1.msra.mxu0 0.0
    %2380 = vmatprep.subr.mxu0 0.0
    %2381 = vmatpush1.msra.mxu0 0.0
    %2382 = vmatprep.subr.mxu0 0.0
    %2383 = vmatpush1.msra.mxu0 0.0
    %2384 = vmatprep.subr.mxu0 0.0
    %2385 = vmatpush1.msra.mxu0 0.0
    %2386 = vmatprep.subr.mxu0 0.0
    %2387 = vmatpush1.msra.mxu0 0.0
    %2388 = vmatprep.subr.mxu0 0.0
    %2389 = vmatpush1.msra.mxu0 0.0
    %2390 = vmatprep.subr.mxu0 0.0
    %2391 = vmatpush1.msra.mxu0 0.0
    %2392 = vmatprep.subr.mxu0 0.0
    %2393 = vmatpush1.msra.mxu0 0.0
    %2394 = vmatprep.subr.mxu0 0.0
    %2395 = vmatpush1.msra.mxu0 0.0
    %2396 = vmatprep.subr.mxu0 0.0
    %2397 = vmatpush1.msra.mxu0 0.0
    %2398 = vmatprep.subr.mxu0 0.0
    %2399 = vmatpush1.msra.mxu0 0.0
    %2400 = vmatprep.subr.mxu0 0.0
    %2401 = vmatpush1.msra.mxu0 0.0
    %2402 = vmatprep.subr.mxu0 0.0
    %2403 = vmatpush1.msra.mxu0 0.0
    %2404 = vmatprep.subr.mxu0 0.0
    %2405 = vmatpush1.msra.mxu0 0.0
    %2406 = vmatprep.subr.mxu0 0.0
    %2407 = vmatpush1.msra.mxu0 0.0
    %2408 = vmatprep.mubr.f32.mxu0 0.0
    %2409 = vmatmul.mubr.f32.gmra.mrb[0].mxu0 %v2342
    %v2410 = vpop.f32.mrb[0].mxu0
    %v2411 = vadd.f32 0.0, %v2410
    %v2412 = vpop.f32.mrb[0].mxu0
    %2413 = vdwg.mxu0
    %v2415 = vrot.slane %v2411, 4
    %v2417 = vadd.f32 %v2064, %v2415
    %v2418 = vxor.u32 %v2337, 2147483648
    %v2419 = vmul.f32 %v2418, 1.442695
    %v2420 = vpow.pop %v2419
    %v2421 = vadd.f32 %v2420, 1.0
    %v2422 = vrcp.pop %v2421
    %v2423 = vmul.f32 1.0, %v2422
    %v2424 = vtanh.pop %v2337
    %v2426 = vrot.slane %v2228, 6
    %v2428 = vmul.f32 %v2423, %v2426
    %2430 = vrot.lane.b32.xlu0 %v2424, 64
    %v2431 = vpop.permute.xlu0 %2430
    %v2433 = vmul.f32 %v2423, %v2431
    %2435 = vrot.lane.b32.xlu0 %v2433, 32
    %v2436 = vpop.permute.xlu0 %2435
    %v2438 = vadd.f32 %v2428, %v2436
    %v2439 = vtanh.pop %v2438
    %2441 = vrot.lane.b32.xlu0 %v2439, 64
    %v2442 = vpop.permute.xlu0 %2441
    %v2444 = vmul.f32 %v2423, %v2442
    %v2445 = vxor.u32 %v2417, 2147483648
    %v2446 = vmul.f32 %v2445, 1.442695
    %v2447 = vpow.pop %v2446
    %v2448 = vadd.f32 %v2447, 1.0
    %v2449 = vrcp.pop %v2448
    %v2450 = vmul.f32 1.0, %v2449
    %v2451 = vtanh.pop %v2417
    %v2453 = vrot.slane %v2252, 2
    %v2455 = vmul.f32 %v2450, %v2453
    %2457 = vrot.lane.b32.xlu0 %v2451, 64
    %v2458 = vpop.permute.xlu0 %2457
    %v2460 = vmul.f32 %v2450, %v2458
    %2462 = vrot.lane.b32.xlu0 %v2460, 32
    %v2463 = vpop.permute.xlu0 %2462
    %v2465 = vadd.f32 %v2455, %v2463
    %v2466 = vtanh.pop %v2465
    %2468 = vrot.lane.b32.xlu0 %v2466, 64
    %v2469 = vpop.permute.xlu0 %2468
    %v2471 = vmul.f32 %v2450, %v2469
    %v2473 = vrot.slane %v2444, 2
    %2474 = vrot.lane.b32.xlu0 %v2473, 32
    %v2475 = vpop.permute.xlu0 %2474
    %v2476 = vsel %vm147, %v2475, 0
    %2478 = vmatprep.subr.mxu0 0.0
    %2479 = vmatpush1.msra.mxu0 %v1962
    %2480 = vmatprep.subr.mxu0 0.0
    %2481 = vmatpush1.msra.mxu0 %v1963
    %2482 = vmatprep.subr.mxu0 0.0
    %2483 = vmatpush1.msra.mxu0 %v1964
    %2484 = vmatprep.subr.mxu0 0.0
    %2485 = vmatpush1.msra.mxu0 %v1965
    %2486 = vmatprep.subr.mxu0 0.0
    %2487 = vmatpush1.msra.mxu0 0.0
    %2488 = vmatprep.subr.mxu0 0.0
    %2489 = vmatpush1.msra.mxu0 0.0
    %2490 = vmatprep.subr.mxu0 0.0
    %2491 = vmatpush1.msra.mxu0 0.0
    %2492 = vmatprep.subr.mxu0 0.0
    %2493 = vmatpush1.msra.mxu0 0.0
    %2494 = vmatprep.subr.mxu0 0.0
    %2495 = vmatpush1.msra.mxu0 0.0
    %2496 = vmatprep.subr.mxu0 0.0
    %2497 = vmatpush1.msra.mxu0 0.0
    %2498 = vmatprep.subr.mxu0 0.0
    %2499 = vmatpush1.msra.mxu0 0.0
    %2500 = vmatprep.subr.mxu0 0.0
    %2501 = vmatpush1.msra.mxu0 0.0
    %2502 = vmatprep.subr.mxu0 0.0
    %2503 = vmatpush1.msra.mxu0 0.0
    %2504 = vmatprep.subr.mxu0 0.0
    %2505 = vmatpush1.msra.mxu0 0.0
    %2506 = vmatprep.subr.mxu0 0.0
    %2507 = vmatpush1.msra.mxu0 0.0
    %2508 = vmatprep.subr.mxu0 0.0
    %2509 = vmatpush1.msra.mxu0 0.0
    %2510 = vmatprep.subr.mxu0 0.0
    %2511 = vmatpush1.msra.mxu0 0.0
    %2512 = vmatprep.subr.mxu0 0.0
    %2513 = vmatpush1.msra.mxu0 0.0
    %2514 = vmatprep.subr.mxu0 0.0
    %2515 = vmatpush1.msra.mxu0 0.0
    %2516 = vmatprep.subr.mxu0 0.0
    %2517 = vmatpush1.msra.mxu0 0.0
    %2518 = vmatprep.subr.mxu0 0.0
    %2519 = vmatpush1.msra.mxu0 0.0
    %2520 = vmatprep.subr.mxu0 0.0
    %2521 = vmatpush1.msra.mxu0 0.0
    %2522 = vmatprep.subr.mxu0 0.0
    %2523 = vmatpush1.msra.mxu0 0.0
    %2524 = vmatprep.subr.mxu0 0.0
    %2525 = vmatpush1.msra.mxu0 0.0
    %2526 = vmatprep.subr.mxu0 0.0
    %2527 = vmatpush1.msra.mxu0 0.0
    %2528 = vmatprep.subr.mxu0 0.0
    %2529 = vmatpush1.msra.mxu0 0.0
    %2530 = vmatprep.subr.mxu0 0.0
    %2531 = vmatpush1.msra.mxu0 0.0
    %2532 = vmatprep.subr.mxu0 0.0
    %2533 = vmatpush1.msra.mxu0 0.0
    %2534 = vmatprep.subr.mxu0 0.0
    %2535 = vmatpush1.msra.mxu0 0.0
    %2536 = vmatprep.subr.mxu0 0.0
    %2537 = vmatpush1.msra.mxu0 0.0
    %2538 = vmatprep.subr.mxu0 0.0
    %2539 = vmatpush1.msra.mxu0 0.0
    %2540 = vmatprep.subr.mxu0 0.0
    %2541 = vmatpush1.msra.mxu0 0.0
    %2542 = vmatprep.mubr.f32.mxu0 0.0
    %2543 = vmatmul.mubr.f32.gmra.mrb[0].mxu0 %v2476
    %v2544 = vpop.f32.mrb[0].mxu0
    %v2545 = vadd.f32 0.0, %v2544
    %v2546 = vpop.f32.mrb[0].mxu0
    %2547 = vdwg.mxu0
    %v2549 = vrot.slane %v2545, 4
    %v2551 = vadd.f32 %v2056, %v2549
    %v2553 = vrot.slane %v2471, 4
    %2554 = vrot.lane.b32.xlu0 %v2553, 32
    %v2555 = vpop.permute.xlu0 %2554
    %v2556 = vsel %vm147, %v2555, 0
    %2558 = vmatprep.subr.mxu0 0.0
    %2559 = vmatpush1.msra.mxu0 %v1966
    %2560 = vmatprep.subr.mxu0 0.0
    %2561 = vmatpush1.msra.mxu0 %v1967
    %2562 = vmatprep.subr.mxu0 0.0
    %2563 = vmatpush1.msra.mxu0 %v1968
    %2564 = vmatprep.subr.mxu0 0.0
    %2565 = vmatpush1.msra.mxu0 %v1969
    %2566 = vmatprep.subr.mxu0 0.0
    %2567 = vmatpush1.msra.mxu0 0.0
    %2568 = vmatprep.subr.mxu0 0.0
    %2569 = vmatpush1.msra.mxu0 0.0
    %2570 = vmatprep.subr.mxu0 0.0
    %2571 = vmatpush1.msra.mxu0 0.0
    %2572 = vmatprep.subr.mxu0 0.0
    %2573 = vmatpush1.msra.mxu0 0.0
    %2574 = vmatprep.subr.mxu0 0.0
    %2575 = vmatpush1.msra.mxu0 0.0
    %2576 = vmatprep.subr.mxu0 0.0
    %2577 = vmatpush1.msra.mxu0 0.0
    %2578 = vmatprep.subr.mxu0 0.0
    %2579 = vmatpush1.msra.mxu0 0.0
    %2580 = vmatprep.subr.mxu0 0.0
    %2581 = vmatpush1.msra.mxu0 0.0
    %2582 = vmatprep.subr.mxu0 0.0
    %2583 = vmatpush1.msra.mxu0 0.0
    %2584 = vmatprep.subr.mxu0 0.0
    %2585 = vmatpush1.msra.mxu0 0.0
    %2586 = vmatprep.subr.mxu0 0.0
    %2587 = vmatpush1.msra.mxu0 0.0
    %2588 = vmatprep.subr.mxu0 0.0
    %2589 = vmatpush1.msra.mxu0 0.0
    %2590 = vmatprep.subr.mxu0 0.0
    %2591 = vmatpush1.msra.mxu0 0.0
    %2592 = vmatprep.subr.mxu0 0.0
    %2593 = vmatpush1.msra.mxu0 0.0
    %2594 = vmatprep.subr.mxu0 0.0
    %2595 = vmatpush1.msra.mxu0 0.0
    %2596 = vmatprep.subr.mxu0 0.0
    %2597 = vmatpush1.msra.mxu0 0.0
    %2598 = vmatprep.subr.mxu0 0.0
    %2599 = vmatpush1.msra.mxu0 0.0
    %2600 = vmatprep.subr.mxu0 0.0
    %2601 = vmatpush1.msra.mxu0 0.0
    %2602 = vmatprep.subr.mxu0 0.0
    %2603 = vmatpush1.msra.mxu0 0.0
    %2604 = vmatprep.subr.mxu0 0.0
    %2605 = vmatpush1.msra.mxu0 0.0
    %2606 = vmatprep.subr.mxu0 0.0
    %2607 = vmatpush1.msra.mxu0 0.0
    %2608 = vmatprep.subr.mxu0 0.0
    %2609 = vmatpush1.msra.mxu0 0.0
    %2610 = vmatprep.subr.mxu0 0.0
    %2611 = vmatpush1.msra.mxu0 0.0
    %2612 = vmatprep.subr.mxu0 0.0
    %2613 = vmatpush1.msra.mxu0 0.0
    %2614 = vmatprep.subr.mxu0 0.0
    %2615 = vmatpush1.msra.mxu0 0.0
    %2616 = vmatprep.subr.mxu0 0.0
    %2617 = vmatpush1.msra.mxu0 0.0
    %2618 = vmatprep.subr.mxu0 0.0
    %2619 = vmatpush1.msra.mxu0 0.0
    %2620 = vmatprep.subr.mxu0 0.0
    %2621 = vmatpush1.msra.mxu0 0.0
    %2622 = vmatprep.mubr.f32.mxu0 0.0
    %2623 = vmatmul.mubr.f32.gmra.mrb[0].mxu0 %v2556
    %v2624 = vpop.f32.mrb[0].mxu0
    %v2625 = vadd.f32 0.0, %v2624
    %v2626 = vpop.f32.mrb[0].mxu0
    %2627 = vdwg.mxu0
    %v2629 = vrot.slane %v2625, 6
    %v2631 = vadd.f32 %v2064, %v2629
    %v2632 = vxor.u32 %v2551, 2147483648
    %v2633 = vmul.f32 %v2632, 1.442695
    %v2634 = vpow.pop %v2633
    %v2635 = vadd.f32 %v2634, 1.0
    %v2636 = vrcp.pop %v2635
    %v2637 = vmul.f32 1.0, %v2636
    %v2638 = vtanh.pop %v2551
    %v2640 = vrot.slane %v2438, 6
    %v2642 = vmul.f32 %v2637, %v2640
    %2644 = vrot.lane.b32.xlu0 %v2638, 64
    %v2645 = vpop.permute.xlu0 %2644
    %v2647 = vmul.f32 %v2637, %v2645
    %2649 = vrot.lane.b32.xlu0 %v2647, 32
    %v2650 = vpop.permute.xlu0 %2649
    %v2652 = vadd.f32 %v2642, %v2650
    %v2653 = vtanh.pop %v2652
    %2655 = vrot.lane.b32.xlu0 %v2653, 64
    %v2656 = vpop.permute.xlu0 %2655
    %v2658 = vmul.f32 %v2637, %v2656
    %v2659 = vxor.u32 %v2631, 2147483648
    %v2660 = vmul.f32 %v2659, 1.442695
    %v2661 = vpow.pop %v2660
    %v2662 = vadd.f32 %v2661, 1.0
    %v2663 = vrcp.pop %v2662
    %v2664 = vmul.f32 1.0, %v2663
    %v2665 = vtanh.pop %v2631
    %v2667 = vrot.slane %v2465, 2
    %v2669 = vmul.f32 %v2664, %v2667
    %2671 = vrot.lane.b32.xlu0 %v2665, 64
    %v2672 = vpop.permute.xlu0 %2671
    %v2674 = vmul.f32 %v2664, %v2672
    %2676 = vrot.lane.b32.xlu0 %v2674, 32
    %v2677 = vpop.permute.xlu0 %2676
    %v2679 = vadd.f32 %v2669, %v2677
    %v2680 = vtanh.pop %v2679
    %2682 = vrot.lane.b32.xlu0 %v2680, 64
    %v2683 = vpop.permute.xlu0 %2682
    %v2685 = vmul.f32 %v2664, %v2683
    %v2687 = vrot.slane %v2658, 4
    %2688 = vrot.lane.b32.xlu0 %v2687, 32
    %v2689 = vpop.permute.xlu0 %2688
    %v2690 = vsel %vm147, %v2689, 0
    %2692 = vmatprep.subr.mxu0 0.0
    %2693 = vmatpush1.msra.mxu0 %v1962
    %2694 = vmatprep.subr.mxu0 0.0
    %2695 = vmatpush1.msra.mxu0 %v1963
    %2696 = vmatprep.subr.mxu0 0.0
    %2697 = vmatpush1.msra.mxu0 %v1964
    %2698 = vmatprep.subr.mxu0 0.0
    %2699 = vmatpush1.msra.mxu0 %v1965
    %2700 = vmatprep.subr.mxu0 0.0
    %2701 = vmatpush1.msra.mxu0 0.0
    %2702 = vmatprep.subr.mxu0 0.0
    %2703 = vmatpush1.msra.mxu0 0.0
    %2704 = vmatprep.subr.mxu0 0.0
    %2705 = vmatpush1.msra.mxu0 0.0
    %2706 = vmatprep.subr.mxu0 0.0
    %2707 = vmatpush1.msra.mxu0 0.0
    %2708 = vmatprep.subr.mxu0 0.0
    %2709 = vmatpush1.msra.mxu0 0.0
    %2710 = vmatprep.subr.mxu0 0.0
    %2711 = vmatpush1.msra.mxu0 0.0
    %2712 = vmatprep.subr.mxu0 0.0
    %2713 = vmatpush1.msra.mxu0 0.0
    %2714 = vmatprep.subr.mxu0 0.0
    %2715 = vmatpush1.msra.mxu0 0.0
    %2716 = vmatprep.subr.mxu0 0.0
    %2717 = vmatpush1.msra.mxu0 0.0
    %2718 = vmatprep.subr.mxu0 0.0
    %2719 = vmatpush1.msra.mxu0 0.0
    %2720 = vmatprep.subr.mxu0 0.0
    %2721 = vmatpush1.msra.mxu0 0.0
    %2722 = vmatprep.subr.mxu0 0.0
    %2723 = vmatpush1.msra.mxu0 0.0
    %2724 = vmatprep.subr.mxu0 0.0
    %2725 = vmatpush1.msra.mxu0 0.0
    %2726 = vmatprep.subr.mxu0 0.0
    %2727 = vmatpush1.msra.mxu0 0.0
    %2728 = vmatprep.subr.mxu0 0.0
    %2729 = vmatpush1.msra.mxu0 0.0
    %2730 = vmatprep.subr.mxu0 0.0
    %2731 = vmatpush1.msra.mxu0 0.0
    %2732 = vmatprep.subr.mxu0 0.0
    %2733 = vmatpush1.msra.mxu0 0.0
    %2734 = vmatprep.subr.mxu0 0.0
    %2735 = vmatpush1.msra.mxu0 0.0
    %2736 = vmatprep.subr.mxu0 0.0
    %2737 = vmatpush1.msra.mxu0 0.0
    %2738 = vmatprep.subr.mxu0 0.0
    %2739 = vmatpush1.msra.mxu0 0.0
    %2740 = vmatprep.subr.mxu0 0.0
    %2741 = vmatpush1.msra.mxu0 0.0
    %2742 = vmatprep.subr.mxu0 0.0
    %2743 = vmatpush1.msra.mxu0 0.0
    %2744 = vmatprep.subr.mxu0 0.0
    %2745 = vmatpush1.msra.mxu0 0.0
    %2746 = vmatprep.subr.mxu0 0.0
    %2747 = vmatpush1.msra.mxu0 0.0
    %2748 = vmatprep.subr.mxu0 0.0
    %2749 = vmatpush1.msra.mxu0 0.0
    %2750 = vmatprep.subr.mxu0 0.0
    %2751 = vmatpush1.msra.mxu0 0.0
    %2752 = vmatprep.subr.mxu0 0.0
    %2753 = vmatpush1.msra.mxu0 0.0
    %2754 = vmatprep.subr.mxu0 0.0
    %2755 = vmatpush1.msra.mxu0 0.0
    %2756 = vmatprep.mubr.f32.mxu0 0.0
    %2757 = vmatmul.mubr.f32.gmra.mrb[0].mxu0 %v2690
    %v2758 = vpop.f32.mrb[0].mxu0
    %v2759 = vadd.f32 0.0, %v2758
    %v2760 = vpop.f32.mrb[0].mxu0
    %2761 = vdwg.mxu0
    %v2763 = vrot.slane %v2759, 2
    %v2765 = vadd.f32 %v2056, %v2763
    %v2767 = vrot.slane %v2685, 2
    %2768 = vrot.lane.b32.xlu0 %v2767, 32
    %v2769 = vpop.permute.xlu0 %2768
    %v2770 = vsel %vm147, %v2769, 0
    %2772 = vmatprep.subr.mxu0 0.0
    %2773 = vmatpush1.msra.mxu0 %v1966
    %2774 = vmatprep.subr.mxu0 0.0
    %2775 = vmatpush1.msra.mxu0 %v1967
    %2776 = vmatprep.subr.mxu0 0.0
    %2777 = vmatpush1.msra.mxu0 %v1968
    %2778 = vmatprep.subr.mxu0 0.0
    %2779 = vmatpush1.msra.mxu0 %v1969
    %2780 = vmatprep.subr.mxu0 0.0
    %2781 = vmatpush1.msra.mxu0 0.0
    %2782 = vmatprep.subr.mxu0 0.0
    %2783 = vmatpush1.msra.mxu0 0.0
    %2784 = vmatprep.subr.mxu0 0.0
    %2785 = vmatpush1.msra.mxu0 0.0
    %2786 = vmatprep.subr.mxu0 0.0
    %2787 = vmatpush1.msra.mxu0 0.0
    %2788 = vmatprep.subr.mxu0 0.0
    %2789 = vmatpush1.msra.mxu0 0.0
    %2790 = vmatprep.subr.mxu0 0.0
    %2791 = vmatpush1.msra.mxu0 0.0
    %2792 = vmatprep.subr.mxu0 0.0
    %2793 = vmatpush1.msra.mxu0 0.0
    %2794 = vmatprep.subr.mxu0 0.0
    %2795 = vmatpush1.msra.mxu0 0.0
    %2796 = vmatprep.subr.mxu0 0.0
    %2797 = vmatpush1.msra.mxu0 0.0
    %2798 = vmatprep.subr.mxu0 0.0
    %2799 = vmatpush1.msra.mxu0 0.0
    %2800 = vmatprep.subr.mxu0 0.0
    %2801 = vmatpush1.msra.mxu0 0.0
    %2802 = vmatprep.subr.mxu0 0.0
    %2803 = vmatpush1.msra.mxu0 0.0
    %2804 = vmatprep.subr.mxu0 0.0
    %2805 = vmatpush1.msra.mxu0 0.0
    %2806 = vmatprep.subr.mxu0 0.0
    %2807 = vmatpush1.msra.mxu0 0.0
    %2808 = vmatprep.subr.mxu0 0.0
    %2809 = vmatpush1.msra.mxu0 0.0
    %2810 = vmatprep.subr.mxu0 0.0
    %2811 = vmatpush1.msra.mxu0 0.0
    %2812 = vmatprep.subr.mxu0 0.0
    %2813 = vmatpush1.msra.mxu0 0.0
    %2814 = vmatprep.subr.mxu0 0.0
    %2815 = vmatpush1.msra.mxu0 0.0
    %2816 = vmatprep.subr.mxu0 0.0
    %2817 = vmatpush1.msra.mxu0 0.0
    %2818 = vmatprep.subr.mxu0 0.0
    %2819 = vmatpush1.msra.mxu0 0.0
    %2820 = vmatprep.subr.mxu0 0.0
    %2821 = vmatpush1.msra.mxu0 0.0
    %2822 = vmatprep.subr.mxu0 0.0
    %2823 = vmatpush1.msra.mxu0 0.0
    %2824 = vmatprep.subr.mxu0 0.0
    %2825 = vmatpush1.msra.mxu0 0.0
    %2826 = vmatprep.subr.mxu0 0.0
    %2827 = vmatpush1.msra.mxu0 0.0
    %2828 = vmatprep.subr.mxu0 0.0
    %2829 = vmatpush1.msra.mxu0 0.0
    %2830 = vmatprep.subr.mxu0 0.0
    %2831 = vmatpush1.msra.mxu0 0.0
    %2832 = vmatprep.subr.mxu0 0.0
    %2833 = vmatpush1.msra.mxu0 0.0
    %2834 = vmatprep.subr.mxu0 0.0
    %2835 = vmatpush1.msra.mxu0 0.0
    %2836 = vmatprep.mubr.f32.mxu0 0.0
    %2837 = vmatmul.mubr.f32.gmra.mrb[0].mxu0 %v2770
    %v2838 = vpop.f32.mrb[0].mxu0
    %v2839 = vadd.f32 0.0, %v2838
    %v2840 = vpop.f32.mrb[0].mxu0
    %2841 = vdwg.mxu0
    %v2842 = vadd.f32 %v2064, %v2839
    %v2843 = vxor.u32 %v2765, 2147483648
    %v2844 = vmul.f32 %v2843, 1.442695
    %v2845 = vpow.pop %v2844
    %v2846 = vadd.f32 %v2845, 1.0
    %v2847 = vrcp.pop %v2846
    %v2848 = vmul.f32 1.0, %v2847
    %v2849 = vtanh.pop %v2765
    %v2851 = vrot.slane %v2652, 6
    %v2853 = vmul.f32 %v2848, %v2851
    %2855 = vrot.lane.b32.xlu0 %v2849, 64
    %v2856 = vpop.permute.xlu0 %2855
    %v2858 = vmul.f32 %v2848, %v2856
    %2860 = vrot.lane.b32.xlu0 %v2858, 32
    %v2861 = vpop.permute.xlu0 %2860
    %v2863 = vadd.f32 %v2853, %v2861
    %v2864 = vtanh.pop %v2863
    %2866 = vrot.lane.b32.xlu0 %v2864, 64
    %v2867 = vpop.permute.xlu0 %2866
    %v2869 = vmul.f32 %v2848, %v2867
    %v2870 = vxor.u32 %v2842, 2147483648
    %v2871 = vmul.f32 %v2870, 1.442695
    %v2872 = vpow.pop %v2871
    %v2873 = vadd.f32 %v2872, 1.0
    %v2874 = vrcp.pop %v2873
    %v2875 = vmul.f32 1.0, %v2874
    %v2876 = vtanh.pop %v2842
    %v2878 = vrot.slane %v2679, 2
    %v2880 = vmul.f32 %v2875, %v2878
    %2882 = vrot.lane.b32.xlu0 %v2876, 64
    %v2883 = vpop.permute.xlu0 %2882
    %v2885 = vmul.f32 %v2875, %v2883
    %2887 = vrot.lane.b32.xlu0 %v2885, 32
    %v2888 = vpop.permute.xlu0 %2887
    %v2890 = vadd.f32 %v2880, %v2888
    %v2891 = vtanh.pop %v2890
    %2893 = vrot.lane.b32.xlu0 %v2891, 64
    %v2894 = vpop.permute.xlu0 %2893
    %v2896 = vmul.f32 %v2875, %v2894
    %v2898 = vrot.slane %v2869, 6
    %2899 = vrot.lane.b32.xlu0 %v2898, 32
    %v2900 = vpop.permute.xlu0 %2899
    %v2901 = vsel %vm147, %v2900, 0
    %2903 = vmatprep.subr.mxu0 0.0
    %2904 = vmatpush1.msra.mxu0 %v1962
    %2905 = vmatprep.subr.mxu0 0.0
    %2906 = vmatpush1.msra.mxu0 %v1963
    %2907 = vmatprep.subr.mxu0 0.0
    %2908 = vmatpush1.msra.mxu0 %v1964
    %2909 = vmatprep.subr.mxu0 0.0
    %2910 = vmatpush1.msra.mxu0 %v1965
    %2911 = vmatprep.subr.mxu0 0.0
    %2912 = vmatpush1.msra.mxu0 0.0
    %2913 = vmatprep.subr.mxu0 0.0
    %2914 = vmatpush1.msra.mxu0 0.0
    %2915 = vmatprep.subr.mxu0 0.0
    %2916 = vmatpush1.msra.mxu0 0.0
    %2917 = vmatprep.subr.mxu0 0.0
    %2918 = vmatpush1.msra.mxu0 0.0
    %2919 = vmatprep.subr.mxu0 0.0
    %2920 = vmatpush1.msra.mxu0 0.0
    %2921 = vmatprep.subr.mxu0 0.0
    %2922 = vmatpush1.msra.mxu0 0.0
    %2923 = vmatprep.subr.mxu0 0.0
    %2924 = vmatpush1.msra.mxu0 0.0
    %2925 = vmatprep.subr.mxu0 0.0
    %2926 = vmatpush1.msra.mxu0 0.0
    %2927 = vmatprep.subr.mxu0 0.0
    %2928 = vmatpush1.msra.mxu0 0.0
    %2929 = vmatprep.subr.mxu0 0.0
    %2930 = vmatpush1.msra.mxu0 0.0
    %2931 = vmatprep.subr.mxu0 0.0
    %2932 = vmatpush1.msra.mxu0 0.0
    %2933 = vmatprep.subr.mxu0 0.0
    %2934 = vmatpush1.msra.mxu0 0.0
    %2935 = vmatprep.subr.mxu0 0.0
    %2936 = vmatpush1.msra.mxu0 0.0
    %2937 = vmatprep.subr.mxu0 0.0
    %2938 = vmatpush1.msra.mxu0 0.0
    %2939 = vmatprep.subr.mxu0 0.0
    %2940 = vmatpush1.msra.mxu0 0.0
    %2941 = vmatprep.subr.mxu0 0.0
    %2942 = vmatpush1.msra.mxu0 0.0
    %2943 = vmatprep.subr.mxu0 0.0
    %2944 = vmatpush1.msra.mxu0 0.0
    %2945 = vmatprep.subr.mxu0 0.0
    %2946 = vmatpush1.msra.mxu0 0.0
    %2947 = vmatprep.subr.mxu0 0.0
    %2948 = vmatpush1.msra.mxu0 0.0
    %2949 = vmatprep.subr.mxu0 0.0
    %2950 = vmatpush1.msra.mxu0 0.0
    %2951 = vmatprep.subr.mxu0 0.0
    %2952 = vmatpush1.msra.mxu0 0.0
    %2953 = vmatprep.subr.mxu0 0.0
    %2954 = vmatpush1.msra.mxu0 0.0
    %2955 = vmatprep.subr.mxu0 0.0
    %2956 = vmatpush1.msra.mxu0 0.0
    %2957 = vmatprep.subr.mxu0 0.0
    %2958 = vmatpush1.msra.mxu0 0.0
    %2959 = vmatprep.subr.mxu0 0.0
    %2960 = vmatpush1.msra.mxu0 0.0
    %2961 = vmatprep.subr.mxu0 0.0
    %2962 = vmatpush1.msra.mxu0 0.0
    %2963 = vmatprep.subr.mxu0 0.0
    %2964 = vmatpush1.msra.mxu0 0.0
    %2965 = vmatprep.subr.mxu0 0.0
    %2966 = vmatpush1.msra.mxu0 0.0
    %2967 = vmatprep.mubr.f32.mxu0 0.0
    %2968 = vmatmul.mubr.f32.gmra.mrb[0].mxu0 %v2901
    %v2969 = vpop.f32.mrb[0].mxu0
    %v2970 = vadd.f32 0.0, %v2969
    %v2971 = vpop.f32.mrb[0].mxu0
    %2972 = vdwg.mxu0
    %v2973 = vadd.f32 %v2062, %v2970
    %2975 = vrot.lane.b32.xlu0 %v2896, 32
    %v2976 = vpop.permute.xlu0 %2975
    %v2977 = vsel %vm147, %v2976, 0
    %2979 = vmatprep.subr.mxu0 0.0
    %2980 = vmatpush1.msra.mxu0 %v1966
    %2981 = vmatprep.subr.mxu0 0.0
    %2982 = vmatpush1.msra.mxu0 %v1967
    %2983 = vmatprep.subr.mxu0 0.0
    %2984 = vmatpush1.msra.mxu0 %v1968
    %2985 = vmatprep.subr.mxu0 0.0
    %2986 = vmatpush1.msra.mxu0 %v1969
    %2987 = vmatprep.subr.mxu0 0.0
    %2988 = vmatpush1.msra.mxu0 0.0
    %2989 = vmatprep.subr.mxu0 0.0
    %2990 = vmatpush1.msra.mxu0 0.0
    %2991 = vmatprep.subr.mxu0 0.0
    %2992 = vmatpush1.msra.mxu0 0.0
    %2993 = vmatprep.subr.mxu0 0.0
    %2994 = vmatpush1.msra.mxu0 0.0
    %2995 = vmatprep.subr.mxu0 0.0
    %2996 = vmatpush1.msra.mxu0 0.0
    %2997 = vmatprep.subr.mxu0 0.0
    %2998 = vmatpush1.msra.mxu0 0.0
    %2999 = vmatprep.subr.mxu0 0.0
    %3000 = vmatpush1.msra.mxu0 0.0
    %3001 = vmatprep.subr.mxu0 0.0
    %3002 = vmatpush1.msra.mxu0 0.0
    %3003 = vmatprep.subr.mxu0 0.0
    %3004 = vmatpush1.msra.mxu0 0.0
    %3005 = vmatprep.subr.mxu0 0.0
    %3006 = vmatpush1.msra.mxu0 0.0
    %3007 = vmatprep.subr.mxu0 0.0
    %3008 = vmatpush1.msra.mxu0 0.0
    %3009 = vmatprep.subr.mxu0 0.0
    %3010 = vmatpush1.msra.mxu0 0.0
    %3011 = vmatprep.subr.mxu0 0.0
    %3012 = vmatpush1.msra.mxu0 0.0
    %3013 = vmatprep.subr.mxu0 0.0
    %3014 = vmatpush1.msra.mxu0 0.0
    %3015 = vmatprep.subr.mxu0 0.0
    %3016 = vmatpush1.msra.mxu0 0.0
    %3017 = vmatprep.subr.mxu0 0.0
    %3018 = vmatpush1.msra.mxu0 0.0
    %3019 = vmatprep.subr.mxu0 0.0
    %3020 = vmatpush1.msra.mxu0 0.0
    %3021 = vmatprep.subr.mxu0 0.0
    %3022 = vmatpush1.msra.mxu0 0.0
    %3023 = vmatprep.subr.mxu0 0.0
    %3024 = vmatpush1.msra.mxu0 0.0
    %3025 = vmatprep.subr.mxu0 0.0
    %3026 = vmatpush1.msra.mxu0 0.0
    %3027 = vmatprep.subr.mxu0 0.0
    %3028 = vmatpush1.msra.mxu0 0.0
    %3029 = vmatprep.subr.mxu0 0.0
    %3030 = vmatpush1.msra.mxu0 0.0
    %3031 = vmatprep.subr.mxu0 0.0
    %3032 = vmatpush1.msra.mxu0 0.0
    %3033 = vmatprep.subr.mxu0 0.0
    %3034 = vmatpush1.msra.mxu0 0.0
    %3035 = vmatprep.subr.mxu0 0.0
    %3036 = vmatpush1.msra.mxu0 0.0
    %3037 = vmatprep.subr.mxu0 0.0
    %3038 = vmatpush1.msra.mxu0 0.0
    %3039 = vmatprep.subr.mxu0 0.0
    %3040 = vmatpush1.msra.mxu0 0.0
    %3041 = vmatprep.subr.mxu0 0.0
    %3042 = vmatpush1.msra.mxu0 0.0
    %3043 = vmatprep.mubr.f32.mxu0 0.0
    %3044 = vmatmul.mubr.f32.gmra.mrb[0].mxu0 %v2977
    %v3045 = vpop.f32.mrb[0].mxu0
    %v3046 = vadd.f32 0.0, %v3045
    %v3047 = vpop.f32.mrb[0].mxu0
    %3048 = vdwg.mxu0
    %v3050 = vrot.slane %v3046, 2
    %v3052 = vadd.f32 %v2058, %v3050
    %v3053 = vxor.u32 %v2973, 2147483648
    %v3054 = vmul.f32 %v3053, 1.442695
    %v3055 = vpow.pop %v3054
    %v3056 = vadd.f32 %v3055, 1.0
    %v3057 = vrcp.pop %v3056
    %v3058 = vmul.f32 1.0, %v3057
    %v3059 = vtanh.pop %v2973
    %v3061 = vrot.slane %v2863, 6
    %v3063 = vmul.f32 %v3058, %v3061
    %3065 = vrot.lane.b32.xlu0 %v3059, 64
    %v3066 = vpop.permute.xlu0 %3065
    %v3068 = vmul.f32 %v3058, %v3066
    %3070 = vrot.lane.b32.xlu0 %v3068, 32
    %v3071 = vpop.permute.xlu0 %3070
    %v3073 = vadd.f32 %v3063, %v3071
    %v3074 = vtanh.pop %v3073
    %3076 = vrot.lane.b32.xlu0 %v3074, 64
    %v3077 = vpop.permute.xlu0 %3076
    %v3079 = vmul.f32 %v3058, %v3077
    %v3080 = vxor.u32 %v3052, 2147483648
    %v3081 = vmul.f32 %v3080, 1.442695
    %v3082 = vpow.pop %v3081
    %v3083 = vadd.f32 %v3082, 1.0
    %v3084 = vrcp.pop %v3083
    %v3085 = vmul.f32 1.0, %v3084
    %v3086 = vtanh.pop %v3052
    %v3088 = vrot.slane %v2890, 2
    %v3090 = vmul.f32 %v3085, %v3088
    %3092 = vrot.lane.b32.xlu0 %v3086, 64
    %v3093 = vpop.permute.xlu0 %3092
    %v3095 = vmul.f32 %v3085, %v3093
    %3097 = vrot.lane.b32.xlu0 %v3095, 32
    %v3098 = vpop.permute.xlu0 %3097
    %v3100 = vadd.f32 %v3090, %v3098
    %v3101 = vtanh.pop %v3100
    %3103 = vrot.lane.b32.xlu0 %v3101, 64
    %v3104 = vpop.permute.xlu0 %3103
    %v3106 = vmul.f32 %v3085, %v3104
    %3108 = vrot.lane.b32.xlu0 %v3079, 32
    %v3109 = vpop.permute.xlu0 %3108
    %v3110 = vsel %vm147, %v3109, 0
    %3112 = vmatprep.subr.mxu0 0.0
    %3113 = vmatpush1.msra.mxu0 %v1962
    %3114 = vmatprep.subr.mxu0 0.0
    %3115 = vmatpush1.msra.mxu0 %v1963
    %3116 = vmatprep.subr.mxu0 0.0
    %3117 = vmatpush1.msra.mxu0 %v1964
    %3118 = vmatprep.subr.mxu0 0.0
    %3119 = vmatpush1.msra.mxu0 %v1965
    %3120 = vmatprep.subr.mxu0 0.0
    %3121 = vmatpush1.msra.mxu0 0.0
    %3122 = vmatprep.subr.mxu0 0.0
    %3123 = vmatpush1.msra.mxu0 0.0
    %3124 = vmatprep.subr.mxu0 0.0
    %3125 = vmatpush1.msra.mxu0 0.0
    %3126 = vmatprep.subr.mxu0 0.0
    %3127 = vmatpush1.msra.mxu0 0.0
    %3128 = vmatprep.subr.mxu0 0.0
    %3129 = vmatpush1.msra.mxu0 0.0
    %3130 = vmatprep.subr.mxu0 0.0
    %3131 = vmatpush1.msra.mxu0 0.0
    %3132 = vmatprep.subr.mxu0 0.0
    %3133 = vmatpush1.msra.mxu0 0.0
    %3134 = vmatprep.subr.mxu0 0.0
    %3135 = vmatpush1.msra.mxu0 0.0
    %3136 = vmatprep.subr.mxu0 0.0
    %3137 = vmatpush1.msra.mxu0 0.0
    %3138 = vmatprep.subr.mxu0 0.0
    %3139 = vmatpush1.msra.mxu0 0.0
    %3140 = vmatprep.subr.mxu0 0.0
    %3141 = vmatpush1.msra.mxu0 0.0
    %3142 = vmatprep.subr.mxu0 0.0
    %3143 = vmatpush1.msra.mxu0 0.0
    %3144 = vmatprep.subr.mxu0 0.0
    %3145 = vmatpush1.msra.mxu0 0.0
    %3146 = vmatprep.subr.mxu0 0.0
    %3147 = vmatpush1.msra.mxu0 0.0
    %3148 = vmatprep.subr.mxu0 0.0
    %3149 = vmatpush1.msra.mxu0 0.0
    %3150 = vmatprep.subr.mxu0 0.0
    %3151 = vmatpush1.msra.mxu0 0.0
    %3152 = vmatprep.subr.mxu0 0.0
    %3153 = vmatpush1.msra.mxu0 0.0
    %3154 = vmatprep.subr.mxu0 0.0
    %3155 = vmatpush1.msra.mxu0 0.0
    %3156 = vmatprep.subr.mxu0 0.0
    %3157 = vmatpush1.msra.mxu0 0.0
    %3158 = vmatprep.subr.mxu0 0.0
    %3159 = vmatpush1.msra.mxu0 0.0
    %3160 = vmatprep.subr.mxu0 0.0
    %3161 = vmatpush1.msra.mxu0 0.0
    %3162 = vmatprep.subr.mxu0 0.0
    %3163 = vmatpush1.msra.mxu0 0.0
    %3164 = vmatprep.subr.mxu0 0.0
    %3165 = vmatpush1.msra.mxu0 0.0
    %3166 = vmatprep.subr.mxu0 0.0
    %3167 = vmatpush1.msra.mxu0 0.0
    %3168 = vmatprep.subr.mxu0 0.0
    %3169 = vmatpush1.msra.mxu0 0.0
    %3170 = vmatprep.subr.mxu0 0.0
    %3171 = vmatpush1.msra.mxu0 0.0
    %3172 = vmatprep.subr.mxu0 0.0
    %3173 = vmatpush1.msra.mxu0 0.0
    %3174 = vmatprep.subr.mxu0 0.0
    %3175 = vmatpush1.msra.mxu0 0.0
    %3176 = vmatprep.mubr.f32.mxu0 0.0
    %3177 = vmatmul.mubr.f32.gmra.mrb[0].mxu0 %v3110
    %v3178 = vpop.f32.mrb[0].mxu0
    %v3179 = vadd.f32 0.0, %v3178
    %v3180 = vpop.f32.mrb[0].mxu0
    %3181 = vdwg.mxu0
    %v3183 = vrot.slane %v3179, 6
    %v3185 = vadd.f32 %v2062, %v3183
    %v3187 = vrot.slane %v3106, 6
    %3188 = vrot.lane.b32.xlu0 %v3187, 32
    %v3189 = vpop.permute.xlu0 %3188
    %v3190 = vsel %vm147, %v3189, 0
    %3192 = vmatprep.subr.mxu0 0.0
    %3193 = vmatpush1.msra.mxu0 %v1966
    %3194 = vmatprep.subr.mxu0 0.0
    %3195 = vmatpush1.msra.mxu0 %v1967
    %3196 = vmatprep.subr.mxu0 0.0
    %3197 = vmatpush1.msra.mxu0 %v1968
    %3198 = vmatprep.subr.mxu0 0.0
    %3199 = vmatpush1.msra.mxu0 %v1969
    %3200 = vmatprep.subr.mxu0 0.0
    %3201 = vmatpush1.msra.mxu0 0.0
    %3202 = vmatprep.subr.mxu0 0.0
    %3203 = vmatpush1.msra.mxu0 0.0
    %3204 = vmatprep.subr.mxu0 0.0
    %3205 = vmatpush1.msra.mxu0 0.0
    %3206 = vmatprep.subr.mxu0 0.0
    %3207 = vmatpush1.msra.mxu0 0.0
    %3208 = vmatprep.subr.mxu0 0.0
    %3209 = vmatpush1.msra.mxu0 0.0
    %3210 = vmatprep.subr.mxu0 0.0
    %3211 = vmatpush1.msra.mxu0 0.0
    %3212 = vmatprep.subr.mxu0 0.0
    %3213 = vmatpush1.msra.mxu0 0.0
    %3214 = vmatprep.subr.mxu0 0.0
    %3215 = vmatpush1.msra.mxu0 0.0
    %3216 = vmatprep.subr.mxu0 0.0
    %3217 = vmatpush1.msra.mxu0 0.0
    %3218 = vmatprep.subr.mxu0 0.0
    %3219 = vmatpush1.msra.mxu0 0.0
    %3220 = vmatprep.subr.mxu0 0.0
    %3221 = vmatpush1.msra.mxu0 0.0
    %3222 = vmatprep.subr.mxu0 0.0
    %3223 = vmatpush1.msra.mxu0 0.0
    %3224 = vmatprep.subr.mxu0 0.0
    %3225 = vmatpush1.msra.mxu0 0.0
    %3226 = vmatprep.subr.mxu0 0.0
    %3227 = vmatpush1.msra.mxu0 0.0
    %3228 = vmatprep.subr.mxu0 0.0
    %3229 = vmatpush1.msra.mxu0 0.0
    %3230 = vmatprep.subr.mxu0 0.0
    %3231 = vmatpush1.msra.mxu0 0.0
    %3232 = vmatprep.subr.mxu0 0.0
    %3233 = vmatpush1.msra.mxu0 0.0
    %3234 = vmatprep.subr.mxu0 0.0
    %3235 = vmatpush1.msra.mxu0 0.0
    %3236 = vmatprep.subr.mxu0 0.0
    %3237 = vmatpush1.msra.mxu0 0.0
    %3238 = vmatprep.subr.mxu0 0.0
    %3239 = vmatpush1.msra.mxu0 0.0
    %3240 = vmatprep.subr.mxu0 0.0
    %3241 = vmatpush1.msra.mxu0 0.0
    %3242 = vmatprep.subr.mxu0 0.0
    %3243 = vmatpush1.msra.mxu0 0.0
    %3244 = vmatprep.subr.mxu0 0.0
    %3245 = vmatpush1.msra.mxu0 0.0
    %3246 = vmatprep.subr.mxu0 0.0
    %3247 = vmatpush1.msra.mxu0 0.0
    %3248 = vmatprep.subr.mxu0 0.0
    %3249 = vmatpush1.msra.mxu0 0.0
    %3250 = vmatprep.subr.mxu0 0.0
    %3251 = vmatpush1.msra.mxu0 0.0
    %3252 = vmatprep.subr.mxu0 0.0
    %3253 = vmatpush1.msra.mxu0 0.0
    %3254 = vmatprep.subr.mxu0 0.0
    %3255 = vmatpush1.msra.mxu0 0.0
    %3256 = vmatprep.mubr.f32.mxu0 0.0
    %3257 = vmatmul.mubr.f32.gmra.mrb[0].mxu0 %v3190
    %v3258 = vpop.f32.mrb[0].mxu0
    %v3259 = vadd.f32 0.0, %v3258
    %v3260 = vpop.f32.mrb[0].mxu0
    %3261 = vdwg.mxu0
    %v3263 = vrot.slane %v3259, 4
    %v3265 = vadd.f32 %v2058, %v3263
    %v3266 = vxor.u32 %v3185, 2147483648
    %v3267 = vmul.f32 %v3266, 1.442695
    %v3268 = vpow.pop %v3267
    %v3269 = vadd.f32 %v3268, 1.0
    %v3270 = vrcp.pop %v3269
    %v3271 = vmul.f32 1.0, %v3270
    %v3272 = vtanh.pop %v3185
    %v3274 = vrot.slane %v3073, 6
    %v3276 = vmul.f32 %v3271, %v3274
    %3278 = vrot.lane.b32.xlu0 %v3272, 64
    %v3279 = vpop.permute.xlu0 %3278
    %v3281 = vmul.f32 %v3271, %v3279
    %3283 = vrot.lane.b32.xlu0 %v3281, 32
    %v3284 = vpop.permute.xlu0 %3283
    %v3286 = vadd.f32 %v3276, %v3284
    %v3287 = vtanh.pop %v3286
    %3289 = vrot.lane.b32.xlu0 %v3287, 64
    %v3290 = vpop.permute.xlu0 %3289
    %v3292 = vmul.f32 %v3271, %v3290
    %v3293 = vxor.u32 %v3265, 2147483648
    %v3294 = vmul.f32 %v3293, 1.442695
    %v3295 = vpow.pop %v3294
    %v3296 = vadd.f32 %v3295, 1.0
    %v3297 = vrcp.pop %v3296
    %v3298 = vmul.f32 1.0, %v3297
    %v3299 = vtanh.pop %v3265
    %v3301 = vrot.slane %v3100, 2
    %v3303 = vmul.f32 %v3298, %v3301
    %3305 = vrot.lane.b32.xlu0 %v3299, 64
    %v3306 = vpop.permute.xlu0 %3305
    %v3308 = vmul.f32 %v3298, %v3306
    %3310 = vrot.lane.b32.xlu0 %v3308, 32
    %v3311 = vpop.permute.xlu0 %3310
    %v3313 = vadd.f32 %v3303, %v3311
    %v3314 = vtanh.pop %v3313
    %3316 = vrot.lane.b32.xlu0 %v3314, 64
    %v3317 = vpop.permute.xlu0 %3316
    %v3319 = vmul.f32 %v3298, %v3317
    %v3321 = vrot.slane %v3292, 2
    %3322 = vrot.lane.b32.xlu0 %v3321, 32
    %v3323 = vpop.permute.xlu0 %3322
    %v3324 = vsel %vm147, %v3323, 0
    %3326 = vmatprep.subr.mxu0 0.0
    %3327 = vmatpush1.msra.mxu0 %v1962
    %3328 = vmatprep.subr.mxu0 0.0
    %3329 = vmatpush1.msra.mxu0 %v1963
    %3330 = vmatprep.subr.mxu0 0.0
    %3331 = vmatpush1.msra.mxu0 %v1964
    %3332 = vmatprep.subr.mxu0 0.0
    %3333 = vmatpush1.msra.mxu0 %v1965
    %3334 = vmatprep.subr.mxu0 0.0
    %3335 = vmatpush1.msra.mxu0 0.0
    %3336 = vmatprep.subr.mxu0 0.0
    %3337 = vmatpush1.msra.mxu0 0.0
    %3338 = vmatprep.subr.mxu0 0.0
    %3339 = vmatpush1.msra.mxu0 0.0
    %3340 = vmatprep.subr.mxu0 0.0
    %3341 = vmatpush1.msra.mxu0 0.0
    %3342 = vmatprep.subr.mxu0 0.0
    %3343 = vmatpush1.msra.mxu0 0.0
    %3344 = vmatprep.subr.mxu0 0.0
    %3345 = vmatpush1.msra.mxu0 0.0
    %3346 = vmatprep.subr.mxu0 0.0
    %3347 = vmatpush1.msra.mxu0 0.0
    %3348 = vmatprep.subr.mxu0 0.0
    %3349 = vmatpush1.msra.mxu0 0.0
    %3350 = vmatprep.subr.mxu0 0.0
    %3351 = vmatpush1.msra.mxu0 0.0
    %3352 = vmatprep.subr.mxu0 0.0
    %3353 = vmatpush1.msra.mxu0 0.0
    %3354 = vmatprep.subr.mxu0 0.0
    %3355 = vmatpush1.msra.mxu0 0.0
    %3356 = vmatprep.subr.mxu0 0.0
    %3357 = vmatpush1.msra.mxu0 0.0
    %3358 = vmatprep.subr.mxu0 0.0
    %3359 = vmatpush1.msra.mxu0 0.0
    %3360 = vmatprep.subr.mxu0 0.0
    %3361 = vmatpush1.msra.mxu0 0.0
    %3362 = vmatprep.subr.mxu0 0.0
    %3363 = vmatpush1.msra.mxu0 0.0
    %3364 = vmatprep.subr.mxu0 0.0
    %3365 = vmatpush1.msra.mxu0 0.0
    %3366 = vmatprep.subr.mxu0 0.0
    %3367 = vmatpush1.msra.mxu0 0.0
    %3368 = vmatprep.subr.mxu0 0.0
    %3369 = vmatpush1.msra.mxu0 0.0
    %3370 = vmatprep.subr.mxu0 0.0
    %3371 = vmatpush1.msra.mxu0 0.0
    %3372 = vmatprep.subr.mxu0 0.0
    %3373 = vmatpush1.msra.mxu0 0.0
    %3374 = vmatprep.subr.mxu0 0.0
    %3375 = vmatpush1.msra.mxu0 0.0
    %3376 = vmatprep.subr.mxu0 0.0
    %3377 = vmatpush1.msra.mxu0 0.0
    %3378 = vmatprep.subr.mxu0 0.0
    %3379 = vmatpush1.msra.mxu0 0.0
    %3380 = vmatprep.subr.mxu0 0.0
    %3381 = vmatpush1.msra.mxu0 0.0
    %3382 = vmatprep.subr.mxu0 0.0
    %3383 = vmatpush1.msra.mxu0 0.0
    %3384 = vmatprep.subr.mxu0 0.0
    %3385 = vmatpush1.msra.mxu0 0.0
    %3386 = vmatprep.subr.mxu0 0.0
    %3387 = vmatpush1.msra.mxu0 0.0
    %3388 = vmatprep.subr.mxu0 0.0
    %3389 = vmatpush1.msra.mxu0 0.0
    %3390 = vmatprep.mubr.f32.mxu0 0.0
    %3391 = vmatmul.mubr.f32.gmra.mrb[0].mxu0 %v3324
    %v3392 = vpop.f32.mrb[0].mxu0
    %v3393 = vadd.f32 0.0, %v3392
    %v3394 = vpop.f32.mrb[0].mxu0
    %3395 = vdwg.mxu0
    %v3397 = vrot.slane %v3393, 4
    %v3399 = vadd.f32 %v2062, %v3397
    %v3401 = vrot.slane %v3319, 4
    %3402 = vrot.lane.b32.xlu0 %v3401, 32
    %v3403 = vpop.permute.xlu0 %3402
    %v3404 = vsel %vm147, %v3403, 0
    %3406 = vmatprep.subr.mxu0 0.0
    %3407 = vmatpush1.msra.mxu0 %v1966
    %3408 = vmatprep.subr.mxu0 0.0
    %3409 = vmatpush1.msra.mxu0 %v1967
    %3410 = vmatprep.subr.mxu0 0.0
    %3411 = vmatpush1.msra.mxu0 %v1968
    %3412 = vmatprep.subr.mxu0 0.0
    %3413 = vmatpush1.msra.mxu0 %v1969
    %3414 = vmatprep.subr.mxu0 0.0
    %3415 = vmatpush1.msra.mxu0 0.0
    %3416 = vmatprep.subr.mxu0 0.0
    %3417 = vmatpush1.msra.mxu0 0.0
    %3418 = vmatprep.subr.mxu0 0.0
    %3419 = vmatpush1.msra.mxu0 0.0
    %3420 = vmatprep.subr.mxu0 0.0
    %3421 = vmatpush1.msra.mxu0 0.0
    %3422 = vmatprep.subr.mxu0 0.0
    %3423 = vmatpush1.msra.mxu0 0.0
    %3424 = vmatprep.subr.mxu0 0.0
    %3425 = vmatpush1.msra.mxu0 0.0
    %3426 = vmatprep.subr.mxu0 0.0
    %3427 = vmatpush1.msra.mxu0 0.0
    %3428 = vmatprep.subr.mxu0 0.0
    %3429 = vmatpush1.msra.mxu0 0.0
    %3430 = vmatprep.subr.mxu0 0.0
    %3431 = vmatpush1.msra.mxu0 0.0
    %3432 = vmatprep.subr.mxu0 0.0
    %3433 = vmatpush1.msra.mxu0 0.0
    %3434 = vmatprep.subr.mxu0 0.0
    %3435 = vmatpush1.msra.mxu0 0.0
    %3436 = vmatprep.subr.mxu0 0.0
    %3437 = vmatpush1.msra.mxu0 0.0
    %3438 = vmatprep.subr.mxu0 0.0
    %3439 = vmatpush1.msra.mxu0 0.0
    %3440 = vmatprep.subr.mxu0 0.0
    %3441 = vmatpush1.msra.mxu0 0.0
    %3442 = vmatprep.subr.mxu0 0.0
    %3443 = vmatpush1.msra.mxu0 0.0
    %3444 = vmatprep.subr.mxu0 0.0
    %3445 = vmatpush1.msra.mxu0 0.0
    %3446 = vmatprep.subr.mxu0 0.0
    %3447 = vmatpush1.msra.mxu0 0.0
    %3448 = vmatprep.subr.mxu0 0.0
    %3449 = vmatpush1.msra.mxu0 0.0
    %3450 = vmatprep.subr.mxu0 0.0
    %3451 = vmatpush1.msra.mxu0 0.0
    %3452 = vmatprep.subr.mxu0 0.0
    %3453 = vmatpush1.msra.mxu0 0.0
    %3454 = vmatprep.subr.mxu0 0.0
    %3455 = vmatpush1.msra.mxu0 0.0
    %3456 = vmatprep.subr.mxu0 0.0
    %3457 = vmatpush1.msra.mxu0 0.0
    %3458 = vmatprep.subr.mxu0 0.0
    %3459 = vmatpush1.msra.mxu0 0.0
    %3460 = vmatprep.subr.mxu0 0.0
    %3461 = vmatpush1.msra.mxu0 0.0
    %3462 = vmatprep.subr.mxu0 0.0
    %3463 = vmatpush1.msra.mxu0 0.0
    %3464 = vmatprep.subr.mxu0 0.0
    %3465 = vmatpush1.msra.mxu0 0.0
    %3466 = vmatprep.subr.mxu0 0.0
    %3467 = vmatpush1.msra.mxu0 0.0
    %3468 = vmatprep.subr.mxu0 0.0
    %3469 = vmatpush1.msra.mxu0 0.0
    %3470 = vmatprep.mubr.f32.mxu0 0.0
    %3471 = vmatmul.mubr.f32.gmra.mrb[0].mxu0 %v3404
    %v3472 = vpop.f32.mrb[0].mxu0
    %v3473 = vadd.f32 0.0, %v3472
    %v3474 = vpop.f32.mrb[0].mxu0
    %3475 = vdwg.mxu0
    %v3477 = vrot.slane %v3473, 6
    %v3479 = vadd.f32 %v2058, %v3477
    %v3480 = vxor.u32 %v3399, 2147483648
    %v3481 = vmul.f32 %v3480, 1.442695
    %v3482 = vpow.pop %v3481
    %v3483 = vadd.f32 %v3482, 1.0
    %v3484 = vrcp.pop %v3483
    %v3485 = vmul.f32 1.0, %v3484
    %v3486 = vtanh.pop %v3399
    %v3488 = vrot.slane %v3286, 6
    %v3490 = vmul.f32 %v3485, %v3488
    %3492 = vrot.lane.b32.xlu0 %v3486, 64
    %v3493 = vpop.permute.xlu0 %3492
    %v3495 = vmul.f32 %v3485, %v3493
    %3497 = vrot.lane.b32.xlu0 %v3495, 32
    %v3498 = vpop.permute.xlu0 %3497
    %v3500 = vadd.f32 %v3490, %v3498
    %v3501 = vtanh.pop %v3500
    %3503 = vrot.lane.b32.xlu0 %v3501, 64
    %v3504 = vpop.permute.xlu0 %3503
    %v3506 = vmul.f32 %v3485, %v3504
    %v3507 = vxor.u32 %v3479, 2147483648
    %v3508 = vmul.f32 %v3507, 1.442695
    %v3509 = vpow.pop %v3508
    %v3510 = vadd.f32 %v3509, 1.0
    %v3511 = vrcp.pop %v3510
    %v3512 = vmul.f32 1.0, %v3511
    %v3513 = vtanh.pop %v3479
    %v3515 = vrot.slane %v3313, 2
    %v3517 = vmul.f32 %v3512, %v3515
    %3519 = vrot.lane.b32.xlu0 %v3513, 64
    %v3520 = vpop.permute.xlu0 %3519
    %v3522 = vmul.f32 %v3512, %v3520
    %3524 = vrot.lane.b32.xlu0 %v3522, 32
    %v3525 = vpop.permute.xlu0 %3524
    %v3527 = vadd.f32 %v3517, %v3525
    %v3528 = vtanh.pop %v3527
    %3530 = vrot.lane.b32.xlu0 %v3528, 64
    %v3531 = vpop.permute.xlu0 %3530
    %v3533 = vmul.f32 %v3512, %v3531
    %v3535 = vrot.slane %v3506, 4
    %3536 = vrot.lane.b32.xlu0 %v3535, 32
    %v3537 = vpop.permute.xlu0 %3536
    %v3538 = vsel %vm147, %v3537, 0
    %3540 = vmatprep.subr.mxu0 0.0
    %3541 = vmatpush1.msra.mxu0 %v1962
    %3542 = vmatprep.subr.mxu0 0.0
    %3543 = vmatpush1.msra.mxu0 %v1963
    %3544 = vmatprep.subr.mxu0 0.0
    %3545 = vmatpush1.msra.mxu0 %v1964
    %3546 = vmatprep.subr.mxu0 0.0
    %3547 = vmatpush1.msra.mxu0 %v1965
    %3548 = vmatprep.subr.mxu0 0.0
    %3549 = vmatpush1.msra.mxu0 0.0
    %3550 = vmatprep.subr.mxu0 0.0
    %3551 = vmatpush1.msra.mxu0 0.0
    %3552 = vmatprep.subr.mxu0 0.0
    %3553 = vmatpush1.msra.mxu0 0.0
    %3554 = vmatprep.subr.mxu0 0.0
    %3555 = vmatpush1.msra.mxu0 0.0
    %3556 = vmatprep.subr.mxu0 0.0
    %3557 = vmatpush1.msra.mxu0 0.0
    %3558 = vmatprep.subr.mxu0 0.0
    %3559 = vmatpush1.msra.mxu0 0.0
    %3560 = vmatprep.subr.mxu0 0.0
    %3561 = vmatpush1.msra.mxu0 0.0
    %3562 = vmatprep.subr.mxu0 0.0
    %3563 = vmatpush1.msra.mxu0 0.0
    %3564 = vmatprep.subr.mxu0 0.0
    %3565 = vmatpush1.msra.mxu0 0.0
    %3566 = vmatprep.subr.mxu0 0.0
    %3567 = vmatpush1.msra.mxu0 0.0
    %3568 = vmatprep.subr.mxu0 0.0
    %3569 = vmatpush1.msra.mxu0 0.0
    %3570 = vmatprep.subr.mxu0 0.0
    %3571 = vmatpush1.msra.mxu0 0.0
    %3572 = vmatprep.subr.mxu0 0.0
    %3573 = vmatpush1.msra.mxu0 0.0
    %3574 = vmatprep.subr.mxu0 0.0
    %3575 = vmatpush1.msra.mxu0 0.0
    %3576 = vmatprep.subr.mxu0 0.0
    %3577 = vmatpush1.msra.mxu0 0.0
    %3578 = vmatprep.subr.mxu0 0.0
    %3579 = vmatpush1.msra.mxu0 0.0
    %3580 = vmatprep.subr.mxu0 0.0
    %3581 = vmatpush1.msra.mxu0 0.0
    %3582 = vmatprep.subr.mxu0 0.0
    %3583 = vmatpush1.msra.mxu0 0.0
    %3584 = vmatprep.subr.mxu0 0.0
    %3585 = vmatpush1.msra.mxu0 0.0
    %3586 = vmatprep.subr.mxu0 0.0
    %3587 = vmatpush1.msra.mxu0 0.0
    %3588 = vmatprep.subr.mxu0 0.0
    %3589 = vmatpush1.msra.mxu0 0.0
    %3590 = vmatprep.subr.mxu0 0.0
    %3591 = vmatpush1.msra.mxu0 0.0
    %3592 = vmatprep.subr.mxu0 0.0
    %3593 = vmatpush1.msra.mxu0 0.0
    %3594 = vmatprep.subr.mxu0 0.0
    %3595 = vmatpush1.msra.mxu0 0.0
    %3596 = vmatprep.subr.mxu0 0.0
    %3597 = vmatpush1.msra.mxu0 0.0
    %3598 = vmatprep.subr.mxu0 0.0
    %3599 = vmatpush1.msra.mxu0 0.0
    %3600 = vmatprep.subr.mxu0 0.0
    %3601 = vmatpush1.msra.mxu0 0.0
    %3602 = vmatprep.subr.mxu0 0.0
    %3603 = vmatpush1.msra.mxu0 0.0
    %3604 = vmatprep.mubr.f32.mxu0 0.0
    %3605 = vmatmul.mubr.f32.gmra.mrb[0].mxu0 %v3538
    %v3606 = vpop.f32.mrb[0].mxu0
    %v3607 = vadd.f32 0.0, %v3606
    %v3608 = vpop.f32.mrb[0].mxu0
    %3609 = vdwg.mxu0
    %v3611 = vrot.slane %v3607, 2
    %v3613 = vadd.f32 %v2062, %v3611
    %v3615 = vrot.slane %v3533, 2
    %3616 = vrot.lane.b32.xlu0 %v3615, 32
    %v3617 = vpop.permute.xlu0 %3616
    %v3618 = vsel %vm147, %v3617, 0
    %3620 = vmatprep.subr.mxu0 0.0
    %3621 = vmatpush1.msra.mxu0 %v1966
    %3622 = vmatprep.subr.mxu0 0.0
    %3623 = vmatpush1.msra.mxu0 %v1967
    %3624 = vmatprep.subr.mxu0 0.0
    %3625 = vmatpush1.msra.mxu0 %v1968
    %3626 = vmatprep.subr.mxu0 0.0
    %3627 = vmatpush1.msra.mxu0 %v1969
    %3628 = vmatprep.subr.mxu0 0.0
    %3629 = vmatpush1.msra.mxu0 0.0
    %3630 = vmatprep.subr.mxu0 0.0
    %3631 = vmatpush1.msra.mxu0 0.0
    %3632 = vmatprep.subr.mxu0 0.0
    %3633 = vmatpush1.msra.mxu0 0.0
    %3634 = vmatprep.subr.mxu0 0.0
    %3635 = vmatpush1.msra.mxu0 0.0
    %3636 = vmatprep.subr.mxu0 0.0
    %3637 = vmatpush1.msra.mxu0 0.0
    %3638 = vmatprep.subr.mxu0 0.0
    %3639 = vmatpush1.msra.mxu0 0.0
    %3640 = vmatprep.subr.mxu0 0.0
    %3641 = vmatpush1.msra.mxu0 0.0
    %3642 = vmatprep.subr.mxu0 0.0
    %3643 = vmatpush1.msra.mxu0 0.0
    %3644 = vmatprep.subr.mxu0 0.0
    %3645 = vmatpush1.msra.mxu0 0.0
    %3646 = vmatprep.subr.mxu0 0.0
    %3647 = vmatpush1.msra.mxu0 0.0
    %3648 = vmatprep.subr.mxu0 0.0
    %3649 = vmatpush1.msra.mxu0 0.0
    %3650 = vmatprep.subr.mxu0 0.0
    %3651 = vmatpush1.msra.mxu0 0.0
    %3652 = vmatprep.subr.mxu0 0.0
    %3653 = vmatpush1.msra.mxu0 0.0
    %3654 = vmatprep.subr.mxu0 0.0
    %3655 = vmatpush1.msra.mxu0 0.0
    %3656 = vmatprep.subr.mxu0 0.0
    %3657 = vmatpush1.msra.mxu0 0.0
    %3658 = vmatprep.subr.mxu0 0.0
    %3659 = vmatpush1.msra.mxu0 0.0
    %3660 = vmatprep.subr.mxu0 0.0
    %3661 = vmatpush1.msra.mxu0 0.0
    %3662 = vmatprep.subr.mxu0 0.0
    %3663 = vmatpush1.msra.mxu0 0.0
    %3664 = vmatprep.subr.mxu0 0.0
    %3665 = vmatpush1.msra.mxu0 0.0
    %3666 = vmatprep.subr.mxu0 0.0
    %3667 = vmatpush1.msra.mxu0 0.0
    %3668 = vmatprep.subr.mxu0 0.0
    %3669 = vmatpush1.msra.mxu0 0.0
    %3670 = vmatprep.subr.mxu0 0.0
    %3671 = vmatpush1.msra.mxu0 0.0
    %3672 = vmatprep.subr.mxu0 0.0
    %3673 = vmatpush1.msra.mxu0 0.0
    %3674 = vmatprep.subr.mxu0 0.0
    %3675 = vmatpush1.msra.mxu0 0.0
    %3676 = vmatprep.subr.mxu0 0.0
    %3677 = vmatpush1.msra.mxu0 0.0
    %3678 = vmatprep.subr.mxu0 0.0
    %3679 = vmatpush1.msra.mxu0 0.0
    %3680 = vmatprep.subr.mxu0 0.0
    %3681 = vmatpush1.msra.mxu0 0.0
    %3682 = vmatprep.subr.mxu0 0.0
    %3683 = vmatpush1.msra.mxu0 0.0
    %3684 = vmatprep.mubr.f32.mxu0 0.0
    %3685 = vmatmul.mubr.f32.gmra.mrb[0].mxu0 %v3618
    %v3686 = vpop.f32.mrb[0].mxu0
    %v3687 = vadd.f32 0.0, %v3686
    %v3688 = vpop.f32.mrb[0].mxu0
    %3689 = vdwg.mxu0
    %v3690 = vadd.f32 %v2058, %v3687
    %v3691 = vxor.u32 %v3613, 2147483648
    %v3692 = vmul.f32 %v3691, 1.442695
    %v3693 = vpow.pop %v3692
    %v3694 = vadd.f32 %v3693, 1.0
    %v3695 = vrcp.pop %v3694
    %v3696 = vmul.f32 1.0, %v3695
    %v3697 = vtanh.pop %v3613
    %v3699 = vrot.slane %v3500, 6
    %v3701 = vmul.f32 %v3696, %v3699
    %3703 = vrot.lane.b32.xlu0 %v3697, 64
    %v3704 = vpop.permute.xlu0 %3703
    %v3706 = vmul.f32 %v3696, %v3704
    %3708 = vrot.lane.b32.xlu0 %v3706, 32
    %v3709 = vpop.permute.xlu0 %3708
    %v3711 = vadd.f32 %v3701, %v3709
    %v3712 = vtanh.pop %v3711
    %3714 = vrot.lane.b32.xlu0 %v3712, 64
    %v3715 = vpop.permute.xlu0 %3714
    %v3717 = vmul.f32 %v3696, %v3715
    %v3718 = vxor.u32 %v3690, 2147483648
    %v3719 = vmul.f32 %v3718, 1.442695
    %v3720 = vpow.pop %v3719
    %v3721 = vadd.f32 %v3720, 1.0
    %v3722 = vrcp.pop %v3721
    %v3723 = vmul.f32 1.0, %v3722
    %v3724 = vtanh.pop %v3690
    %v3726 = vrot.slane %v3527, 2
    %v3728 = vmul.f32 %v3723, %v3726
    %3730 = vrot.lane.b32.xlu0 %v3724, 64
    %v3731 = vpop.permute.xlu0 %3730
    %v3733 = vmul.f32 %v3723, %v3731
    %3735 = vrot.lane.b32.xlu0 %v3733, 32
    %v3736 = vpop.permute.xlu0 %3735
    %v3738 = vadd.f32 %v3728, %v3736
    %v3739 = vtanh.pop %v3738
    %3741 = vrot.lane.b32.xlu0 %v3739, 64
    %v3742 = vpop.permute.xlu0 %3741
    %v3744 = vmul.f32 %v3723, %v3742
    %v3745 = vsel %vm1913, %v2234, %v2444
    %v3746 = vsel %vm1915, %v3745, %v2658
    %v3747 = vsel %vm1917, %v3746, %v2869
    %v3748 = vsel %vm1913, %v3079, %v3292
    %v3749 = vsel %vm1915, %v3748, %v3506
    %v3750 = vsel %vm1917, %v3749, %v3717
    %v3751 = vsel %vm1913, %v3744, %v3533
    %v3752 = vsel %vm1915, %v3751, %v3319
    %v3753 = vsel %vm1917, %v3752, %v3106
    %v3754 = vsel %vm1913, %v2896, %v2685
    %v3755 = vsel %vm1915, %v3754, %v2471
    %v3756 = vsel %vm1917, %v3755, %v2258
    %3759 = vrot.lane.b32.xlu0 %v3747, 32
    %v3760 = vpop.permute.xlu0 %3759
    %3761 = vrot.lane.b32.xlu0 %v3750, 32
    %v3762 = vpop.permute.xlu0 %3761
    %3767 = vrot.lane.b32.xlu0 %v3753, 64
    %v3768 = vpop.permute.xlu0 %3767
    %3769 = vrot.lane.b32.xlu0 %v3756, 64
    %v3770 = vpop.permute.xlu0 %3769
    %v3773 = vsel %vm147, %v3760, %v3768
    %v3774 = vsel %vm147, %v3762, %v3770
    %v3775 = vld [vmem:[%s9] sm:$0xff]
    %v3776 = vld [vmem:[%s9 + $0x8] sm:$0xff]
    %v3777 = vld [vmem:[%s9 + $0x10] sm:$0xff]
    %v3778 = vld [vmem:[%s9 + $0x18] sm:$0xff]
    %v3779 = vld [vmem:[%s9 + $0x20] sm:$0xff]
    %v3780 = vld [vmem:[%s9 + $0x28] sm:$0xff]
    %v3781 = vld [vmem:[%s9 + $0x30] sm:$0xff]
    %v3782 = vld [vmem:[%s9 + $0x38] sm:$0xff]
    %v3783 = vld [vmem:[#allocation11] sm:$0x1]
    %v3785 = vlaneseq
    %v3786 = vshrl.u32 %v3785, 7
    %v3787 = vsub.s32 0, %v3786
    %v3788 = vrot.slane %v3783, %v3787
    %v3791 = vsel %vm1982, %v3773, 0
    %v3794 = vsel %vm1982, %v3774, 0
    %3796 = vmatprep.subr.mxu0 0.0
    %3797 = vmatpush1.msra.mxu0 %v3775
    %3798 = vmatprep.subr.mxu0 0.0
    %3799 = vmatpush1.msra.mxu0 %v3776
    %3800 = vmatprep.subr.mxu0 0.0
    %3801 = vmatpush1.msra.mxu0 %v3777
    %3802 = vmatprep.subr.mxu0 0.0
    %3803 = vmatpush1.msra.mxu0 %v3778
    %3804 = vmatprep.subr.mxu0 0.0
    %3805 = vmatpush1.msra.mxu0 %v3779
    %3806 = vmatprep.subr.mxu0 0.0
    %3807 = vmatpush1.msra.mxu0 %v3780
    %3808 = vmatprep.subr.mxu0 0.0
    %3809 = vmatpush1.msra.mxu0 %v3781
    %3810 = vmatprep.subr.mxu0 0.0
    %3811 = vmatpush1.msra.mxu0 %v3782
    %3812 = vmatprep.subr.mxu0 0.0
    %3813 = vmatpush1.msra.mxu0 0.0
    %3814 = vmatprep.subr.mxu0 0.0
    %3815 = vmatpush1.msra.mxu0 0.0
    %3816 = vmatprep.subr.mxu0 0.0
    %3817 = vmatpush1.msra.mxu0 0.0
    %3818 = vmatprep.subr.mxu0 0.0
    %3819 = vmatpush1.msra.mxu0 0.0
    %3820 = vmatprep.subr.mxu0 0.0
    %3821 = vmatpush1.msra.mxu0 0.0
    %3822 = vmatprep.subr.mxu0 0.0
    %3823 = vmatpush1.msra.mxu0 0.0
    %3824 = vmatprep.subr.mxu0 0.0
    %3825 = vmatpush1.msra.mxu0 0.0
    %3826 = vmatprep.subr.mxu0 0.0
    %3827 = vmatpush1.msra.mxu0 0.0
    %3828 = vmatprep.subr.mxu0 0.0
    %3829 = vmatpush1.msra.mxu0 0.0
    %3830 = vmatprep.subr.mxu0 0.0
    %3831 = vmatpush1.msra.mxu0 0.0
    %3832 = vmatprep.subr.mxu0 0.0
    %3833 = vmatpush1.msra.mxu0 0.0
    %3834 = vmatprep.subr.mxu0 0.0
    %3835 = vmatpush1.msra.mxu0 0.0
    %3836 = vmatprep.subr.mxu0 0.0
    %3837 = vmatpush1.msra.mxu0 0.0
    %3838 = vmatprep.subr.mxu0 0.0
    %3839 = vmatpush1.msra.mxu0 0.0
    %3840 = vmatprep.subr.mxu0 0.0
    %3841 = vmatpush1.msra.mxu0 0.0
    %3842 = vmatprep.subr.mxu0 0.0
    %3843 = vmatpush1.msra.mxu0 0.0
    %3844 = vmatprep.subr.mxu0 0.0
    %3845 = vmatpush1.msra.mxu0 0.0
    %3846 = vmatprep.subr.mxu0 0.0
    %3847 = vmatpush1.msra.mxu0 0.0
    %3848 = vmatprep.subr.mxu0 0.0
    %3849 = vmatpush1.msra.mxu0 0.0
    %3850 = vmatprep.subr.mxu0 0.0
    %3851 = vmatpush1.msra.mxu0 0.0
    %3852 = vmatprep.subr.mxu0 0.0
    %3853 = vmatpush1.msra.mxu0 0.0
    %3854 = vmatprep.subr.mxu0 0.0
    %3855 = vmatpush1.msra.mxu0 0.0
    %3856 = vmatprep.subr.mxu0 0.0
    %3857 = vmatpush1.msra.mxu0 0.0
    %3858 = vmatprep.subr.mxu0 0.0
    %3859 = vmatpush1.msra.mxu0 0.0
    %3860 = vmatprep.mubr.f32.mxu0 0.0
    %3861 = vmatmul.mubr.f32.gmra.mrb[0].mxu0 %v3791
    %v3862 = vpop.f32.mrb[0].mxu0
    %v3863 = vadd.f32 %v3788, %v3862
    %v3864 = vpop.f32.mrb[0].mxu0
    %3865 = vmatprep.mubr.f32.mxu0 0.0
    %3866 = vmatmul.mubr.f32.gmra.mrb[0].mxu0 %v3794
    %v3867 = vpop.f32.mrb[0].mxu0
    %v3868 = vadd.f32 %v3788, %v3867
    %v3869 = vpop.f32.mrb[0].mxu0
    %3870 = vdwg.mxu0
    %vm3871 = vcmask 130048
    %3872 = vst.msk [vmem:[#allocation13] sm:$0xff] %vm3871, %v3863
    %3873 = vst.msk [vmem:[#allocation13 + $0x8] sm:$0xff] %vm3871, %v3868
    // Predicated region
    $region70: #{bidirectional_lstm_forward.1} parent=1 // pred_check
      _
    $region71: #{bidirectional_lstm_forward.1} parent=1 // pred_check_branch
      %3875 = sbr.rel (0) target = $region73
    $region72: #{bidirectional_lstm_forward.1} parent=1 // pred_region
      %s3877 = ssub.s32 256, 256
      %3878 = vsyncadd [#allocation4], %s3877
      %s3879 = sshll.u32 [#allocation13], 4
      %s3880 = int_to_ptr.vmem [resolvable:$true] %s3879
      %3885 = dma.vmem_to_hbm [thread:$0]  %s3880, 256, %s11, [#allocation4], 128, 128, 8
    $region73: #{bidirectional_lstm_forward.1} parent=1 // pred_fallthru
      _
    // Predicated region
    $region74: #{bidirectional_lstm_forward.1} parent=1 // pred_check
      _
    $region75: #{bidirectional_lstm_forward.1} parent=1 // pred_check_branch
      %3887 = sbr.rel (0) target = $region77
    $region76: #{bidirectional_lstm_forward.1} parent=1 // pred_region
      %3888 = dma.done [#allocation4], 256
    $region77: #{bidirectional_lstm_forward.1} parent=1 // pred_fallthru
      _
    %3889 = vsyncpa [#allocation3], 1
    %3890 = vsyncpa [#allocation6], 1
    %3891 = vsyncpa [#allocation9], 1
    %3892 = vsyncpa [#allocation12], 1
    %3893 = vsyncpa [#allocation4], 1

</llo_original>
